<compile_context>
chip_gen: v6e
topology: v6e:2x2x1
jax: 0.10.0
libtpu: 0.0.40
codegen_flags: <defaults>
</compile_context>

<pallas_src>
import functools

import jax
import jax.numpy as jnp
from jax import lax
from jax.experimental import pallas as pl
from jax.experimental.pallas import tpu as pltpu


def _vgg_block_kernel(xp_ref, w1_ref, b1_ref, gmat1_ref, g1_ref, be1_ref,
                      w2_ref, b2_ref, gmat2_ref, g2_ref, be2_ref,
                      o_ref, hpad_ref, *, H, W, eps):
    """One batch element: (conv3x3 + GroupNorm + ReLU) x 2, fused."""
    Cmid = w1_ref.shape[-1]
    Cout = w2_ref.shape[-1]

    def conv_gn_relu(xp, w, b, gmat, gamma, beta):
        cin = xp.shape[-1]
        # im2col: 9 shifted views concatenated along the lane axis -> one MXU
        # matmul with contraction depth 9*cin (instead of 9 shallow matmuls).
        taps = [xp[dy:dy + H, dx:dx + W, :].reshape(H * W, cin)
                for dy in range(3) for dx in range(3)]
        patches = jnp.concatenate(taps, axis=-1)                  # (H*W, 9*cin)
        acc = jnp.dot(patches, w,
                      preferred_element_type=jnp.float32) + b     # (H*W, cout)

        # GroupNorm, two-pass: per-channel stats reduced over rows (XLU), then
        # averaged within each group by a tiny block-diagonal matmul.
        mean_c = jnp.mean(acc, axis=0, keepdims=True)             # (1, cout)
        gmean = jnp.dot(mean_c, gmat,
                        preferred_element_type=jnp.float32)       # group mean
        centered = acc - gmean
        var_c = jnp.mean(centered * centered, axis=0, keepdims=True)
        gvar = jnp.dot(var_c, gmat,
                       preferred_element_type=jnp.float32)        # group var
        scale = lax.rsqrt(gvar + eps) * gamma                     # fold gamma*inv
        return jnp.maximum(centered * scale + beta, 0.0)          # ReLU

    # ---- layer 1 (input already zero-padded by the wrapper) ----
    h1 = conv_gn_relu(xp_ref[...], w1_ref[...], b1_ref[...],
                      gmat1_ref[...], g1_ref[...], be1_ref[...])  # (H*W, Cmid)

    # Stash the intermediate, zero-padded, in VMEM scratch (never leaves chip).
    hpad_ref[...] = jnp.zeros_like(hpad_ref)
    hpad_ref[pl.ds(1, H), pl.ds(1, W), :] = h1.reshape(H, W, Cmid)

    # ---- layer 2 ----
    h2 = conv_gn_relu(hpad_ref[...], w2_ref[...], b2_ref[...],
                      gmat2_ref[...], g2_ref[...], be2_ref[...])  # (H*W, Cout)

    o_ref[...] = h2.reshape(H, W, Cout).astype(o_ref.dtype)


def _group_avg_matrix(C, num_groups):
    gsz = C // num_groups
    gid = jnp.arange(C) // gsz
    return (gid[:, None] == gid[None, :]).astype(jnp.float32) / gsz  # (C, C)


def vgg_block(x_nchw, params, num_groups=8, eps=1e-5):
    """Full VGGBlock forward. Input/output are NCHW to match the PyTorch module."""
    N, Cin, H, W = x_nchw.shape
    Cmid = params["conv1_w"].shape[0]
    Cout = params["conv2_w"].shape[0]

    # Glue: NCHW -> NHWC, OIHW -> (9*Cin, Cout) flattened im2col weights.
    x = jnp.transpose(x_nchw, (0, 2, 3, 1))
    xp = jnp.pad(x, ((0, 0), (1, 1), (1, 1), (0, 0)))              # padding=1
    w1 = jnp.transpose(params["conv1_w"], (2, 3, 1, 0)).reshape(9 * Cin, Cmid)
    w2 = jnp.transpose(params["conv2_w"], (2, 3, 1, 0)).reshape(9 * Cmid, Cout)
    b1 = params["conv1_b"].reshape(1, Cmid)
    b2 = params["conv2_b"].reshape(1, Cout)
    g1 = params["gn1_g"].reshape(1, Cmid)
    be1 = params["gn1_b"].reshape(1, Cmid)
    g2 = params["gn2_g"].reshape(1, Cout)
    be2 = params["gn2_b"].reshape(1, Cout)
    gmat1 = _group_avg_matrix(Cmid, num_groups)
    gmat2 = _group_avg_matrix(Cout, num_groups)

    kern = functools.partial(_vgg_block_kernel, H=H, W=W, eps=eps)
    out = pl.pallas_call(
        kern,
        out_shape=jax.ShapeDtypeStruct((N, H, W, Cout), jnp.float32),
        grid_spec=pltpu.PrefetchScalarGridSpec(
            num_scalar_prefetch=0,
            grid=(N,),
            in_specs=[
                pl.BlockSpec((None, H + 2, W + 2, Cin), lambda n: (n, 0, 0, 0)),
                pl.BlockSpec((9 * Cin, Cmid), lambda n: (0, 0)),
                pl.BlockSpec((1, Cmid), lambda n: (0, 0)),
                pl.BlockSpec((Cmid, Cmid), lambda n: (0, 0)),
                pl.BlockSpec((1, Cmid), lambda n: (0, 0)),
                pl.BlockSpec((1, Cmid), lambda n: (0, 0)),
                pl.BlockSpec((9 * Cmid, Cout), lambda n: (0, 0)),
                pl.BlockSpec((1, Cout), lambda n: (0, 0)),
                pl.BlockSpec((Cout, Cout), lambda n: (0, 0)),
                pl.BlockSpec((1, Cout), lambda n: (0, 0)),
                pl.BlockSpec((1, Cout), lambda n: (0, 0)),
            ],
            out_specs=pl.BlockSpec((None, H, W, Cout), lambda n: (n, 0, 0, 0)),
            scratch_shapes=[pltpu.VMEM((H + 2, W + 2, Cmid), jnp.float32)],
        ),
        compiler_params=pltpu.CompilerParams(
            dimension_semantics=("parallel",),        # batch independent -> 2 TCs on v7x
            vmem_limit_bytes=32 * 1024 * 1024,        # raise v5e's 16 MiB default
        ),
    )(xp, w1, b1, gmat1, g1, be1, w2, b2, gmat2, g2, be2)

    return jnp.transpose(out, (0, 3, 1, 2))                        # NHWC -> NCHW


# ---------------- pure-JAX reference (for correctness check) ----------------
def _ref_layer(x_nhwc, w_hwio, b, gamma, beta, G, eps=1e-5):
    y = lax.conv_general_dilated(x_nhwc, w_hwio, (1, 1), "SAME",
                                 dimension_numbers=("NHWC", "HWIO", "NHWC"))
    y = y + b
    N, H, W, C = y.shape
    yr = y.reshape(N, H, W, G, C // G)
    mean = yr.mean(axis=(1, 2, 4), keepdims=True)
    var = ((yr - mean) ** 2).mean(axis=(1, 2, 4), keepdims=True)
    yn = ((yr - mean) / jnp.sqrt(var + eps)).reshape(N, H, W, C)
    return jnp.maximum(yn * gamma + beta, 0.0)


def _ref_vgg_block(x_nchw, params, num_groups=8):
    x = jnp.transpose(x_nchw, (0, 2, 3, 1))
    w1 = jnp.transpose(params["conv1_w"], (2, 3, 1, 0))
    w2 = jnp.transpose(params["conv2_w"], (2, 3, 1, 0))
    h = _ref_layer(x, w1, params["conv1_b"], params["gn1_g"], params["gn1_b"], num_groups)
    h = _ref_layer(h, w2, params["conv2_b"], params["gn2_g"], params["gn2_b"], num_groups)
    return jnp.transpose(h, (0, 3, 1, 2))


if __name__ == "__main__":
    # Shapes consistent with VGGBlock(in=4, middle=16, out=16, num_groups=8)
    N, Cin, Cmid, Cout, Hs, Ws, G = 2, 4, 16, 16, 16, 16, 8

    key = jax.random.PRNGKey(0)
    ks = jax.random.split(key, 9)
    params = {
        "conv1_w": 0.1 * jax.random.normal(ks[0], (Cmid, Cin, 3, 3), jnp.float32),
        "conv1_b": 0.1 * jax.random.normal(ks[1], (Cmid,), jnp.float32),
        "gn1_g":   1.0 + 0.1 * jax.random.normal(ks[2], (Cmid,), jnp.float32),
        "gn1_b":   0.1 * jax.random.normal(ks[3], (Cmid,), jnp.float32),
        "conv2_w": 0.1 * jax.random.normal(ks[4], (Cout, Cmid, 3, 3), jnp.float32),
        "conv2_b": 0.1 * jax.random.normal(ks[5], (Cout,), jnp.float32),
        "gn2_g":   1.0 + 0.1 * jax.random.normal(ks[6], (Cout,), jnp.float32),
        "gn2_b":   0.1 * jax.random.normal(ks[7], (Cout,), jnp.float32),
    }
    x = jax.random.normal(ks[8], (N, Cin, Hs, Ws), jnp.float32)

    out = jax.block_until_ready(vgg_block(x, params, num_groups=G))
    ref = jax.block_until_ready(_ref_vgg_block(x, params, num_groups=G))

    assert out.shape == (N, Cout, Hs, Ws), out.shape
    err = float(jnp.max(jnp.abs(out - ref)))
    assert err < 2e-3, f"max abs error {err}"

    print("KERNEL_OK")
</pallas_src>

<mosaic_0001>
module attributes {stable_mosaic.version = 11 : i64} {
  func.func @_vgg_block_kernel(%arg0: i32, %arg1: memref<1x18x18x4xf32, #tpu.memory_space<vmem>>, %arg2: memref<36x16xf32, #tpu.memory_space<vmem>>, %arg3: memref<1x16xf32, #tpu.memory_space<vmem>>, %arg4: memref<16x16xf32, #tpu.memory_space<vmem>>, %arg5: memref<1x16xf32, #tpu.memory_space<vmem>>, %arg6: memref<1x16xf32, #tpu.memory_space<vmem>>, %arg7: memref<144x16xf32, #tpu.memory_space<vmem>>, %arg8: memref<1x16xf32, #tpu.memory_space<vmem>>, %arg9: memref<16x16xf32, #tpu.memory_space<vmem>>, %arg10: memref<1x16xf32, #tpu.memory_space<vmem>>, %arg11: memref<1x16xf32, #tpu.memory_space<vmem>>, %arg12: memref<1x16x16x16xf32, #tpu.memory_space<vmem>>, %arg13: memref<18x18x16xf32, #tpu.memory_space<vmem>>) attributes {dimension_semantics = [#tpu.dimension_semantics<parallel>], iteration_bounds = array<i64: 2>, scalar_prefetch = 0 : i64, scratch_operands = 1 : i64, tpu.core_type = #tpu.core_type<tc>, window_params = [{transform_indices = @transform_0, window_bounds = array<i64: 1, 18, 18, 4>}, {pipeline_mode = #tpu.pipeline_mode<synchronous>, transform_indices = @transform_1, window_bounds = array<i64: 36, 16>}, {pipeline_mode = #tpu.pipeline_mode<synchronous>, transform_indices = @transform_2, window_bounds = array<i64: 1, 16>}, {pipeline_mode = #tpu.pipeline_mode<synchronous>, transform_indices = @transform_3, window_bounds = array<i64: 16, 16>}, {pipeline_mode = #tpu.pipeline_mode<synchronous>, transform_indices = @transform_4, window_bounds = array<i64: 1, 16>}, {pipeline_mode = #tpu.pipeline_mode<synchronous>, transform_indices = @transform_5, window_bounds = array<i64: 1, 16>}, {pipeline_mode = #tpu.pipeline_mode<synchronous>, transform_indices = @transform_6, window_bounds = array<i64: 144, 16>}, {pipeline_mode = #tpu.pipeline_mode<synchronous>, transform_indices = @transform_7, window_bounds = array<i64: 1, 16>}, {pipeline_mode = #tpu.pipeline_mode<synchronous>, transform_indices = @transform_8, window_bounds = array<i64: 16, 16>}, {pipeline_mode = #tpu.pipeline_mode<synchronous>, transform_indices = @transform_9, window_bounds = array<i64: 1, 16>}, {pipeline_mode = #tpu.pipeline_mode<synchronous>, transform_indices = @transform_10, window_bounds = array<i64: 1, 16>}, {transform_indices = @transform_11, window_bounds = array<i64: 1, 16, 16, 16>}]} {
    %c0 = arith.constant 0 : index
    %c0_0 = arith.constant 0 : index
    %c0_1 = arith.constant 0 : index
    %c0_2 = arith.constant 0 : index
    %0 = vector.load %arg1[%c0, %c0_0, %c0_1, %c0_2] : memref<1x18x18x4xf32, #tpu.memory_space<vmem>>, vector<1x18x18x4xf32>
    %1 = vector.shape_cast %0 : vector<1x18x18x4xf32> to vector<18x18x4xf32>
    %c0_3 = arith.constant 0 : index
    %c0_4 = arith.constant 0 : index
    %2 = vector.load %arg2[%c0_3, %c0_4] : memref<36x16xf32, #tpu.memory_space<vmem>>, vector<36x16xf32>
    %c0_5 = arith.constant 0 : index
    %c0_6 = arith.constant 0 : index
    %3 = vector.load %arg3[%c0_5, %c0_6] : memref<1x16xf32, #tpu.memory_space<vmem>>, vector<1x16xf32>
    %c0_7 = arith.constant 0 : index
    %c0_8 = arith.constant 0 : index
    %4 = vector.load %arg4[%c0_7, %c0_8] : memref<16x16xf32, #tpu.memory_space<vmem>>, vector<16x16xf32>
    %c0_9 = arith.constant 0 : index
    %c0_10 = arith.constant 0 : index
    %5 = vector.load %arg5[%c0_9, %c0_10] : memref<1x16xf32, #tpu.memory_space<vmem>>, vector<1x16xf32>
    %c0_11 = arith.constant 0 : index
    %c0_12 = arith.constant 0 : index
    %6 = vector.load %arg6[%c0_11, %c0_12] : memref<1x16xf32, #tpu.memory_space<vmem>>, vector<1x16xf32>
    %7 = vector.extract_strided_slice %1 {offsets = [0, 0, 0], sizes = [16, 16, 4], strides = [1, 1, 1]} : vector<18x18x4xf32> to vector<16x16x4xf32>
    %8 = vector.shape_cast %7 : vector<16x16x4xf32> to vector<256x4xf32>
    %9 = vector.extract_strided_slice %1 {offsets = [0, 1, 0], sizes = [16, 16, 4], strides = [1, 1, 1]} : vector<18x18x4xf32> to vector<16x16x4xf32>
    %10 = vector.shape_cast %9 : vector<16x16x4xf32> to vector<256x4xf32>
    %11 = vector.extract_strided_slice %1 {offsets = [0, 2, 0], sizes = [16, 16, 4], strides = [1, 1, 1]} : vector<18x18x4xf32> to vector<16x16x4xf32>
    %12 = vector.shape_cast %11 : vector<16x16x4xf32> to vector<256x4xf32>
    %13 = vector.extract_strided_slice %1 {offsets = [1, 0, 0], sizes = [16, 16, 4], strides = [1, 1, 1]} : vector<18x18x4xf32> to vector<16x16x4xf32>
    %14 = vector.shape_cast %13 : vector<16x16x4xf32> to vector<256x4xf32>
    %15 = vector.extract_strided_slice %1 {offsets = [1, 1, 0], sizes = [16, 16, 4], strides = [1, 1, 1]} : vector<18x18x4xf32> to vector<16x16x4xf32>
    %16 = vector.shape_cast %15 : vector<16x16x4xf32> to vector<256x4xf32>
    %17 = vector.extract_strided_slice %1 {offsets = [1, 2, 0], sizes = [16, 16, 4], strides = [1, 1, 1]} : vector<18x18x4xf32> to vector<16x16x4xf32>
    %18 = vector.shape_cast %17 : vector<16x16x4xf32> to vector<256x4xf32>
    %19 = vector.extract_strided_slice %1 {offsets = [2, 0, 0], sizes = [16, 16, 4], strides = [1, 1, 1]} : vector<18x18x4xf32> to vector<16x16x4xf32>
    %20 = vector.shape_cast %19 : vector<16x16x4xf32> to vector<256x4xf32>
    %21 = vector.extract_strided_slice %1 {offsets = [2, 1, 0], sizes = [16, 16, 4], strides = [1, 1, 1]} : vector<18x18x4xf32> to vector<16x16x4xf32>
    %22 = vector.shape_cast %21 : vector<16x16x4xf32> to vector<256x4xf32>
    %23 = vector.extract_strided_slice %1 {offsets = [2, 2, 0], sizes = [16, 16, 4], strides = [1, 1, 1]} : vector<18x18x4xf32> to vector<16x16x4xf32>
    %24 = vector.shape_cast %23 : vector<16x16x4xf32> to vector<256x4xf32>
    %25 = tpu.concatenate %8, %10, %12, %14, %16, %18, %20, %22, %24 in 1 : vector<256x4xf32>, vector<256x4xf32>, vector<256x4xf32>, vector<256x4xf32>, vector<256x4xf32>, vector<256x4xf32>, vector<256x4xf32>, vector<256x4xf32>, vector<256x4xf32> -> vector<256x36xf32>
    %cst = arith.constant dense<0.000000e+00> : vector<256x16xf32>
    %26 = tpu.matmul %25, %2, %cst {dimension_numbers = #tpu.dot_dimension_numbers<[1], [0], [0], [1], [0, 0, 1, 1], [], []>} : vector<256x36xf32>, vector<36x16xf32>, vector<256x16xf32> -> vector<256x16xf32>
    %27 = vector.broadcast %3 : vector<1x16xf32> to vector<256x16xf32>
    %28 = arith.addf %26, %27 : vector<256x16xf32>
    %cst_13 = arith.constant dense<0.000000e+00> : vector<16xf32>
    %29 = vector.multi_reduction <add>, %28, %cst_13 [0] : vector<256x16xf32> to vector<16xf32>
    %30 = vector.shape_cast %29 : vector<16xf32> to vector<1x16xf32>
    %cst_14 = arith.constant 2.560000e+02 : f32
    %31 = vector.broadcast %cst_14 : f32 to vector<1x16xf32>
    %32 = arith.divf %30, %31 : vector<1x16xf32>
    %cst_15 = arith.constant dense<0.000000e+00> : vector<1x16xf32>
    %33 = tpu.matmul %32, %4, %cst_15 {dimension_numbers = #tpu.dot_dimension_numbers<[1], [0], [0], [1], [0, 0, 1, 1], [], []>} : vector<1x16xf32>, vector<16x16xf32>, vector<1x16xf32> -> vector<1x16xf32>
    %34 = vector.broadcast %33 : vector<1x16xf32> to vector<256x16xf32>
    %35 = arith.subf %28, %34 : vector<256x16xf32>
    %36 = arith.mulf %35, %35 : vector<256x16xf32>
    %cst_16 = arith.constant dense<0.000000e+00> : vector<16xf32>
    %37 = vector.multi_reduction <add>, %36, %cst_16 [0] : vector<256x16xf32> to vector<16xf32>
    %38 = vector.shape_cast %37 : vector<16xf32> to vector<1x16xf32>
    %cst_17 = arith.constant 2.560000e+02 : f32
    %39 = vector.broadcast %cst_17 : f32 to vector<1x16xf32>
    %40 = arith.divf %38, %39 : vector<1x16xf32>
    %cst_18 = arith.constant dense<0.000000e+00> : vector<1x16xf32>
    %41 = tpu.matmul %40, %4, %cst_18 {dimension_numbers = #tpu.dot_dimension_numbers<[1], [0], [0], [1], [0, 0, 1, 1], [], []>} : vector<1x16xf32>, vector<16x16xf32>, vector<1x16xf32> -> vector<1x16xf32>
    %cst_19 = arith.constant 9.99999974E-6 : f32
    %42 = vector.broadcast %cst_19 : f32 to vector<1x16xf32>
    %43 = arith.addf %41, %42 : vector<1x16xf32>
    %44 = math.rsqrt %43 : vector<1x16xf32>
    %45 = arith.mulf %44, %5 : vector<1x16xf32>
    %46 = vector.broadcast %45 : vector<1x16xf32> to vector<256x16xf32>
    %47 = arith.mulf %35, %46 : vector<256x16xf32>
    %48 = vector.broadcast %6 : vector<1x16xf32> to vector<256x16xf32>
    %49 = arith.addf %47, %48 : vector<256x16xf32>
    %cst_20 = arith.constant 0.000000e+00 : f32
    %50 = vector.broadcast %cst_20 : f32 to vector<256x16xf32>
    %51 = arith.maximumf %49, %50 : vector<256x16xf32>
    %cst_21 = arith.constant 0.000000e+00 : f32
    %52 = vector.broadcast %cst_21 : f32 to vector<18x18x16xf32>
    %c0_22 = arith.constant 0 : index
    %c0_23 = arith.constant 0 : index
    %c0_24 = arith.constant 0 : index
    %53 = vector.load %arg13[%c0_22, %c0_23, %c0_24] : memref<18x18x16xf32, #tpu.memory_space<vmem>>, vector<18x18x16xf32>
    tpu.vector_store %arg13[%c0_22, %c0_23, %c0_24], %52 {strides = array<i32>} : memref<18x18x16xf32, #tpu.memory_space<vmem>>, vector<18x18x16xf32>,
    %54 = vector.shape_cast %51 : vector<256x16xf32> to vector<16x16x16xf32>
    %c1 = arith.constant 1 : index
    %c1_25 = arith.constant 1 : index
    %c0_26 = arith.constant 0 : index
    %55 = vector.load %arg13[%c1, %c1_25, %c0_26] : memref<18x18x16xf32, #tpu.memory_space<vmem>>, vector<16x16x16xf32>
    tpu.vector_store %arg13[%c1, %c1_25, %c0_26], %54 {strides = array<i32>} : memref<18x18x16xf32, #tpu.memory_space<vmem>>, vector<16x16x16xf32>,
    %c0_27 = arith.constant 0 : index
    %c0_28 = arith.constant 0 : index
    %c0_29 = arith.constant 0 : index
    %56 = vector.load %arg13[%c0_27, %c0_28, %c0_29] : memref<18x18x16xf32, #tpu.memory_space<vmem>>, vector<18x18x16xf32>
    %c0_30 = arith.constant 0 : index
    %c0_31 = arith.constant 0 : index
    %57 = vector.load %arg7[%c0_30, %c0_31] : memref<144x16xf32, #tpu.memory_space<vmem>>, vector<144x16xf32>
    %c0_32 = arith.constant 0 : index
    %c0_33 = arith.constant 0 : index
    %58 = vector.load %arg8[%c0_32, %c0_33] : memref<1x16xf32, #tpu.memory_space<vmem>>, vector<1x16xf32>
    %c0_34 = arith.constant 0 : index
    %c0_35 = arith.constant 0 : index
    %59 = vector.load %arg9[%c0_34, %c0_35] : memref<16x16xf32, #tpu.memory_space<vmem>>, vector<16x16xf32>
    %c0_36 = arith.constant 0 : index
    %c0_37 = arith.constant 0 : index
    %60 = vector.load %arg10[%c0_36, %c0_37] : memref<1x16xf32, #tpu.memory_space<vmem>>, vector<1x16xf32>
    %c0_38 = arith.constant 0 : index
    %c0_39 = arith.constant 0 : index
    %61 = vector.load %arg11[%c0_38, %c0_39] : memref<1x16xf32, #tpu.memory_space<vmem>>, vector<1x16xf32>
    %62 = vector.extract_strided_slice %56 {offsets = [0, 0, 0], sizes = [16, 16, 16], strides = [1, 1, 1]} : vector<18x18x16xf32> to vector<16x16x16xf32>
    %63 = vector.shape_cast %62 : vector<16x16x16xf32> to vector<256x16xf32>
    %64 = vector.extract_strided_slice %56 {offsets = [0, 1, 0], sizes = [16, 16, 16], strides = [1, 1, 1]} : vector<18x18x16xf32> to vector<16x16x16xf32>
    %65 = vector.shape_cast %64 : vector<16x16x16xf32> to vector<256x16xf32>
    %66 = vector.extract_strided_slice %56 {offsets = [0, 2, 0], sizes = [16, 16, 16], strides = [1, 1, 1]} : vector<18x18x16xf32> to vector<16x16x16xf32>
    %67 = vector.shape_cast %66 : vector<16x16x16xf32> to vector<256x16xf32>
    %68 = vector.extract_strided_slice %56 {offsets = [1, 0, 0], sizes = [16, 16, 16], strides = [1, 1, 1]} : vector<18x18x16xf32> to vector<16x16x16xf32>
    %69 = vector.shape_cast %68 : vector<16x16x16xf32> to vector<256x16xf32>
    %70 = vector.extract_strided_slice %56 {offsets = [1, 1, 0], sizes = [16, 16, 16], strides = [1, 1, 1]} : vector<18x18x16xf32> to vector<16x16x16xf32>
    %71 = vector.shape_cast %70 : vector<16x16x16xf32> to vector<256x16xf32>
    %72 = vector.extract_strided_slice %56 {offsets = [1, 2, 0], sizes = [16, 16, 16], strides = [1, 1, 1]} : vector<18x18x16xf32> to vector<16x16x16xf32>
    %73 = vector.shape_cast %72 : vector<16x16x16xf32> to vector<256x16xf32>
    %74 = vector.extract_strided_slice %56 {offsets = [2, 0, 0], sizes = [16, 16, 16], strides = [1, 1, 1]} : vector<18x18x16xf32> to vector<16x16x16xf32>
    %75 = vector.shape_cast %74 : vector<16x16x16xf32> to vector<256x16xf32>
    %76 = vector.extract_strided_slice %56 {offsets = [2, 1, 0], sizes = [16, 16, 16], strides = [1, 1, 1]} : vector<18x18x16xf32> to vector<16x16x16xf32>
    %77 = vector.shape_cast %76 : vector<16x16x16xf32> to vector<256x16xf32>
    %78 = vector.extract_strided_slice %56 {offsets = [2, 2, 0], sizes = [16, 16, 16], strides = [1, 1, 1]} : vector<18x18x16xf32> to vector<16x16x16xf32>
    %79 = vector.shape_cast %78 : vector<16x16x16xf32> to vector<256x16xf32>
    %80 = tpu.concatenate %63, %65, %67, %69, %71, %73, %75, %77, %79 in 1 : vector<256x16xf32>, vector<256x16xf32>, vector<256x16xf32>, vector<256x16xf32>, vector<256x16xf32>, vector<256x16xf32>, vector<256x16xf32>, vector<256x16xf32>, vector<256x16xf32> -> vector<256x144xf32>
    %cst_40 = arith.constant dense<0.000000e+00> : vector<256x16xf32>
    %81 = tpu.matmul %80, %57, %cst_40 {dimension_numbers = #tpu.dot_dimension_numbers<[1], [0], [0], [1], [0, 0, 1, 1], [], []>} : vector<256x144xf32>, vector<144x16xf32>, vector<256x16xf32> -> vector<256x16xf32>
    %82 = vector.broadcast %58 : vector<1x16xf32> to vector<256x16xf32>
    %83 = arith.addf %81, %82 : vector<256x16xf32>
    %cst_41 = arith.constant dense<0.000000e+00> : vector<16xf32>
    %84 = vector.multi_reduction <add>, %83, %cst_41 [0] : vector<256x16xf32> to vector<16xf32>
    %85 = vector.shape_cast %84 : vector<16xf32> to vector<1x16xf32>
    %cst_42 = arith.constant 2.560000e+02 : f32
    %86 = vector.broadcast %cst_42 : f32 to vector<1x16xf32>
    %87 = arith.divf %85, %86 : vector<1x16xf32>
    %cst_43 = arith.constant dense<0.000000e+00> : vector<1x16xf32>
    %88 = tpu.matmul %87, %59, %cst_43 {dimension_numbers = #tpu.dot_dimension_numbers<[1], [0], [0], [1], [0, 0, 1, 1], [], []>} : vector<1x16xf32>, vector<16x16xf32>, vector<1x16xf32> -> vector<1x16xf32>
    %89 = vector.broadcast %88 : vector<1x16xf32> to vector<256x16xf32>
    %90 = arith.subf %83, %89 : vector<256x16xf32>
    %91 = arith.mulf %90, %90 : vector<256x16xf32>
    %cst_44 = arith.constant dense<0.000000e+00> : vector<16xf32>
    %92 = vector.multi_reduction <add>, %91, %cst_44 [0] : vector<256x16xf32> to vector<16xf32>
    %93 = vector.shape_cast %92 : vector<16xf32> to vector<1x16xf32>
    %cst_45 = arith.constant 2.560000e+02 : f32
    %94 = vector.broadcast %cst_45 : f32 to vector<1x16xf32>
    %95 = arith.divf %93, %94 : vector<1x16xf32>
    %cst_46 = arith.constant dense<0.000000e+00> : vector<1x16xf32>
    %96 = tpu.matmul %95, %59, %cst_46 {dimension_numbers = #tpu.dot_dimension_numbers<[1], [0], [0], [1], [0, 0, 1, 1], [], []>} : vector<1x16xf32>, vector<16x16xf32>, vector<1x16xf32> -> vector<1x16xf32>
    %cst_47 = arith.constant 9.99999974E-6 : f32
    %97 = vector.broadcast %cst_47 : f32 to vector<1x16xf32>
    %98 = arith.addf %96, %97 : vector<1x16xf32>
    %99 = math.rsqrt %98 : vector<1x16xf32>
    %100 = arith.mulf %99, %60 : vector<1x16xf32>
    %101 = vector.broadcast %100 : vector<1x16xf32> to vector<256x16xf32>
    %102 = arith.mulf %90, %101 : vector<256x16xf32>
    %103 = vector.broadcast %61 : vector<1x16xf32> to vector<256x16xf32>
    %104 = arith.addf %102, %103 : vector<256x16xf32>
    %cst_48 = arith.constant 0.000000e+00 : f32
    %105 = vector.broadcast %cst_48 : f32 to vector<256x16xf32>
    %106 = arith.maximumf %104, %105 : vector<256x16xf32>
    %107 = vector.shape_cast %106 : vector<256x16xf32> to vector<16x16x16xf32>
    %c0_49 = arith.constant 0 : index
    %c0_50 = arith.constant 0 : index
    %c0_51 = arith.constant 0 : index
    %c0_52 = arith.constant 0 : index
    %108 = vector.load %arg12[%c0_49, %c0_50, %c0_51, %c0_52] : memref<1x16x16x16xf32, #tpu.memory_space<vmem>>, vector<1x16x16x16xf32>
    %109 = vector.shape_cast %108 : vector<1x16x16x16xf32> to vector<16x16x16xf32>
    %110 = vector.shape_cast %107 : vector<16x16x16xf32> to vector<1x16x16x16xf32>
    tpu.vector_store %arg12[%c0_49, %c0_50, %c0_51, %c0_52], %110 {strides = array<i32>} : memref<1x16x16x16xf32, #tpu.memory_space<vmem>>, vector<1x16x16x16xf32>,
    return
  }
  func.func @transform_0(%arg0: i32) -> (i32, i32, i32, i32) {
    %c0_i32 = arith.constant 0 : i32
    %c0_i32_0 = arith.constant 0 : i32
    %c0_i32_1 = arith.constant 0 : i32
    %c0_i32_2 = arith.constant 0 : i32
    return %arg0, %c0_i32, %c0_i32_0, %c0_i32_1 : i32, i32, i32, i32
  }
  func.func @transform_1(%arg0: i32) -> (i32, i32) {
    %c0_i32 = arith.constant 0 : i32
    %c0_i32_0 = arith.constant 0 : i32
    %c0_i32_1 = arith.constant 0 : i32
    return %c0_i32, %c0_i32_0 : i32, i32
  }
  func.func @transform_2(%arg0: i32) -> (i32, i32) {
    %c0_i32 = arith.constant 0 : i32
    %c0_i32_0 = arith.constant 0 : i32
    %c0_i32_1 = arith.constant 0 : i32
    return %c0_i32, %c0_i32_0 : i32, i32
  }
  func.func @transform_3(%arg0: i32) -> (i32, i32) {
    %c0_i32 = arith.constant 0 : i32
    %c0_i32_0 = arith.constant 0 : i32
    %c0_i32_1 = arith.constant 0 : i32
    return %c0_i32, %c0_i32_0 : i32, i32
  }
  func.func @transform_4(%arg0: i32) -> (i32, i32) {
    %c0_i32 = arith.constant 0 : i32
    %c0_i32_0 = arith.constant 0 : i32
    %c0_i32_1 = arith.constant 0 : i32
    return %c0_i32, %c0_i32_0 : i32, i32
  }
  func.func @transform_5(%arg0: i32) -> (i32, i32) {
    %c0_i32 = arith.constant 0 : i32
    %c0_i32_0 = arith.constant 0 : i32
    %c0_i32_1 = arith.constant 0 : i32
    return %c0_i32, %c0_i32_0 : i32, i32
  }
  func.func @transform_6(%arg0: i32) -> (i32, i32) {
    %c0_i32 = arith.constant 0 : i32
    %c0_i32_0 = arith.constant 0 : i32
    %c0_i32_1 = arith.constant 0 : i32
    return %c0_i32, %c0_i32_0 : i32, i32
  }
  func.func @transform_7(%arg0: i32) -> (i32, i32) {
    %c0_i32 = arith.constant 0 : i32
    %c0_i32_0 = arith.constant 0 : i32
    %c0_i32_1 = arith.constant 0 : i32
    return %c0_i32, %c0_i32_0 : i32, i32
  }
  func.func @transform_8(%arg0: i32) -> (i32, i32) {
    %c0_i32 = arith.constant 0 : i32
    %c0_i32_0 = arith.constant 0 : i32
    %c0_i32_1 = arith.constant 0 : i32
    return %c0_i32, %c0_i32_0 : i32, i32
  }
  func.func @transform_9(%arg0: i32) -> (i32, i32) {
    %c0_i32 = arith.constant 0 : i32
    %c0_i32_0 = arith.constant 0 : i32
    %c0_i32_1 = arith.constant 0 : i32
    return %c0_i32, %c0_i32_0 : i32, i32
  }
  func.func @transform_10(%arg0: i32) -> (i32, i32) {
    %c0_i32 = arith.constant 0 : i32
    %c0_i32_0 = arith.constant 0 : i32
    %c0_i32_1 = arith.constant 0 : i32
    return %c0_i32, %c0_i32_0 : i32, i32
  }
  func.func @transform_11(%arg0: i32) -> (i32, i32, i32, i32) {
    %c0_i32 = arith.constant 0 : i32
    %c0_i32_0 = arith.constant 0 : i32
    %c0_i32_1 = arith.constant 0 : i32
    %c0_i32_2 = arith.constant 0 : i32
    return %arg0, %c0_i32, %c0_i32_0, %c0_i32_1 : i32, i32, i32, i32
  }
}

</mosaic_0001>

<llo_original>
// kernel: tpu_custom_call.1
$region0: #{tpu_custom_call.1}
  #allocation0 [shape = 'u32[]', space=smem, size = 0x4, offset = 0x4, fixed_abs, tag = 'smem constant byte address 0x4 - core index']
  #allocation1 [shape = 'u32[144,128]{1,0:T(1,128)}', space=vmem, size = 0x12000, scoped, tag = 'internal scratch']
  #allocation2 [shape = 'f32[18,18,16]{2,1,0:T(8,128)}', space=vmem, size = 0x36000, scoped, tag = 'scratch operand']
  %s0 = inlined_call_operand.vmem [shape: f32[2,18,18,4], index: 0, kind: input, shape index: {}]
  %s1 = inlined_call_operand.vmem [shape: f32[36,16], index: 1, kind: input, shape index: {}]
  %s2 = inlined_call_operand.vmem [shape: f32[1,16], index: 2, kind: input, shape index: {}]
  %s3 = inlined_call_operand.vmem [shape: f32[16,16], index: 3, kind: input, shape index: {}]
  %s4 = inlined_call_operand.vmem [shape: f32[1,16], index: 4, kind: input, shape index: {}]
  %s5 = inlined_call_operand.vmem [shape: f32[1,16], index: 5, kind: input, shape index: {}]
  %s6 = inlined_call_operand.vmem [shape: f32[144,16], index: 6, kind: input, shape index: {}]
  %s7 = inlined_call_operand.vmem [shape: f32[1,16], index: 7, kind: input, shape index: {}]
  %s8 = inlined_call_operand.vmem [shape: f32[16,16], index: 8, kind: input, shape index: {}]
  %s9 = inlined_call_operand.vmem [shape: f32[1,16], index: 9, kind: input, shape index: {}]
  %s10 = inlined_call_operand.vmem [shape: f32[1,16], index: 10, kind: input, shape index: {}]
  %s11 = inlined_call_operand.hbm [shape: f32[2,16,16,16], index: 11, kind: output, shape index: {}]
  %s12 = sld [smem:[#allocation0]]
  $region77: #{tpu_custom_call.1} parent=0
    _
  %s14 = ssub.s32 1, %s12
  %s15 = scalar_select 0, %s14, %s12
  $region1: #{tpu_custom_call.1} parent=0
    #allocation3 [shape = 'u8[262144]{0}', space=vmem, size = 0x40000, scoped, tag = 'output window, operand 0']
    #allocation4 [shape = 's32[2]{0}', space=sflag, size = 0x8, scoped, tag = 'scoped memory for tpu_custom_call.1']
    %16 = vsyncpa [#allocation4], 0
    %s17 = scalar_lea.sflag [#allocation4], 1
    %18 = vsyncpa %s17, 0
    loop: start=0, step=1, limit=4
    $region2: #{tpu_custom_call.1} parent=1 // loop_pre_header
      _
    $region3: #{tpu_custom_call.1} parent=1 // loop_header
      %s20 = sphi 0, %s24
      %p21 = scmp.ge.s32.totalorder %s20, 4
      %s30 = sphi 0, %s32
      %s33 = sphi 0, %s30
      %s34 = sphi 0, %s33
      %s50 = sphi 0, %s34
      %s54 = sphi 0, %s54
      %s56 = sphi 0, %s54
      %s57 = sphi 0, %s56
      %s71 = sphi 0, %s57
      %s75 = sphi 0, %s75
      %s77 = sphi 0, %s75
      %s78 = sphi 0, %s77
      %s92 = sphi 0, %s78
      %s96 = sphi 0, %s96
      %s98 = sphi 0, %s96
      %s99 = sphi 0, %s98
      %s113 = sphi 0, %s99
      %s117 = sphi 0, %s117
      %s119 = sphi 0, %s117
      %s120 = sphi 0, %s119
      %s134 = sphi 0, %s120
      %s138 = sphi 0, %s138
      %s140 = sphi 0, %s138
      %s141 = sphi 0, %s140
      %s155 = sphi 0, %s141
      %s159 = sphi 0, %s159
      %s161 = sphi 0, %s159
      %s162 = sphi 0, %s161
      %s176 = sphi 0, %s162
      %s180 = sphi 0, %s180
      %s182 = sphi 0, %s180
      %s183 = sphi 0, %s182
      %s197 = sphi 0, %s183
      %s201 = sphi 0, %s201
      %s203 = sphi 0, %s201
      %s204 = sphi 0, %s203
      %s218 = sphi 0, %s204
      %s222 = sphi 0, %s222
      %s224 = sphi 0, %s222
      %s225 = sphi 0, %s224
      %s239 = sphi 0, %s225
      %s243 = sphi 0, %s243
      %s245 = sphi 0, %s243
      %s246 = sphi 0, %s245
      %s260 = sphi 0, %s246
      %s266 = sphi 0, %s268
      %s269 = sphi 0, %s266
      %s270 = sphi 0, %s269
      %s286 = sphi 0, %s270
    $region4: #{tpu_custom_call.1} parent=1 // loop_header_branch
      %23 = sbr.rel (%p21) target = $region8
    $region5: #{tpu_custom_call.1} parent=1 // loop_body
      %s25 = ssub.s32 %s20, 1
      %s26 = ssub.s32 %s20, 2
      %s27 = sadd.s32 %s20, 1
      %s28 = ssub.s32 %s20, %s27
      %p29 = scmp.eq.s32.totalorder %s28, 0
      %s31 = sadd.s32 %s30, 1
      %s32 = scalar_select %p29, %s30, %s31
      %p35 = pneg %p29
      %p36 = scmp.eq.s32.totalorder %s20, 1
      %p37 = por %p35, %p36
      %p38 = scmp.ne.s32.totalorder %s30, %s33
      %p39 = scmp.eq.s32.totalorder %s20, 0
      %p40 = por %p38, %p39
      %p41 = scmp.ne.s32.totalorder %s30, %s33
      %p42 = scmp.eq.s32.totalorder %s25, 1
      %p43 = por %p41, %p42
      %p44 = scmp.ne.s32.totalorder %s33, %s34
      %p45 = scmp.eq.s32.totalorder %s25, 0
      %p46 = por %p44, %p45
      %p47 = scmp.ne.s32.totalorder %s33, %s34
      %p48 = scmp.eq.s32.totalorder %s26, 1
      %p49 = por %p47, %p48
      %p51 = scmp.ne.s32.totalorder %s34, %s50
      %p52 = scmp.eq.s32.totalorder %s26, 0
      %p53 = por %p51, %p52
      %s55 = sadd.s32 %s54, 1
      %p58 = scmp.eq.s32.totalorder %s20, 1
      %p59 = scmp.ne.s32.totalorder %s54, %s56
      %p60 = scmp.eq.s32.totalorder %s20, 0
      %p61 = por %p59, %p60
      %p62 = scmp.ne.s32.totalorder %s54, %s56
      %p63 = scmp.eq.s32.totalorder %s25, 1
      %p64 = por %p62, %p63
      %p65 = scmp.ne.s32.totalorder %s56, %s57
      %p66 = scmp.eq.s32.totalorder %s25, 0
      %p67 = por %p65, %p66
      %p68 = scmp.ne.s32.totalorder %s56, %s57
      %p69 = scmp.eq.s32.totalorder %s26, 1
      %p70 = por %p68, %p69
      %p72 = scmp.ne.s32.totalorder %s57, %s71
      %p73 = scmp.eq.s32.totalorder %s26, 0
      %p74 = por %p72, %p73
      %s76 = sadd.s32 %s75, 1
      %p79 = scmp.eq.s32.totalorder %s20, 1
      %p80 = scmp.ne.s32.totalorder %s75, %s77
      %p81 = scmp.eq.s32.totalorder %s20, 0
      %p82 = por %p80, %p81
      %p83 = scmp.ne.s32.totalorder %s75, %s77
      %p84 = scmp.eq.s32.totalorder %s25, 1
      %p85 = por %p83, %p84
      %p86 = scmp.ne.s32.totalorder %s77, %s78
      %p87 = scmp.eq.s32.totalorder %s25, 0
      %p88 = por %p86, %p87
      %p89 = scmp.ne.s32.totalorder %s77, %s78
      %p90 = scmp.eq.s32.totalorder %s26, 1
      %p91 = por %p89, %p90
      %p93 = scmp.ne.s32.totalorder %s78, %s92
      %p94 = scmp.eq.s32.totalorder %s26, 0
      %p95 = por %p93, %p94
      %s97 = sadd.s32 %s96, 1
      %p100 = scmp.eq.s32.totalorder %s20, 1
      %p101 = scmp.ne.s32.totalorder %s96, %s98
      %p102 = scmp.eq.s32.totalorder %s20, 0
      %p103 = por %p101, %p102
      %p104 = scmp.ne.s32.totalorder %s96, %s98
      %p105 = scmp.eq.s32.totalorder %s25, 1
      %p106 = por %p104, %p105
      %p107 = scmp.ne.s32.totalorder %s98, %s99
      %p108 = scmp.eq.s32.totalorder %s25, 0
      %p109 = por %p107, %p108
      %p110 = scmp.ne.s32.totalorder %s98, %s99
      %p111 = scmp.eq.s32.totalorder %s26, 1
      %p112 = por %p110, %p111
      %p114 = scmp.ne.s32.totalorder %s99, %s113
      %p115 = scmp.eq.s32.totalorder %s26, 0
      %p116 = por %p114, %p115
      %s118 = sadd.s32 %s117, 1
      %p121 = scmp.eq.s32.totalorder %s20, 1
      %p122 = scmp.ne.s32.totalorder %s117, %s119
      %p123 = scmp.eq.s32.totalorder %s20, 0
      %p124 = por %p122, %p123
      %p125 = scmp.ne.s32.totalorder %s117, %s119
      %p126 = scmp.eq.s32.totalorder %s25, 1
      %p127 = por %p125, %p126
      %p128 = scmp.ne.s32.totalorder %s119, %s120
      %p129 = scmp.eq.s32.totalorder %s25, 0
      %p130 = por %p128, %p129
      %p131 = scmp.ne.s32.totalorder %s119, %s120
      %p132 = scmp.eq.s32.totalorder %s26, 1
      %p133 = por %p131, %p132
      %p135 = scmp.ne.s32.totalorder %s120, %s134
      %p136 = scmp.eq.s32.totalorder %s26, 0
      %p137 = por %p135, %p136
      %s139 = sadd.s32 %s138, 1
      %p142 = scmp.eq.s32.totalorder %s20, 1
      %p143 = scmp.ne.s32.totalorder %s138, %s140
      %p144 = scmp.eq.s32.totalorder %s20, 0
      %p145 = por %p143, %p144
      %p146 = scmp.ne.s32.totalorder %s138, %s140
      %p147 = scmp.eq.s32.totalorder %s25, 1
      %p148 = por %p146, %p147
      %p149 = scmp.ne.s32.totalorder %s140, %s141
      %p150 = scmp.eq.s32.totalorder %s25, 0
      %p151 = por %p149, %p150
      %p152 = scmp.ne.s32.totalorder %s140, %s141
      %p153 = scmp.eq.s32.totalorder %s26, 1
      %p154 = por %p152, %p153
      %p156 = scmp.ne.s32.totalorder %s141, %s155
      %p157 = scmp.eq.s32.totalorder %s26, 0
      %p158 = por %p156, %p157
      %s160 = sadd.s32 %s159, 1
      %p163 = scmp.eq.s32.totalorder %s20, 1
      %p164 = scmp.ne.s32.totalorder %s159, %s161
      %p165 = scmp.eq.s32.totalorder %s20, 0
      %p166 = por %p164, %p165
      %p167 = scmp.ne.s32.totalorder %s159, %s161
      %p168 = scmp.eq.s32.totalorder %s25, 1
      %p169 = por %p167, %p168
      %p170 = scmp.ne.s32.totalorder %s161, %s162
      %p171 = scmp.eq.s32.totalorder %s25, 0
      %p172 = por %p170, %p171
      %p173 = scmp.ne.s32.totalorder %s161, %s162
      %p174 = scmp.eq.s32.totalorder %s26, 1
      %p175 = por %p173, %p174
      %p177 = scmp.ne.s32.totalorder %s162, %s176
      %p178 = scmp.eq.s32.totalorder %s26, 0
      %p179 = por %p177, %p178
      %s181 = sadd.s32 %s180, 1
      %p184 = scmp.eq.s32.totalorder %s20, 1
      %p185 = scmp.ne.s32.totalorder %s180, %s182
      %p186 = scmp.eq.s32.totalorder %s20, 0
      %p187 = por %p185, %p186
      %p188 = scmp.ne.s32.totalorder %s180, %s182
      %p189 = scmp.eq.s32.totalorder %s25, 1
      %p190 = por %p188, %p189
      %p191 = scmp.ne.s32.totalorder %s182, %s183
      %p192 = scmp.eq.s32.totalorder %s25, 0
      %p193 = por %p191, %p192
      %p194 = scmp.ne.s32.totalorder %s182, %s183
      %p195 = scmp.eq.s32.totalorder %s26, 1
      %p196 = por %p194, %p195
      %p198 = scmp.ne.s32.totalorder %s183, %s197
      %p199 = scmp.eq.s32.totalorder %s26, 0
      %p200 = por %p198, %p199
      %s202 = sadd.s32 %s201, 1
      %p205 = scmp.eq.s32.totalorder %s20, 1
      %p206 = scmp.ne.s32.totalorder %s201, %s203
      %p207 = scmp.eq.s32.totalorder %s20, 0
      %p208 = por %p206, %p207
      %p209 = scmp.ne.s32.totalorder %s201, %s203
      %p210 = scmp.eq.s32.totalorder %s25, 1
      %p211 = por %p209, %p210
      %p212 = scmp.ne.s32.totalorder %s203, %s204
      %p213 = scmp.eq.s32.totalorder %s25, 0
      %p214 = por %p212, %p213
      %p215 = scmp.ne.s32.totalorder %s203, %s204
      %p216 = scmp.eq.s32.totalorder %s26, 1
      %p217 = por %p215, %p216
      %p219 = scmp.ne.s32.totalorder %s204, %s218
      %p220 = scmp.eq.s32.totalorder %s26, 0
      %p221 = por %p219, %p220
      %s223 = sadd.s32 %s222, 1
      %p226 = scmp.eq.s32.totalorder %s20, 1
      %p227 = scmp.ne.s32.totalorder %s222, %s224
      %p228 = scmp.eq.s32.totalorder %s20, 0
      %p229 = por %p227, %p228
      %p230 = scmp.ne.s32.totalorder %s222, %s224
      %p231 = scmp.eq.s32.totalorder %s25, 1
      %p232 = por %p230, %p231
      %p233 = scmp.ne.s32.totalorder %s224, %s225
      %p234 = scmp.eq.s32.totalorder %s25, 0
      %p235 = por %p233, %p234
      %p236 = scmp.ne.s32.totalorder %s224, %s225
      %p237 = scmp.eq.s32.totalorder %s26, 1
      %p238 = por %p236, %p237
      %p240 = scmp.ne.s32.totalorder %s225, %s239
      %p241 = scmp.eq.s32.totalorder %s26, 0
      %p242 = por %p240, %p241
      %s244 = sadd.s32 %s243, 1
      %p247 = scmp.eq.s32.totalorder %s20, 1
      %p248 = scmp.ne.s32.totalorder %s243, %s245
      %p249 = scmp.eq.s32.totalorder %s20, 0
      %p250 = por %p248, %p249
      %p251 = scmp.ne.s32.totalorder %s243, %s245
      %p252 = scmp.eq.s32.totalorder %s25, 1
      %p253 = por %p251, %p252
      %p254 = scmp.ne.s32.totalorder %s245, %s246
      %p255 = scmp.eq.s32.totalorder %s25, 0
      %p256 = por %p254, %p255
      %p257 = scmp.ne.s32.totalorder %s245, %s246
      %p258 = scmp.eq.s32.totalorder %s26, 1
      %p259 = por %p257, %p258
      %p261 = scmp.ne.s32.totalorder %s246, %s260
      %p262 = scmp.eq.s32.totalorder %s26, 0
      %p263 = por %p261, %p262
      %s264 = ssub.s32 %s20, %s27
      %p265 = scmp.eq.s32.totalorder %s264, 0
      %s267 = sadd.s32 %s266, 1
      %s268 = scalar_select %p265, %s266, %s267
      %p271 = pneg %p265
      %p272 = scmp.eq.s32.totalorder %s20, 1
      %p273 = por %p271, %p272
      %p274 = scmp.ne.s32.totalorder %s266, %s269
      %p275 = scmp.eq.s32.totalorder %s20, 0
      %p276 = por %p274, %p275
      %p277 = scmp.ne.s32.totalorder %s266, %s269
      %p278 = scmp.eq.s32.totalorder %s25, 1
      %p279 = por %p277, %p278
      %p280 = scmp.ne.s32.totalorder %s269, %s270
      %p281 = scmp.eq.s32.totalorder %s25, 0
      %p282 = por %p280, %p281
      %p283 = scmp.ne.s32.totalorder %s269, %s270
      %p284 = scmp.eq.s32.totalorder %s26, 1
      %p285 = por %p283, %p284
      %p287 = scmp.ne.s32.totalorder %s270, %s286
      %p288 = scmp.eq.s32.totalorder %s26, 0
      %p289 = por %p287, %p288
      %p290 = scmp.le.s32.totalorder 1, %s20
      %p291 = scmp.lt.s32.totalorder %s20, 3
      %p292 = pnand %p290, %p291
      %p293 = pneg %p292
      // Predicated region
      $region9: #{tpu_custom_call.1} parent=5 // pred_check
        _
      $region10: #{tpu_custom_call.1} parent=5 // pred_check_branch
        %295 = sbr.rel (%p292) target = $region12
      $region11: #{tpu_custom_call.1} parent=5 // pred_region
        %s296 = ssub.s32 %s20, 1
        // Predicated region
        $region13: #{tpu_custom_call.1} parent=11 // pred_check
          %p297 = pneg %p67
        $region14: #{tpu_custom_call.1} parent=11 // pred_check_branch
          %299 = sbr.rel (%p297) target = $region16
        $region15: #{tpu_custom_call.1} parent=11 // pred_region
          _
        $region16: #{tpu_custom_call.1} parent=11 // pred_fallthru
          _
        // Predicated region
        $region17: #{tpu_custom_call.1} parent=11 // pred_check
          %p300 = pneg %p88
        $region18: #{tpu_custom_call.1} parent=11 // pred_check_branch
          %302 = sbr.rel (%p300) target = $region20
        $region19: #{tpu_custom_call.1} parent=11 // pred_region
          _
        $region20: #{tpu_custom_call.1} parent=11 // pred_fallthru
          _
        // Predicated region
        $region21: #{tpu_custom_call.1} parent=11 // pred_check
          %p303 = pneg %p109
        $region22: #{tpu_custom_call.1} parent=11 // pred_check_branch
          %305 = sbr.rel (%p303) target = $region24
        $region23: #{tpu_custom_call.1} parent=11 // pred_region
          _
        $region24: #{tpu_custom_call.1} parent=11 // pred_fallthru
          _
        // Predicated region
        $region25: #{tpu_custom_call.1} parent=11 // pred_check
          %p306 = pneg %p130
        $region26: #{tpu_custom_call.1} parent=11 // pred_check_branch
          %308 = sbr.rel (%p306) target = $region28
        $region27: #{tpu_custom_call.1} parent=11 // pred_region
          _
        $region28: #{tpu_custom_call.1} parent=11 // pred_fallthru
          _
        // Predicated region
        $region29: #{tpu_custom_call.1} parent=11 // pred_check
          %p309 = pneg %p151
        $region30: #{tpu_custom_call.1} parent=11 // pred_check_branch
          %311 = sbr.rel (%p309) target = $region32
        $region31: #{tpu_custom_call.1} parent=11 // pred_region
          _
        $region32: #{tpu_custom_call.1} parent=11 // pred_fallthru
          _
        // Predicated region
        $region33: #{tpu_custom_call.1} parent=11 // pred_check
          %p312 = pneg %p172
        $region34: #{tpu_custom_call.1} parent=11 // pred_check_branch
          %314 = sbr.rel (%p312) target = $region36
        $region35: #{tpu_custom_call.1} parent=11 // pred_region
          _
        $region36: #{tpu_custom_call.1} parent=11 // pred_fallthru
          _
        // Predicated region
        $region37: #{tpu_custom_call.1} parent=11 // pred_check
          %p315 = pneg %p193
        $region38: #{tpu_custom_call.1} parent=11 // pred_check_branch
          %317 = sbr.rel (%p315) target = $region40
        $region39: #{tpu_custom_call.1} parent=11 // pred_region
          _
        $region40: #{tpu_custom_call.1} parent=11 // pred_fallthru
          _
        // Predicated region
        $region41: #{tpu_custom_call.1} parent=11 // pred_check
          %p318 = pneg %p214
        $region42: #{tpu_custom_call.1} parent=11 // pred_check_branch
          %320 = sbr.rel (%p318) target = $region44
        $region43: #{tpu_custom_call.1} parent=11 // pred_region
          _
        $region44: #{tpu_custom_call.1} parent=11 // pred_fallthru
          _
        // Predicated region
        $region45: #{tpu_custom_call.1} parent=11 // pred_check
          %p321 = pneg %p235
        $region46: #{tpu_custom_call.1} parent=11 // pred_check_branch
          %323 = sbr.rel (%p321) target = $region48
        $region47: #{tpu_custom_call.1} parent=11 // pred_region
          _
        $region48: #{tpu_custom_call.1} parent=11 // pred_fallthru
          _
        // Predicated region
        $region49: #{tpu_custom_call.1} parent=11 // pred_check
          %p324 = pneg %p256
        $region50: #{tpu_custom_call.1} parent=11 // pred_check_branch
          %326 = sbr.rel (%p324) target = $region52
        $region51: #{tpu_custom_call.1} parent=11 // pred_region
          _
        $region52: #{tpu_custom_call.1} parent=11 // pred_fallthru
          _
      $region12: #{tpu_custom_call.1} parent=5 // pred_fallthru
        _
      %p327 = scmp.lt.s32.totalorder %s20, 2
      // Predicated region
      $region53: #{tpu_custom_call.1} parent=5 // pred_check
        %p328 = pneg %p327
      $region54: #{tpu_custom_call.1} parent=5 // pred_check_branch
        %330 = sbr.rel (%p328) target = $region56
      $region55: #{tpu_custom_call.1} parent=5 // pred_region
        // Predicated region
        $region57: #{tpu_custom_call.1} parent=55 // pred_check
          %p331 = pneg %p40
        $region58: #{tpu_custom_call.1} parent=55 // pred_check_branch
          %333 = sbr.rel (%p331) target = $region60
        $region59: #{tpu_custom_call.1} parent=55 // pred_region
          %p334 = scmp.lt.s32.totalorder %s20, 1
          %s335 = scalar_select %p334, %s20, 1
          %s336 = smul.addr %s335, 54
          %s337 = smul.addr %s336, 8
          %s338 = scalar_lea.vmem %s0, %s337
        $region60: #{tpu_custom_call.1} parent=55 // pred_fallthru
          _
      $region56: #{tpu_custom_call.1} parent=5 // pred_fallthru
        _
      %p339 = scmp.le.s32.totalorder 1, %s20
      %p340 = scmp.lt.s32.totalorder %s20, 3
      %p341 = pnand %p339, %p340
      %p342 = pneg %p341
      // Predicated region
      $region61: #{tpu_custom_call.1} parent=5 // pred_check
        _
      $region62: #{tpu_custom_call.1} parent=5 // pred_check_branch
        %344 = sbr.rel (%p341) target = $region64
      $region63: #{tpu_custom_call.1} parent=5 // pred_region
        %s345 = ssub.s32 %s20, 1
        %p346 = scmp.lt.s32.totalorder %s25, 1
        %s347 = scalar_select %p346, %s25, 1
        %s348 = smul.addr %s347, 54
        %s349 = smul.addr %s348, 8
        %s350 = scalar_lea.vmem %s0, %s349
        %p351 = pneg %p46
        %p352 = pneg %p43
        %p353 = pneg %p67
        %p354 = pneg %p64
        %p355 = pneg %p88
        %p356 = pneg %p85
        %p357 = pneg %p109
        %p358 = pneg %p106
        %p359 = pneg %p130
        %p360 = pneg %p127
        %p361 = pneg %p151
        %p362 = pneg %p148
        %p363 = pneg %p172
        %p364 = pneg %p169
        %p365 = pneg %p193
        %p366 = pneg %p190
        %p367 = pneg %p214
        %p368 = pneg %p211
        %p369 = pneg %p235
        %p370 = pneg %p232
        %p371 = pneg %p256
        %p372 = pneg %p253
        %p373 = pneg %p282
        %p374 = pneg %p279
        %s375 = sand.u32 %s269, 1
        %s376 = scalar_lea.sflag [#allocation4], %s375
        %s377 = sand.u32 %s269, 1
        %s378 = smul.addr %s377, 256
        %s379 = scalar_lea.vmem [#allocation3], %s378
        %p380 = scmp.lt.s32.totalorder %s25, 1
        %s381 = scalar_select %p380, %s25, 1
        %s382 = smul.addr %s381, 54
        %s383 = smul.addr %s382, 8
        %s384 = scalar_lea.vmem %s0, %s383
        %v385 = vld [vmem:[%s384] sm:$0xff]
        %v386 = vld [vmem:[%s384 + $0x8] sm:$0xff]
        %v387 = vld [vmem:[%s384 + $0x10] sm:$0x3]
        %v388 = vld [vmem:[%s384 + $0x18] sm:$0xff]
        %v389 = vld [vmem:[%s384 + $0x20] sm:$0xff]
        %v390 = vld [vmem:[%s384 + $0x28] sm:$0x3]
        %v391 = vld [vmem:[%s384 + $0x30] sm:$0xff]
        %v392 = vld [vmem:[%s384 + $0x38] sm:$0xff]
        %v393 = vld [vmem:[%s384 + $0x40] sm:$0x3]
        %v394 = vld [vmem:[%s384 + $0x48] sm:$0xff]
        %v395 = vld [vmem:[%s384 + $0x50] sm:$0xff]
        %v396 = vld [vmem:[%s384 + $0x58] sm:$0x3]
        %v397 = vld [vmem:[%s384 + $0x60] sm:$0xff]
        %v398 = vld [vmem:[%s384 + $0x68] sm:$0xff]
        %v399 = vld [vmem:[%s384 + $0x70] sm:$0x3]
        %v400 = vld [vmem:[%s384 + $0x78] sm:$0xff]
        %v401 = vld [vmem:[%s384 + $0x80] sm:$0xff]
        %v402 = vld [vmem:[%s384 + $0x88] sm:$0x3]
        %v403 = vld [vmem:[%s384 + $0x90] sm:$0xff]
        %v404 = vld [vmem:[%s384 + $0x98] sm:$0xff]
        %v405 = vld [vmem:[%s384 + $0xa0] sm:$0x3]
        %v406 = vld [vmem:[%s384 + $0xa8] sm:$0xff]
        %v407 = vld [vmem:[%s384 + $0xb0] sm:$0xff]
        %v408 = vld [vmem:[%s384 + $0xb8] sm:$0x3]
        %v409 = vld [vmem:[%s384 + $0xc0] sm:$0xff]
        %v410 = vld [vmem:[%s384 + $0xc8] sm:$0xff]
        %v411 = vld [vmem:[%s384 + $0xd0] sm:$0x3]
        %v412 = vld [vmem:[%s384 + $0xd8] sm:$0xff]
        %v413 = vld [vmem:[%s384 + $0xe0] sm:$0xff]
        %v414 = vld [vmem:[%s384 + $0xe8] sm:$0x3]
        %v415 = vld [vmem:[%s384 + $0xf0] sm:$0xff]
        %v416 = vld [vmem:[%s384 + $0xf8] sm:$0xff]
        %v417 = vld [vmem:[%s384 + $0x100] sm:$0x3]
        %v418 = vld [vmem:[%s384 + $0x108] sm:$0xff]
        %v419 = vld [vmem:[%s384 + $0x110] sm:$0xff]
        %v420 = vld [vmem:[%s384 + $0x118] sm:$0x3]
        %v421 = vld [vmem:[%s384 + $0x120] sm:$0xff]
        %v422 = vld [vmem:[%s384 + $0x128] sm:$0xff]
        %v423 = vld [vmem:[%s384 + $0x130] sm:$0x3]
        %v424 = vld [vmem:[%s384 + $0x138] sm:$0xff]
        %v425 = vld [vmem:[%s384 + $0x140] sm:$0xff]
        %v426 = vld [vmem:[%s384 + $0x148] sm:$0x3]
        %v427 = vld [vmem:[%s384 + $0x150] sm:$0xff]
        %v428 = vld [vmem:[%s384 + $0x158] sm:$0xff]
        %v429 = vld [vmem:[%s384 + $0x160] sm:$0x3]
        %v430 = vld [vmem:[%s384 + $0x168] sm:$0xff]
        %v431 = vld [vmem:[%s384 + $0x170] sm:$0xff]
        %v432 = vld [vmem:[%s384 + $0x178] sm:$0x3]
        %v433 = vld [vmem:[%s384 + $0x180] sm:$0xff]
        %v434 = vld [vmem:[%s384 + $0x188] sm:$0xff]
        %v435 = vld [vmem:[%s384 + $0x190] sm:$0x3]
        %v436 = vld [vmem:[%s384 + $0x198] sm:$0xff]
        %v437 = vld [vmem:[%s384 + $0x1a0] sm:$0xff]
        %v438 = vld [vmem:[%s384 + $0x1a8] sm:$0x3]
        %v439 = vld [vmem:[%s1] sm:$0xff]
        %v440 = vld [vmem:[%s1 + $0x8] sm:$0xff]
        %v441 = vld [vmem:[%s1 + $0x10] sm:$0xff]
        %v442 = vld [vmem:[%s1 + $0x18] sm:$0xff]
        %v443 = vld [vmem:[%s1 + $0x20] sm:$0xf]
        %v444 = vld [vmem:[%s2] sm:$0x1]
        %v445 = vld [vmem:[%s3] sm:$0xff]
        %v446 = vld [vmem:[%s3 + $0x8] sm:$0xff]
        %v447 = vld [vmem:[%s4] sm:$0x1]
        %v448 = vld [vmem:[%s5] sm:$0x1]
        %vm497 = vcmask 1046528
        %v498 = vrot.slane %v385, 1
        %v499 = vrot.slane %v386, 1
        %v500 = vsel %vm497, %v498, %v499
        %v501 = vrot.slane %v387, 1
        %v502 = vsel %vm497, %v499, %v501
        %v503 = vrot.slane %v388, 1
        %v504 = vrot.slane %v389, 1
        %v505 = vsel %vm497, %v503, %v504
        %v506 = vrot.slane %v390, 1
        %v507 = vsel %vm497, %v504, %v506
        %v508 = vrot.slane %v391, 1
        %v509 = vrot.slane %v392, 1
        %v510 = vsel %vm497, %v508, %v509
        %v511 = vrot.slane %v393, 1
        %v512 = vsel %vm497, %v509, %v511
        %v513 = vrot.slane %v394, 1
        %v514 = vrot.slane %v395, 1
        %v515 = vsel %vm497, %v513, %v514
        %v516 = vrot.slane %v396, 1
        %v517 = vsel %vm497, %v514, %v516
        %v518 = vrot.slane %v397, 1
        %v519 = vrot.slane %v398, 1
        %v520 = vsel %vm497, %v518, %v519
        %v521 = vrot.slane %v399, 1
        %v522 = vsel %vm497, %v519, %v521
        %v523 = vrot.slane %v400, 1
        %v524 = vrot.slane %v401, 1
        %v525 = vsel %vm497, %v523, %v524
        %v526 = vrot.slane %v402, 1
        %v527 = vsel %vm497, %v524, %v526
        %v528 = vrot.slane %v403, 1
        %v529 = vrot.slane %v404, 1
        %v530 = vsel %vm497, %v528, %v529
        %v531 = vrot.slane %v405, 1
        %v532 = vsel %vm497, %v529, %v531
        %v533 = vrot.slane %v406, 1
        %v534 = vrot.slane %v407, 1
        %v535 = vsel %vm497, %v533, %v534
        %v536 = vrot.slane %v408, 1
        %v537 = vsel %vm497, %v534, %v536
        %v538 = vrot.slane %v409, 1
        %v539 = vrot.slane %v410, 1
        %v540 = vsel %vm497, %v538, %v539
        %v541 = vrot.slane %v411, 1
        %v542 = vsel %vm497, %v539, %v541
        %v543 = vrot.slane %v412, 1
        %v544 = vrot.slane %v413, 1
        %v545 = vsel %vm497, %v543, %v544
        %v546 = vrot.slane %v414, 1
        %v547 = vsel %vm497, %v544, %v546
        %v548 = vrot.slane %v415, 1
        %v549 = vrot.slane %v416, 1
        %v550 = vsel %vm497, %v548, %v549
        %v551 = vrot.slane %v417, 1
        %v552 = vsel %vm497, %v549, %v551
        %v553 = vrot.slane %v418, 1
        %v554 = vrot.slane %v419, 1
        %v555 = vsel %vm497, %v553, %v554
        %v556 = vrot.slane %v420, 1
        %v557 = vsel %vm497, %v554, %v556
        %v558 = vrot.slane %v421, 1
        %v559 = vrot.slane %v422, 1
        %v560 = vsel %vm497, %v558, %v559
        %v561 = vrot.slane %v423, 1
        %v562 = vsel %vm497, %v559, %v561
        %v563 = vrot.slane %v424, 1
        %v564 = vrot.slane %v425, 1
        %v565 = vsel %vm497, %v563, %v564
        %v566 = vrot.slane %v426, 1
        %v567 = vsel %vm497, %v564, %v566
        %v568 = vrot.slane %v427, 1
        %v569 = vrot.slane %v428, 1
        %v570 = vsel %vm497, %v568, %v569
        %v571 = vrot.slane %v429, 1
        %v572 = vsel %vm497, %v569, %v571
        %v573 = vrot.slane %v430, 1
        %v574 = vrot.slane %v431, 1
        %v575 = vsel %vm497, %v573, %v574
        %v576 = vrot.slane %v432, 1
        %v577 = vsel %vm497, %v574, %v576
        %vm578 = vcmask 1045504
        %v579 = vrot.slane %v385, 2
        %v580 = vrot.slane %v386, 2
        %v581 = vsel %vm578, %v579, %v580
        %v582 = vrot.slane %v387, 2
        %v583 = vsel %vm578, %v580, %v582
        %v584 = vrot.slane %v388, 2
        %v585 = vrot.slane %v389, 2
        %v586 = vsel %vm578, %v584, %v585
        %v587 = vrot.slane %v390, 2
        %v588 = vsel %vm578, %v585, %v587
        %v589 = vrot.slane %v391, 2
        %v590 = vrot.slane %v392, 2
        %v591 = vsel %vm578, %v589, %v590
        %v592 = vrot.slane %v393, 2
        %v593 = vsel %vm578, %v590, %v592
        %v594 = vrot.slane %v394, 2
        %v595 = vrot.slane %v395, 2
        %v596 = vsel %vm578, %v594, %v595
        %v597 = vrot.slane %v396, 2
        %v598 = vsel %vm578, %v595, %v597
        %v599 = vrot.slane %v397, 2
        %v600 = vrot.slane %v398, 2
        %v601 = vsel %vm578, %v599, %v600
        %v602 = vrot.slane %v399, 2
        %v603 = vsel %vm578, %v600, %v602
        %v604 = vrot.slane %v400, 2
        %v605 = vrot.slane %v401, 2
        %v606 = vsel %vm578, %v604, %v605
        %v607 = vrot.slane %v402, 2
        %v608 = vsel %vm578, %v605, %v607
        %v609 = vrot.slane %v403, 2
        %v610 = vrot.slane %v404, 2
        %v611 = vsel %vm578, %v609, %v610
        %v612 = vrot.slane %v405, 2
        %v613 = vsel %vm578, %v610, %v612
        %v614 = vrot.slane %v406, 2
        %v615 = vrot.slane %v407, 2
        %v616 = vsel %vm578, %v614, %v615
        %v617 = vrot.slane %v408, 2
        %v618 = vsel %vm578, %v615, %v617
        %v619 = vrot.slane %v409, 2
        %v620 = vrot.slane %v410, 2
        %v621 = vsel %vm578, %v619, %v620
        %v622 = vrot.slane %v411, 2
        %v623 = vsel %vm578, %v620, %v622
        %v624 = vrot.slane %v412, 2
        %v625 = vrot.slane %v413, 2
        %v626 = vsel %vm578, %v624, %v625
        %v627 = vrot.slane %v414, 2
        %v628 = vsel %vm578, %v625, %v627
        %v629 = vrot.slane %v415, 2
        %v630 = vrot.slane %v416, 2
        %v631 = vsel %vm578, %v629, %v630
        %v632 = vrot.slane %v417, 2
        %v633 = vsel %vm578, %v630, %v632
        %v634 = vrot.slane %v418, 2
        %v635 = vrot.slane %v419, 2
        %v636 = vsel %vm578, %v634, %v635
        %v637 = vrot.slane %v420, 2
        %v638 = vsel %vm578, %v635, %v637
        %v639 = vrot.slane %v421, 2
        %v640 = vrot.slane %v422, 2
        %v641 = vsel %vm578, %v639, %v640
        %v642 = vrot.slane %v423, 2
        %v643 = vsel %vm578, %v640, %v642
        %v644 = vrot.slane %v424, 2
        %v645 = vrot.slane %v425, 2
        %v646 = vsel %vm578, %v644, %v645
        %v647 = vrot.slane %v426, 2
        %v648 = vsel %vm578, %v645, %v647
        %v649 = vrot.slane %v427, 2
        %v650 = vrot.slane %v428, 2
        %v651 = vsel %vm578, %v649, %v650
        %v652 = vrot.slane %v429, 2
        %v653 = vsel %vm578, %v650, %v652
        %v654 = vrot.slane %v430, 2
        %v655 = vrot.slane %v431, 2
        %v656 = vsel %vm578, %v654, %v655
        %v657 = vrot.slane %v432, 2
        %v658 = vsel %vm578, %v655, %v657
        %v662 = vrot.slane %v433, 1
        %v663 = vrot.slane %v434, 1
        %v664 = vsel %vm497, %v662, %v663
        %v665 = vrot.slane %v435, 1
        %v666 = vsel %vm497, %v663, %v665
        %v667 = vrot.slane %v433, 2
        %v668 = vrot.slane %v434, 2
        %v669 = vsel %vm578, %v667, %v668
        %v670 = vrot.slane %v435, 2
        %v671 = vsel %vm578, %v668, %v670
        %v675 = vrot.slane %v436, 1
        %v676 = vrot.slane %v437, 1
        %v677 = vsel %vm497, %v675, %v676
        %v678 = vrot.slane %v438, 1
        %v679 = vsel %vm497, %v676, %v678
        %v680 = vrot.slane %v436, 2
        %v681 = vrot.slane %v437, 2
        %v682 = vsel %vm578, %v680, %v681
        %v683 = vrot.slane %v438, 2
        %v684 = vsel %vm578, %v681, %v683
        %685 = vrot.lane.b32.xlu0 %v500, 4
        %v686 = vpop.permute.xlu0 %685
        %687 = vrot.lane.b32.xlu0 %v502, 4
        %v688 = vpop.permute.xlu0 %687
        %689 = vrot.lane.b32.xlu0 %v505, 4
        %v690 = vpop.permute.xlu0 %689
        %691 = vrot.lane.b32.xlu0 %v507, 4
        %v692 = vpop.permute.xlu0 %691
        %693 = vrot.lane.b32.xlu0 %v510, 4
        %v694 = vpop.permute.xlu0 %693
        %695 = vrot.lane.b32.xlu0 %v512, 4
        %v696 = vpop.permute.xlu0 %695
        %697 = vrot.lane.b32.xlu0 %v515, 4
        %v698 = vpop.permute.xlu0 %697
        %699 = vrot.lane.b32.xlu0 %v517, 4
        %v700 = vpop.permute.xlu0 %699
        %701 = vrot.lane.b32.xlu0 %v520, 4
        %v702 = vpop.permute.xlu0 %701
        %703 = vrot.lane.b32.xlu0 %v522, 4
        %v704 = vpop.permute.xlu0 %703
        %705 = vrot.lane.b32.xlu0 %v525, 4
        %v706 = vpop.permute.xlu0 %705
        %707 = vrot.lane.b32.xlu0 %v527, 4
        %v708 = vpop.permute.xlu0 %707
        %709 = vrot.lane.b32.xlu0 %v530, 4
        %v710 = vpop.permute.xlu0 %709
        %711 = vrot.lane.b32.xlu0 %v532, 4
        %v712 = vpop.permute.xlu0 %711
        %713 = vrot.lane.b32.xlu0 %v535, 4
        %v714 = vpop.permute.xlu0 %713
        %715 = vrot.lane.b32.xlu0 %v537, 4
        %v716 = vpop.permute.xlu0 %715
        %717 = vrot.lane.b32.xlu0 %v540, 4
        %v718 = vpop.permute.xlu0 %717
        %719 = vrot.lane.b32.xlu0 %v542, 4
        %v720 = vpop.permute.xlu0 %719
        %721 = vrot.lane.b32.xlu0 %v545, 4
        %v722 = vpop.permute.xlu0 %721
        %723 = vrot.lane.b32.xlu0 %v547, 4
        %v724 = vpop.permute.xlu0 %723
        %725 = vrot.lane.b32.xlu0 %v550, 4
        %v726 = vpop.permute.xlu0 %725
        %727 = vrot.lane.b32.xlu0 %v552, 4
        %v728 = vpop.permute.xlu0 %727
        %729 = vrot.lane.b32.xlu0 %v555, 4
        %v730 = vpop.permute.xlu0 %729
        %731 = vrot.lane.b32.xlu0 %v557, 4
        %v732 = vpop.permute.xlu0 %731
        %733 = vrot.lane.b32.xlu0 %v560, 4
        %v734 = vpop.permute.xlu0 %733
        %735 = vrot.lane.b32.xlu0 %v562, 4
        %v736 = vpop.permute.xlu0 %735
        %737 = vrot.lane.b32.xlu0 %v565, 4
        %v738 = vpop.permute.xlu0 %737
        %739 = vrot.lane.b32.xlu0 %v567, 4
        %v740 = vpop.permute.xlu0 %739
        %741 = vrot.lane.b32.xlu0 %v570, 4
        %v742 = vpop.permute.xlu0 %741
        %743 = vrot.lane.b32.xlu0 %v572, 4
        %v744 = vpop.permute.xlu0 %743
        %745 = vrot.lane.b32.xlu0 %v575, 4
        %v746 = vpop.permute.xlu0 %745
        %747 = vrot.lane.b32.xlu0 %v577, 4
        %v748 = vpop.permute.xlu0 %747
        %781 = vrot.lane.b32.xlu0 %v581, 8
        %v782 = vpop.permute.xlu0 %781
        %783 = vrot.lane.b32.xlu0 %v583, 8
        %v784 = vpop.permute.xlu0 %783
        %785 = vrot.lane.b32.xlu0 %v586, 8
        %v786 = vpop.permute.xlu0 %785
        %787 = vrot.lane.b32.xlu0 %v588, 8
        %v788 = vpop.permute.xlu0 %787
        %789 = vrot.lane.b32.xlu0 %v591, 8
        %v790 = vpop.permute.xlu0 %789
        %791 = vrot.lane.b32.xlu0 %v593, 8
        %v792 = vpop.permute.xlu0 %791
        %793 = vrot.lane.b32.xlu0 %v596, 8
        %v794 = vpop.permute.xlu0 %793
        %795 = vrot.lane.b32.xlu0 %v598, 8
        %v796 = vpop.permute.xlu0 %795
        %797 = vrot.lane.b32.xlu0 %v601, 8
        %v798 = vpop.permute.xlu0 %797
        %799 = vrot.lane.b32.xlu0 %v603, 8
        %v800 = vpop.permute.xlu0 %799
        %801 = vrot.lane.b32.xlu0 %v606, 8
        %v802 = vpop.permute.xlu0 %801
        %803 = vrot.lane.b32.xlu0 %v608, 8
        %v804 = vpop.permute.xlu0 %803
        %805 = vrot.lane.b32.xlu0 %v611, 8
        %v806 = vpop.permute.xlu0 %805
        %807 = vrot.lane.b32.xlu0 %v613, 8
        %v808 = vpop.permute.xlu0 %807
        %809 = vrot.lane.b32.xlu0 %v616, 8
        %v810 = vpop.permute.xlu0 %809
        %811 = vrot.lane.b32.xlu0 %v618, 8
        %v812 = vpop.permute.xlu0 %811
        %813 = vrot.lane.b32.xlu0 %v621, 8
        %v814 = vpop.permute.xlu0 %813
        %815 = vrot.lane.b32.xlu0 %v623, 8
        %v816 = vpop.permute.xlu0 %815
        %817 = vrot.lane.b32.xlu0 %v626, 8
        %v818 = vpop.permute.xlu0 %817
        %819 = vrot.lane.b32.xlu0 %v628, 8
        %v820 = vpop.permute.xlu0 %819
        %821 = vrot.lane.b32.xlu0 %v631, 8
        %v822 = vpop.permute.xlu0 %821
        %823 = vrot.lane.b32.xlu0 %v633, 8
        %v824 = vpop.permute.xlu0 %823
        %825 = vrot.lane.b32.xlu0 %v636, 8
        %v826 = vpop.permute.xlu0 %825
        %827 = vrot.lane.b32.xlu0 %v638, 8
        %v828 = vpop.permute.xlu0 %827
        %829 = vrot.lane.b32.xlu0 %v641, 8
        %v830 = vpop.permute.xlu0 %829
        %831 = vrot.lane.b32.xlu0 %v643, 8
        %v832 = vpop.permute.xlu0 %831
        %833 = vrot.lane.b32.xlu0 %v646, 8
        %v834 = vpop.permute.xlu0 %833
        %835 = vrot.lane.b32.xlu0 %v648, 8
        %v836 = vpop.permute.xlu0 %835
        %837 = vrot.lane.b32.xlu0 %v651, 8
        %v838 = vpop.permute.xlu0 %837
        %839 = vrot.lane.b32.xlu0 %v653, 8
        %v840 = vpop.permute.xlu0 %839
        %841 = vrot.lane.b32.xlu0 %v656, 8
        %v842 = vpop.permute.xlu0 %841
        %843 = vrot.lane.b32.xlu0 %v658, 8
        %v844 = vpop.permute.xlu0 %843
        %877 = vrot.lane.b32.xlu0 %v388, 12
        %v878 = vpop.permute.xlu0 %877
        %879 = vrot.lane.b32.xlu0 %v389, 12
        %v880 = vpop.permute.xlu0 %879
        %881 = vrot.lane.b32.xlu0 %v391, 12
        %v882 = vpop.permute.xlu0 %881
        %883 = vrot.lane.b32.xlu0 %v392, 12
        %v884 = vpop.permute.xlu0 %883
        %885 = vrot.lane.b32.xlu0 %v394, 12
        %v886 = vpop.permute.xlu0 %885
        %887 = vrot.lane.b32.xlu0 %v395, 12
        %v888 = vpop.permute.xlu0 %887
        %889 = vrot.lane.b32.xlu0 %v397, 12
        %v890 = vpop.permute.xlu0 %889
        %891 = vrot.lane.b32.xlu0 %v398, 12
        %v892 = vpop.permute.xlu0 %891
        %893 = vrot.lane.b32.xlu0 %v400, 12
        %v894 = vpop.permute.xlu0 %893
        %895 = vrot.lane.b32.xlu0 %v401, 12
        %v896 = vpop.permute.xlu0 %895
        %897 = vrot.lane.b32.xlu0 %v403, 12
        %v898 = vpop.permute.xlu0 %897
        %899 = vrot.lane.b32.xlu0 %v404, 12
        %v900 = vpop.permute.xlu0 %899
        %901 = vrot.lane.b32.xlu0 %v406, 12
        %v902 = vpop.permute.xlu0 %901
        %903 = vrot.lane.b32.xlu0 %v407, 12
        %v904 = vpop.permute.xlu0 %903
        %905 = vrot.lane.b32.xlu0 %v409, 12
        %v906 = vpop.permute.xlu0 %905
        %907 = vrot.lane.b32.xlu0 %v410, 12
        %v908 = vpop.permute.xlu0 %907
        %909 = vrot.lane.b32.xlu0 %v412, 12
        %v910 = vpop.permute.xlu0 %909
        %911 = vrot.lane.b32.xlu0 %v413, 12
        %v912 = vpop.permute.xlu0 %911
        %913 = vrot.lane.b32.xlu0 %v415, 12
        %v914 = vpop.permute.xlu0 %913
        %915 = vrot.lane.b32.xlu0 %v416, 12
        %v916 = vpop.permute.xlu0 %915
        %917 = vrot.lane.b32.xlu0 %v418, 12
        %v918 = vpop.permute.xlu0 %917
        %919 = vrot.lane.b32.xlu0 %v419, 12
        %v920 = vpop.permute.xlu0 %919
        %921 = vrot.lane.b32.xlu0 %v421, 12
        %v922 = vpop.permute.xlu0 %921
        %923 = vrot.lane.b32.xlu0 %v422, 12
        %v924 = vpop.permute.xlu0 %923
        %925 = vrot.lane.b32.xlu0 %v424, 12
        %v926 = vpop.permute.xlu0 %925
        %927 = vrot.lane.b32.xlu0 %v425, 12
        %v928 = vpop.permute.xlu0 %927
        %929 = vrot.lane.b32.xlu0 %v427, 12
        %v930 = vpop.permute.xlu0 %929
        %931 = vrot.lane.b32.xlu0 %v428, 12
        %v932 = vpop.permute.xlu0 %931
        %933 = vrot.lane.b32.xlu0 %v430, 12
        %v934 = vpop.permute.xlu0 %933
        %935 = vrot.lane.b32.xlu0 %v431, 12
        %v936 = vpop.permute.xlu0 %935
        %937 = vrot.lane.b32.xlu0 %v433, 12
        %v938 = vpop.permute.xlu0 %937
        %939 = vrot.lane.b32.xlu0 %v434, 12
        %v940 = vpop.permute.xlu0 %939
        %973 = vrot.lane.b32.xlu0 %v505, 16
        %v974 = vpop.permute.xlu0 %973
        %975 = vrot.lane.b32.xlu0 %v507, 16
        %v976 = vpop.permute.xlu0 %975
        %977 = vrot.lane.b32.xlu0 %v510, 16
        %v978 = vpop.permute.xlu0 %977
        %979 = vrot.lane.b32.xlu0 %v512, 16
        %v980 = vpop.permute.xlu0 %979
        %981 = vrot.lane.b32.xlu0 %v515, 16
        %v982 = vpop.permute.xlu0 %981
        %983 = vrot.lane.b32.xlu0 %v517, 16
        %v984 = vpop.permute.xlu0 %983
        %985 = vrot.lane.b32.xlu0 %v520, 16
        %v986 = vpop.permute.xlu0 %985
        %987 = vrot.lane.b32.xlu0 %v522, 16
        %v988 = vpop.permute.xlu0 %987
        %989 = vrot.lane.b32.xlu0 %v525, 16
        %v990 = vpop.permute.xlu0 %989
        %991 = vrot.lane.b32.xlu0 %v527, 16
        %v992 = vpop.permute.xlu0 %991
        %993 = vrot.lane.b32.xlu0 %v530, 16
        %v994 = vpop.permute.xlu0 %993
        %995 = vrot.lane.b32.xlu0 %v532, 16
        %v996 = vpop.permute.xlu0 %995
        %997 = vrot.lane.b32.xlu0 %v535, 16
        %v998 = vpop.permute.xlu0 %997
        %999 = vrot.lane.b32.xlu0 %v537, 16
        %v1000 = vpop.permute.xlu0 %999
        %1001 = vrot.lane.b32.xlu0 %v540, 16
        %v1002 = vpop.permute.xlu0 %1001
        %1003 = vrot.lane.b32.xlu0 %v542, 16
        %v1004 = vpop.permute.xlu0 %1003
        %1005 = vrot.lane.b32.xlu0 %v545, 16
        %v1006 = vpop.permute.xlu0 %1005
        %1007 = vrot.lane.b32.xlu0 %v547, 16
        %v1008 = vpop.permute.xlu0 %1007
        %1009 = vrot.lane.b32.xlu0 %v550, 16
        %v1010 = vpop.permute.xlu0 %1009
        %1011 = vrot.lane.b32.xlu0 %v552, 16
        %v1012 = vpop.permute.xlu0 %1011
        %1013 = vrot.lane.b32.xlu0 %v555, 16
        %v1014 = vpop.permute.xlu0 %1013
        %1015 = vrot.lane.b32.xlu0 %v557, 16
        %v1016 = vpop.permute.xlu0 %1015
        %1017 = vrot.lane.b32.xlu0 %v560, 16
        %v1018 = vpop.permute.xlu0 %1017
        %1019 = vrot.lane.b32.xlu0 %v562, 16
        %v1020 = vpop.permute.xlu0 %1019
        %1021 = vrot.lane.b32.xlu0 %v565, 16
        %v1022 = vpop.permute.xlu0 %1021
        %1023 = vrot.lane.b32.xlu0 %v567, 16
        %v1024 = vpop.permute.xlu0 %1023
        %1025 = vrot.lane.b32.xlu0 %v570, 16
        %v1026 = vpop.permute.xlu0 %1025
        %1027 = vrot.lane.b32.xlu0 %v572, 16
        %v1028 = vpop.permute.xlu0 %1027
        %1029 = vrot.lane.b32.xlu0 %v575, 16
        %v1030 = vpop.permute.xlu0 %1029
        %1031 = vrot.lane.b32.xlu0 %v577, 16
        %v1032 = vpop.permute.xlu0 %1031
        %1033 = vrot.lane.b32.xlu0 %v664, 16
        %v1034 = vpop.permute.xlu0 %1033
        %1035 = vrot.lane.b32.xlu0 %v666, 16
        %v1036 = vpop.permute.xlu0 %1035
        %1069 = vrot.lane.b32.xlu0 %v586, 20
        %v1070 = vpop.permute.xlu0 %1069
        %1071 = vrot.lane.b32.xlu0 %v588, 20
        %v1072 = vpop.permute.xlu0 %1071
        %1073 = vrot.lane.b32.xlu0 %v591, 20
        %v1074 = vpop.permute.xlu0 %1073
        %1075 = vrot.lane.b32.xlu0 %v593, 20
        %v1076 = vpop.permute.xlu0 %1075
        %1077 = vrot.lane.b32.xlu0 %v596, 20
        %v1078 = vpop.permute.xlu0 %1077
        %1079 = vrot.lane.b32.xlu0 %v598, 20
        %v1080 = vpop.permute.xlu0 %1079
        %1081 = vrot.lane.b32.xlu0 %v601, 20
        %v1082 = vpop.permute.xlu0 %1081
        %1083 = vrot.lane.b32.xlu0 %v603, 20
        %v1084 = vpop.permute.xlu0 %1083
        %1085 = vrot.lane.b32.xlu0 %v606, 20
        %v1086 = vpop.permute.xlu0 %1085
        %1087 = vrot.lane.b32.xlu0 %v608, 20
        %v1088 = vpop.permute.xlu0 %1087
        %1089 = vrot.lane.b32.xlu0 %v611, 20
        %v1090 = vpop.permute.xlu0 %1089
        %1091 = vrot.lane.b32.xlu0 %v613, 20
        %v1092 = vpop.permute.xlu0 %1091
        %1093 = vrot.lane.b32.xlu0 %v616, 20
        %v1094 = vpop.permute.xlu0 %1093
        %1095 = vrot.lane.b32.xlu0 %v618, 20
        %v1096 = vpop.permute.xlu0 %1095
        %1097 = vrot.lane.b32.xlu0 %v621, 20
        %v1098 = vpop.permute.xlu0 %1097
        %1099 = vrot.lane.b32.xlu0 %v623, 20
        %v1100 = vpop.permute.xlu0 %1099
        %1101 = vrot.lane.b32.xlu0 %v626, 20
        %v1102 = vpop.permute.xlu0 %1101
        %1103 = vrot.lane.b32.xlu0 %v628, 20
        %v1104 = vpop.permute.xlu0 %1103
        %1105 = vrot.lane.b32.xlu0 %v631, 20
        %v1106 = vpop.permute.xlu0 %1105
        %1107 = vrot.lane.b32.xlu0 %v633, 20
        %v1108 = vpop.permute.xlu0 %1107
        %1109 = vrot.lane.b32.xlu0 %v636, 20
        %v1110 = vpop.permute.xlu0 %1109
        %1111 = vrot.lane.b32.xlu0 %v638, 20
        %v1112 = vpop.permute.xlu0 %1111
        %1113 = vrot.lane.b32.xlu0 %v641, 20
        %v1114 = vpop.permute.xlu0 %1113
        %1115 = vrot.lane.b32.xlu0 %v643, 20
        %v1116 = vpop.permute.xlu0 %1115
        %1117 = vrot.lane.b32.xlu0 %v646, 20
        %v1118 = vpop.permute.xlu0 %1117
        %1119 = vrot.lane.b32.xlu0 %v648, 20
        %v1120 = vpop.permute.xlu0 %1119
        %1121 = vrot.lane.b32.xlu0 %v651, 20
        %v1122 = vpop.permute.xlu0 %1121
        %1123 = vrot.lane.b32.xlu0 %v653, 20
        %v1124 = vpop.permute.xlu0 %1123
        %1125 = vrot.lane.b32.xlu0 %v656, 20
        %v1126 = vpop.permute.xlu0 %1125
        %1127 = vrot.lane.b32.xlu0 %v658, 20
        %v1128 = vpop.permute.xlu0 %1127
        %1129 = vrot.lane.b32.xlu0 %v669, 20
        %v1130 = vpop.permute.xlu0 %1129
        %1131 = vrot.lane.b32.xlu0 %v671, 20
        %v1132 = vpop.permute.xlu0 %1131
        %1165 = vrot.lane.b32.xlu0 %v391, 24
        %v1166 = vpop.permute.xlu0 %1165
        %1167 = vrot.lane.b32.xlu0 %v392, 24
        %v1168 = vpop.permute.xlu0 %1167
        %1169 = vrot.lane.b32.xlu0 %v394, 24
        %v1170 = vpop.permute.xlu0 %1169
        %1171 = vrot.lane.b32.xlu0 %v395, 24
        %v1172 = vpop.permute.xlu0 %1171
        %1173 = vrot.lane.b32.xlu0 %v397, 24
        %v1174 = vpop.permute.xlu0 %1173
        %1175 = vrot.lane.b32.xlu0 %v398, 24
        %v1176 = vpop.permute.xlu0 %1175
        %1177 = vrot.lane.b32.xlu0 %v400, 24
        %v1178 = vpop.permute.xlu0 %1177
        %1179 = vrot.lane.b32.xlu0 %v401, 24
        %v1180 = vpop.permute.xlu0 %1179
        %1181 = vrot.lane.b32.xlu0 %v403, 24
        %v1182 = vpop.permute.xlu0 %1181
        %1183 = vrot.lane.b32.xlu0 %v404, 24
        %v1184 = vpop.permute.xlu0 %1183
        %1185 = vrot.lane.b32.xlu0 %v406, 24
        %v1186 = vpop.permute.xlu0 %1185
        %1187 = vrot.lane.b32.xlu0 %v407, 24
        %v1188 = vpop.permute.xlu0 %1187
        %1189 = vrot.lane.b32.xlu0 %v409, 24
        %v1190 = vpop.permute.xlu0 %1189
        %1191 = vrot.lane.b32.xlu0 %v410, 24
        %v1192 = vpop.permute.xlu0 %1191
        %1193 = vrot.lane.b32.xlu0 %v412, 24
        %v1194 = vpop.permute.xlu0 %1193
        %1195 = vrot.lane.b32.xlu0 %v413, 24
        %v1196 = vpop.permute.xlu0 %1195
        %1197 = vrot.lane.b32.xlu0 %v415, 24
        %v1198 = vpop.permute.xlu0 %1197
        %1199 = vrot.lane.b32.xlu0 %v416, 24
        %v1200 = vpop.permute.xlu0 %1199
        %1201 = vrot.lane.b32.xlu0 %v418, 24
        %v1202 = vpop.permute.xlu0 %1201
        %1203 = vrot.lane.b32.xlu0 %v419, 24
        %v1204 = vpop.permute.xlu0 %1203
        %1205 = vrot.lane.b32.xlu0 %v421, 24
        %v1206 = vpop.permute.xlu0 %1205
        %1207 = vrot.lane.b32.xlu0 %v422, 24
        %v1208 = vpop.permute.xlu0 %1207
        %1209 = vrot.lane.b32.xlu0 %v424, 24
        %v1210 = vpop.permute.xlu0 %1209
        %1211 = vrot.lane.b32.xlu0 %v425, 24
        %v1212 = vpop.permute.xlu0 %1211
        %1213 = vrot.lane.b32.xlu0 %v427, 24
        %v1214 = vpop.permute.xlu0 %1213
        %1215 = vrot.lane.b32.xlu0 %v428, 24
        %v1216 = vpop.permute.xlu0 %1215
        %1217 = vrot.lane.b32.xlu0 %v430, 24
        %v1218 = vpop.permute.xlu0 %1217
        %1219 = vrot.lane.b32.xlu0 %v431, 24
        %v1220 = vpop.permute.xlu0 %1219
        %1221 = vrot.lane.b32.xlu0 %v433, 24
        %v1222 = vpop.permute.xlu0 %1221
        %1223 = vrot.lane.b32.xlu0 %v434, 24
        %v1224 = vpop.permute.xlu0 %1223
        %1225 = vrot.lane.b32.xlu0 %v436, 24
        %v1226 = vpop.permute.xlu0 %1225
        %1227 = vrot.lane.b32.xlu0 %v437, 24
        %v1228 = vpop.permute.xlu0 %1227
        %1261 = vrot.lane.b32.xlu0 %v510, 28
        %v1262 = vpop.permute.xlu0 %1261
        %1263 = vrot.lane.b32.xlu0 %v512, 28
        %v1264 = vpop.permute.xlu0 %1263
        %1265 = vrot.lane.b32.xlu0 %v515, 28
        %v1266 = vpop.permute.xlu0 %1265
        %1267 = vrot.lane.b32.xlu0 %v517, 28
        %v1268 = vpop.permute.xlu0 %1267
        %1269 = vrot.lane.b32.xlu0 %v520, 28
        %v1270 = vpop.permute.xlu0 %1269
        %1271 = vrot.lane.b32.xlu0 %v522, 28
        %v1272 = vpop.permute.xlu0 %1271
        %1273 = vrot.lane.b32.xlu0 %v525, 28
        %v1274 = vpop.permute.xlu0 %1273
        %1275 = vrot.lane.b32.xlu0 %v527, 28
        %v1276 = vpop.permute.xlu0 %1275
        %1277 = vrot.lane.b32.xlu0 %v530, 28
        %v1278 = vpop.permute.xlu0 %1277
        %1279 = vrot.lane.b32.xlu0 %v532, 28
        %v1280 = vpop.permute.xlu0 %1279
        %1281 = vrot.lane.b32.xlu0 %v535, 28
        %v1282 = vpop.permute.xlu0 %1281
        %1283 = vrot.lane.b32.xlu0 %v537, 28
        %v1284 = vpop.permute.xlu0 %1283
        %1285 = vrot.lane.b32.xlu0 %v540, 28
        %v1286 = vpop.permute.xlu0 %1285
        %1287 = vrot.lane.b32.xlu0 %v542, 28
        %v1288 = vpop.permute.xlu0 %1287
        %1289 = vrot.lane.b32.xlu0 %v545, 28
        %v1290 = vpop.permute.xlu0 %1289
        %1291 = vrot.lane.b32.xlu0 %v547, 28
        %v1292 = vpop.permute.xlu0 %1291
        %1293 = vrot.lane.b32.xlu0 %v550, 28
        %v1294 = vpop.permute.xlu0 %1293
        %1295 = vrot.lane.b32.xlu0 %v552, 28
        %v1296 = vpop.permute.xlu0 %1295
        %1297 = vrot.lane.b32.xlu0 %v555, 28
        %v1298 = vpop.permute.xlu0 %1297
        %1299 = vrot.lane.b32.xlu0 %v557, 28
        %v1300 = vpop.permute.xlu0 %1299
        %1301 = vrot.lane.b32.xlu0 %v560, 28
        %v1302 = vpop.permute.xlu0 %1301
        %1303 = vrot.lane.b32.xlu0 %v562, 28
        %v1304 = vpop.permute.xlu0 %1303
        %1305 = vrot.lane.b32.xlu0 %v565, 28
        %v1306 = vpop.permute.xlu0 %1305
        %1307 = vrot.lane.b32.xlu0 %v567, 28
        %v1308 = vpop.permute.xlu0 %1307
        %1309 = vrot.lane.b32.xlu0 %v570, 28
        %v1310 = vpop.permute.xlu0 %1309
        %1311 = vrot.lane.b32.xlu0 %v572, 28
        %v1312 = vpop.permute.xlu0 %1311
        %1313 = vrot.lane.b32.xlu0 %v575, 28
        %v1314 = vpop.permute.xlu0 %1313
        %1315 = vrot.lane.b32.xlu0 %v577, 28
        %v1316 = vpop.permute.xlu0 %1315
        %1317 = vrot.lane.b32.xlu0 %v664, 28
        %v1318 = vpop.permute.xlu0 %1317
        %1319 = vrot.lane.b32.xlu0 %v666, 28
        %v1320 = vpop.permute.xlu0 %1319
        %1321 = vrot.lane.b32.xlu0 %v677, 28
        %v1322 = vpop.permute.xlu0 %1321
        %1323 = vrot.lane.b32.xlu0 %v679, 28
        %v1324 = vpop.permute.xlu0 %1323
        %1357 = vrot.lane.b32.xlu0 %v591, 32
        %v1358 = vpop.permute.xlu0 %1357
        %1359 = vrot.lane.b32.xlu0 %v593, 32
        %v1360 = vpop.permute.xlu0 %1359
        %1361 = vrot.lane.b32.xlu0 %v596, 32
        %v1362 = vpop.permute.xlu0 %1361
        %1363 = vrot.lane.b32.xlu0 %v598, 32
        %v1364 = vpop.permute.xlu0 %1363
        %1365 = vrot.lane.b32.xlu0 %v601, 32
        %v1366 = vpop.permute.xlu0 %1365
        %1367 = vrot.lane.b32.xlu0 %v603, 32
        %v1368 = vpop.permute.xlu0 %1367
        %1369 = vrot.lane.b32.xlu0 %v606, 32
        %v1370 = vpop.permute.xlu0 %1369
        %1371 = vrot.lane.b32.xlu0 %v608, 32
        %v1372 = vpop.permute.xlu0 %1371
        %1373 = vrot.lane.b32.xlu0 %v611, 32
        %v1374 = vpop.permute.xlu0 %1373
        %1375 = vrot.lane.b32.xlu0 %v613, 32
        %v1376 = vpop.permute.xlu0 %1375
        %1377 = vrot.lane.b32.xlu0 %v616, 32
        %v1378 = vpop.permute.xlu0 %1377
        %1379 = vrot.lane.b32.xlu0 %v618, 32
        %v1380 = vpop.permute.xlu0 %1379
        %1381 = vrot.lane.b32.xlu0 %v621, 32
        %v1382 = vpop.permute.xlu0 %1381
        %1383 = vrot.lane.b32.xlu0 %v623, 32
        %v1384 = vpop.permute.xlu0 %1383
        %1385 = vrot.lane.b32.xlu0 %v626, 32
        %v1386 = vpop.permute.xlu0 %1385
        %1387 = vrot.lane.b32.xlu0 %v628, 32
        %v1388 = vpop.permute.xlu0 %1387
        %1389 = vrot.lane.b32.xlu0 %v631, 32
        %v1390 = vpop.permute.xlu0 %1389
        %1391 = vrot.lane.b32.xlu0 %v633, 32
        %v1392 = vpop.permute.xlu0 %1391
        %1393 = vrot.lane.b32.xlu0 %v636, 32
        %v1394 = vpop.permute.xlu0 %1393
        %1395 = vrot.lane.b32.xlu0 %v638, 32
        %v1396 = vpop.permute.xlu0 %1395
        %1397 = vrot.lane.b32.xlu0 %v641, 32
        %v1398 = vpop.permute.xlu0 %1397
        %1399 = vrot.lane.b32.xlu0 %v643, 32
        %v1400 = vpop.permute.xlu0 %1399
        %1401 = vrot.lane.b32.xlu0 %v646, 32
        %v1402 = vpop.permute.xlu0 %1401
        %1403 = vrot.lane.b32.xlu0 %v648, 32
        %v1404 = vpop.permute.xlu0 %1403
        %1405 = vrot.lane.b32.xlu0 %v651, 32
        %v1406 = vpop.permute.xlu0 %1405
        %1407 = vrot.lane.b32.xlu0 %v653, 32
        %v1408 = vpop.permute.xlu0 %1407
        %1409 = vrot.lane.b32.xlu0 %v656, 32
        %v1410 = vpop.permute.xlu0 %1409
        %1411 = vrot.lane.b32.xlu0 %v658, 32
        %v1412 = vpop.permute.xlu0 %1411
        %1413 = vrot.lane.b32.xlu0 %v669, 32
        %v1414 = vpop.permute.xlu0 %1413
        %1415 = vrot.lane.b32.xlu0 %v671, 32
        %v1416 = vpop.permute.xlu0 %1415
        %1417 = vrot.lane.b32.xlu0 %v682, 32
        %v1418 = vpop.permute.xlu0 %1417
        %1419 = vrot.lane.b32.xlu0 %v684, 32
        %v1420 = vpop.permute.xlu0 %1419
        %vm1453 = vcmask 31744
        %v1454 = vsel %vm1453, %v385, %v686
        %v1455 = vsel %vm1453, %v386, %v688
        %v1456 = vsel %vm1453, %v388, %v690
        %v1457 = vsel %vm1453, %v389, %v692
        %v1458 = vsel %vm1453, %v391, %v694
        %v1459 = vsel %vm1453, %v392, %v696
        %v1460 = vsel %vm1453, %v394, %v698
        %v1461 = vsel %vm1453, %v395, %v700
        %v1462 = vsel %vm1453, %v397, %v702
        %v1463 = vsel %vm1453, %v398, %v704
        %v1464 = vsel %vm1453, %v400, %v706
        %v1465 = vsel %vm1453, %v401, %v708
        %v1466 = vsel %vm1453, %v403, %v710
        %v1467 = vsel %vm1453, %v404, %v712
        %v1468 = vsel %vm1453, %v406, %v714
        %v1469 = vsel %vm1453, %v407, %v716
        %v1470 = vsel %vm1453, %v409, %v718
        %v1471 = vsel %vm1453, %v410, %v720
        %v1472 = vsel %vm1453, %v412, %v722
        %v1473 = vsel %vm1453, %v413, %v724
        %v1474 = vsel %vm1453, %v415, %v726
        %v1475 = vsel %vm1453, %v416, %v728
        %v1476 = vsel %vm1453, %v418, %v730
        %v1477 = vsel %vm1453, %v419, %v732
        %v1478 = vsel %vm1453, %v421, %v734
        %v1479 = vsel %vm1453, %v422, %v736
        %v1480 = vsel %vm1453, %v424, %v738
        %v1481 = vsel %vm1453, %v425, %v740
        %v1482 = vsel %vm1453, %v427, %v742
        %v1483 = vsel %vm1453, %v428, %v744
        %v1484 = vsel %vm1453, %v430, %v746
        %v1485 = vsel %vm1453, %v431, %v748
        %vm1486 = vcmask 64512
        %v1487 = vsel %vm1486, %v1454, %v782
        %v1488 = vsel %vm1486, %v1455, %v784
        %v1489 = vsel %vm1486, %v1456, %v786
        %v1490 = vsel %vm1486, %v1457, %v788
        %v1491 = vsel %vm1486, %v1458, %v790
        %v1492 = vsel %vm1486, %v1459, %v792
        %v1493 = vsel %vm1486, %v1460, %v794
        %v1494 = vsel %vm1486, %v1461, %v796
        %v1495 = vsel %vm1486, %v1462, %v798
        %v1496 = vsel %vm1486, %v1463, %v800
        %v1497 = vsel %vm1486, %v1464, %v802
        %v1498 = vsel %vm1486, %v1465, %v804
        %v1499 = vsel %vm1486, %v1466, %v806
        %v1500 = vsel %vm1486, %v1467, %v808
        %v1501 = vsel %vm1486, %v1468, %v810
        %v1502 = vsel %vm1486, %v1469, %v812
        %v1503 = vsel %vm1486, %v1470, %v814
        %v1504 = vsel %vm1486, %v1471, %v816
        %v1505 = vsel %vm1486, %v1472, %v818
        %v1506 = vsel %vm1486, %v1473, %v820
        %v1507 = vsel %vm1486, %v1474, %v822
        %v1508 = vsel %vm1486, %v1475, %v824
        %v1509 = vsel %vm1486, %v1476, %v826
        %v1510 = vsel %vm1486, %v1477, %v828
        %v1511 = vsel %vm1486, %v1478, %v830
        %v1512 = vsel %vm1486, %v1479, %v832
        %v1513 = vsel %vm1486, %v1480, %v834
        %v1514 = vsel %vm1486, %v1481, %v836
        %v1515 = vsel %vm1486, %v1482, %v838
        %v1516 = vsel %vm1486, %v1483, %v840
        %v1517 = vsel %vm1486, %v1484, %v842
        %v1518 = vsel %vm1486, %v1485, %v844
        %vm1519 = vcmask 97280
        %v1520 = vsel %vm1519, %v1487, %v878
        %v1521 = vsel %vm1519, %v1488, %v880
        %v1522 = vsel %vm1519, %v1489, %v882
        %v1523 = vsel %vm1519, %v1490, %v884
        %v1524 = vsel %vm1519, %v1491, %v886
        %v1525 = vsel %vm1519, %v1492, %v888
        %v1526 = vsel %vm1519, %v1493, %v890
        %v1527 = vsel %vm1519, %v1494, %v892
        %v1528 = vsel %vm1519, %v1495, %v894
        %v1529 = vsel %vm1519, %v1496, %v896
        %v1530 = vsel %vm1519, %v1497, %v898
        %v1531 = vsel %vm1519, %v1498, %v900
        %v1532 = vsel %vm1519, %v1499, %v902
        %v1533 = vsel %vm1519, %v1500, %v904
        %v1534 = vsel %vm1519, %v1501, %v906
        %v1535 = vsel %vm1519, %v1502, %v908
        %v1536 = vsel %vm1519, %v1503, %v910
        %v1537 = vsel %vm1519, %v1504, %v912
        %v1538 = vsel %vm1519, %v1505, %v914
        %v1539 = vsel %vm1519, %v1506, %v916
        %v1540 = vsel %vm1519, %v1507, %v918
        %v1541 = vsel %vm1519, %v1508, %v920
        %v1542 = vsel %vm1519, %v1509, %v922
        %v1543 = vsel %vm1519, %v1510, %v924
        %v1544 = vsel %vm1519, %v1511, %v926
        %v1545 = vsel %vm1519, %v1512, %v928
        %v1546 = vsel %vm1519, %v1513, %v930
        %v1547 = vsel %vm1519, %v1514, %v932
        %v1548 = vsel %vm1519, %v1515, %v934
        %v1549 = vsel %vm1519, %v1516, %v936
        %v1550 = vsel %vm1519, %v1517, %v938
        %v1551 = vsel %vm1519, %v1518, %v940
        %vm1552 = vcmask 130048
        %v1553 = vsel %vm1552, %v1520, %v974
        %v1554 = vsel %vm1552, %v1521, %v976
        %v1555 = vsel %vm1552, %v1522, %v978
        %v1556 = vsel %vm1552, %v1523, %v980
        %v1557 = vsel %vm1552, %v1524, %v982
        %v1558 = vsel %vm1552, %v1525, %v984
        %v1559 = vsel %vm1552, %v1526, %v986
        %v1560 = vsel %vm1552, %v1527, %v988
        %v1561 = vsel %vm1552, %v1528, %v990
        %v1562 = vsel %vm1552, %v1529, %v992
        %v1563 = vsel %vm1552, %v1530, %v994
        %v1564 = vsel %vm1552, %v1531, %v996
        %v1565 = vsel %vm1552, %v1532, %v998
        %v1566 = vsel %vm1552, %v1533, %v1000
        %v1567 = vsel %vm1552, %v1534, %v1002
        %v1568 = vsel %vm1552, %v1535, %v1004
        %v1569 = vsel %vm1552, %v1536, %v1006
        %v1570 = vsel %vm1552, %v1537, %v1008
        %v1571 = vsel %vm1552, %v1538, %v1010
        %v1572 = vsel %vm1552, %v1539, %v1012
        %v1573 = vsel %vm1552, %v1540, %v1014
        %v1574 = vsel %vm1552, %v1541, %v1016
        %v1575 = vsel %vm1552, %v1542, %v1018
        %v1576 = vsel %vm1552, %v1543, %v1020
        %v1577 = vsel %vm1552, %v1544, %v1022
        %v1578 = vsel %vm1552, %v1545, %v1024
        %v1579 = vsel %vm1552, %v1546, %v1026
        %v1580 = vsel %vm1552, %v1547, %v1028
        %v1581 = vsel %vm1552, %v1548, %v1030
        %v1582 = vsel %vm1552, %v1549, %v1032
        %v1583 = vsel %vm1552, %v1550, %v1034
        %v1584 = vsel %vm1552, %v1551, %v1036
        %vm1585 = vcmask 162816
        %v1586 = vsel %vm1585, %v1553, %v1070
        %v1587 = vsel %vm1585, %v1554, %v1072
        %v1588 = vsel %vm1585, %v1555, %v1074
        %v1589 = vsel %vm1585, %v1556, %v1076
        %v1590 = vsel %vm1585, %v1557, %v1078
        %v1591 = vsel %vm1585, %v1558, %v1080
        %v1592 = vsel %vm1585, %v1559, %v1082
        %v1593 = vsel %vm1585, %v1560, %v1084
        %v1594 = vsel %vm1585, %v1561, %v1086
        %v1595 = vsel %vm1585, %v1562, %v1088
        %v1596 = vsel %vm1585, %v1563, %v1090
        %v1597 = vsel %vm1585, %v1564, %v1092
        %v1598 = vsel %vm1585, %v1565, %v1094
        %v1599 = vsel %vm1585, %v1566, %v1096
        %v1600 = vsel %vm1585, %v1567, %v1098
        %v1601 = vsel %vm1585, %v1568, %v1100
        %v1602 = vsel %vm1585, %v1569, %v1102
        %v1603 = vsel %vm1585, %v1570, %v1104
        %v1604 = vsel %vm1585, %v1571, %v1106
        %v1605 = vsel %vm1585, %v1572, %v1108
        %v1606 = vsel %vm1585, %v1573, %v1110
        %v1607 = vsel %vm1585, %v1574, %v1112
        %v1608 = vsel %vm1585, %v1575, %v1114
        %v1609 = vsel %vm1585, %v1576, %v1116
        %v1610 = vsel %vm1585, %v1577, %v1118
        %v1611 = vsel %vm1585, %v1578, %v1120
        %v1612 = vsel %vm1585, %v1579, %v1122
        %v1613 = vsel %vm1585, %v1580, %v1124
        %v1614 = vsel %vm1585, %v1581, %v1126
        %v1615 = vsel %vm1585, %v1582, %v1128
        %v1616 = vsel %vm1585, %v1583, %v1130
        %v1617 = vsel %vm1585, %v1584, %v1132
        %vm1618 = vcmask 195584
        %v1619 = vsel %vm1618, %v1586, %v1166
        %v1620 = vsel %vm1618, %v1587, %v1168
        %v1621 = vsel %vm1618, %v1588, %v1170
        %v1622 = vsel %vm1618, %v1589, %v1172
        %v1623 = vsel %vm1618, %v1590, %v1174
        %v1624 = vsel %vm1618, %v1591, %v1176
        %v1625 = vsel %vm1618, %v1592, %v1178
        %v1626 = vsel %vm1618, %v1593, %v1180
        %v1627 = vsel %vm1618, %v1594, %v1182
        %v1628 = vsel %vm1618, %v1595, %v1184
        %v1629 = vsel %vm1618, %v1596, %v1186
        %v1630 = vsel %vm1618, %v1597, %v1188
        %v1631 = vsel %vm1618, %v1598, %v1190
        %v1632 = vsel %vm1618, %v1599, %v1192
        %v1633 = vsel %vm1618, %v1600, %v1194
        %v1634 = vsel %vm1618, %v1601, %v1196
        %v1635 = vsel %vm1618, %v1602, %v1198
        %v1636 = vsel %vm1618, %v1603, %v1200
        %v1637 = vsel %vm1618, %v1604, %v1202
        %v1638 = vsel %vm1618, %v1605, %v1204
        %v1639 = vsel %vm1618, %v1606, %v1206
        %v1640 = vsel %vm1618, %v1607, %v1208
        %v1641 = vsel %vm1618, %v1608, %v1210
        %v1642 = vsel %vm1618, %v1609, %v1212
        %v1643 = vsel %vm1618, %v1610, %v1214
        %v1644 = vsel %vm1618, %v1611, %v1216
        %v1645 = vsel %vm1618, %v1612, %v1218
        %v1646 = vsel %vm1618, %v1613, %v1220
        %v1647 = vsel %vm1618, %v1614, %v1222
        %v1648 = vsel %vm1618, %v1615, %v1224
        %v1649 = vsel %vm1618, %v1616, %v1226
        %v1650 = vsel %vm1618, %v1617, %v1228
        %vm1651 = vcmask 228352
        %v1652 = vsel %vm1651, %v1619, %v1262
        %v1653 = vsel %vm1651, %v1620, %v1264
        %v1654 = vsel %vm1651, %v1621, %v1266
        %v1655 = vsel %vm1651, %v1622, %v1268
        %v1656 = vsel %vm1651, %v1623, %v1270
        %v1657 = vsel %vm1651, %v1624, %v1272
        %v1658 = vsel %vm1651, %v1625, %v1274
        %v1659 = vsel %vm1651, %v1626, %v1276
        %v1660 = vsel %vm1651, %v1627, %v1278
        %v1661 = vsel %vm1651, %v1628, %v1280
        %v1662 = vsel %vm1651, %v1629, %v1282
        %v1663 = vsel %vm1651, %v1630, %v1284
        %v1664 = vsel %vm1651, %v1631, %v1286
        %v1665 = vsel %vm1651, %v1632, %v1288
        %v1666 = vsel %vm1651, %v1633, %v1290
        %v1667 = vsel %vm1651, %v1634, %v1292
        %v1668 = vsel %vm1651, %v1635, %v1294
        %v1669 = vsel %vm1651, %v1636, %v1296
        %v1670 = vsel %vm1651, %v1637, %v1298
        %v1671 = vsel %vm1651, %v1638, %v1300
        %v1672 = vsel %vm1651, %v1639, %v1302
        %v1673 = vsel %vm1651, %v1640, %v1304
        %v1674 = vsel %vm1651, %v1641, %v1306
        %v1675 = vsel %vm1651, %v1642, %v1308
        %v1676 = vsel %vm1651, %v1643, %v1310
        %v1677 = vsel %vm1651, %v1644, %v1312
        %v1678 = vsel %vm1651, %v1645, %v1314
        %v1679 = vsel %vm1651, %v1646, %v1316
        %v1680 = vsel %vm1651, %v1647, %v1318
        %v1681 = vsel %vm1651, %v1648, %v1320
        %v1682 = vsel %vm1651, %v1649, %v1322
        %v1683 = vsel %vm1651, %v1650, %v1324
        %vm1684 = vcmask 261120
        %v1685 = vsel %vm1684, %v1652, %v1358
        %v1686 = vsel %vm1684, %v1653, %v1360
        %v1687 = vsel %vm1684, %v1654, %v1362
        %v1688 = vsel %vm1684, %v1655, %v1364
        %v1689 = vsel %vm1684, %v1656, %v1366
        %v1690 = vsel %vm1684, %v1657, %v1368
        %v1691 = vsel %vm1684, %v1658, %v1370
        %v1692 = vsel %vm1684, %v1659, %v1372
        %v1693 = vsel %vm1684, %v1660, %v1374
        %v1694 = vsel %vm1684, %v1661, %v1376
        %v1695 = vsel %vm1684, %v1662, %v1378
        %v1696 = vsel %vm1684, %v1663, %v1380
        %v1697 = vsel %vm1684, %v1664, %v1382
        %v1698 = vsel %vm1684, %v1665, %v1384
        %v1699 = vsel %vm1684, %v1666, %v1386
        %v1700 = vsel %vm1684, %v1667, %v1388
        %v1701 = vsel %vm1684, %v1668, %v1390
        %v1702 = vsel %vm1684, %v1669, %v1392
        %v1703 = vsel %vm1684, %v1670, %v1394
        %v1704 = vsel %vm1684, %v1671, %v1396
        %v1705 = vsel %vm1684, %v1672, %v1398
        %v1706 = vsel %vm1684, %v1673, %v1400
        %v1707 = vsel %vm1684, %v1674, %v1402
        %v1708 = vsel %vm1684, %v1675, %v1404
        %v1709 = vsel %vm1684, %v1676, %v1406
        %v1710 = vsel %vm1684, %v1677, %v1408
        %v1711 = vsel %vm1684, %v1678, %v1410
        %v1712 = vsel %vm1684, %v1679, %v1412
        %v1713 = vsel %vm1684, %v1680, %v1414
        %v1714 = vsel %vm1684, %v1681, %v1416
        %v1715 = vsel %vm1684, %v1682, %v1418
        %v1716 = vsel %vm1684, %v1683, %v1420
        %v1718 = vlaneseq
        %v1719 = vshrl.u32 %v1718, 7
        %v1720 = vsub.s32 0, %v1719
        %v1721 = vrot.slane %v444, %v1720
        %vm1723 = vcmask 293888
        %v1725 = vsel %vm1723, %v1685, 0
        %v1728 = vsel %vm1723, %v1686, 0
        %v1731 = vsel %vm1723, %v1687, 0
        %v1734 = vsel %vm1723, %v1688, 0
        %v1737 = vsel %vm1723, %v1689, 0
        %v1740 = vsel %vm1723, %v1690, 0
        %v1743 = vsel %vm1723, %v1691, 0
        %v1746 = vsel %vm1723, %v1692, 0
        %v1749 = vsel %vm1723, %v1693, 0
        %v1752 = vsel %vm1723, %v1694, 0
        %v1755 = vsel %vm1723, %v1695, 0
        %v1758 = vsel %vm1723, %v1696, 0
        %v1761 = vsel %vm1723, %v1697, 0
        %v1764 = vsel %vm1723, %v1698, 0
        %v1767 = vsel %vm1723, %v1699, 0
        %v1770 = vsel %vm1723, %v1700, 0
        %v1773 = vsel %vm1723, %v1701, 0
        %v1776 = vsel %vm1723, %v1702, 0
        %v1779 = vsel %vm1723, %v1703, 0
        %v1782 = vsel %vm1723, %v1704, 0
        %v1785 = vsel %vm1723, %v1705, 0
        %v1788 = vsel %vm1723, %v1706, 0
        %v1791 = vsel %vm1723, %v1707, 0
        %v1794 = vsel %vm1723, %v1708, 0
        %v1797 = vsel %vm1723, %v1709, 0
        %v1800 = vsel %vm1723, %v1710, 0
        %v1803 = vsel %vm1723, %v1711, 0
        %v1806 = vsel %vm1723, %v1712, 0
        %v1809 = vsel %vm1723, %v1713, 0
        %v1812 = vsel %vm1723, %v1714, 0
        %v1815 = vsel %vm1723, %v1715, 0
        %v1818 = vsel %vm1723, %v1716, 0
        %vm1820 = vcmask 1043456
        %v1822 = vsel %vm1820, %v443, 0
        %1824 = vmatprep.subr.mxu0 0.0
        %1825 = vmatpush1.msra.mxu0 0.0
        %1826 = vmatprep.subr.mxu0 0.0
        %1827 = vmatpush1.msra.mxu0 0.0
        %1828 = vmatprep.subr.mxu0 0.0
        %1829 = vmatpush1.msra.mxu0 0.0
        %1830 = vmatprep.subr.mxu0 0.0
        %1831 = vmatpush1.msra.mxu0 0.0
        %1832 = vmatprep.subr.mxu0 0.0
        %1833 = vmatpush1.msra.mxu0 0.0
        %1834 = vmatprep.subr.mxu0 0.0
        %1835 = vmatpush1.msra.mxu0 0.0
        %1836 = vmatprep.subr.mxu0 0.0
        %1837 = vmatpush1.msra.mxu0 0.0
        %1838 = vmatprep.subr.mxu0 0.0
        %1839 = vmatpush1.msra.mxu0 0.0
        %1840 = vmatprep.subr.mxu0 0.0
        %1841 = vmatpush1.msra.mxu0 0.0
        %1842 = vmatprep.subr.mxu0 0.0
        %1843 = vmatpush1.msra.mxu0 0.0
        %1844 = vmatprep.subr.mxu0 0.0
        %1845 = vmatpush1.msra.mxu0 0.0
        %1846 = vmatprep.subr.mxu0 0.0
        %1847 = vmatpush1.msra.mxu0 %v1822
        %1848 = vmatprep.subr.mxu0 0.0
        %1849 = vmatpush1.msra.mxu0 %v442
        %1850 = vmatprep.subr.mxu0 0.0
        %1851 = vmatpush1.msra.mxu0 %v441
        %1852 = vmatprep.subr.mxu0 0.0
        %1853 = vmatpush1.msra.mxu0 %v440
        %1854 = vmatprep.subr.mxu0 0.0
        %1855 = vmatpush1.msra.mxu0 %v439
        %1856 = vmatprep.subr.mxu0 0.0
        %1857 = vmatpush2.msra.mxu0 0.0
        %1858 = vmatprep.subr.mxu0 0.0
        %1859 = vmatpush2.msra.mxu0 0.0
        %1860 = vmatprep.subr.mxu0 0.0
        %1861 = vmatpush2.msra.mxu0 0.0
        %1862 = vmatprep.subr.mxu0 0.0
        %1863 = vmatpush2.msra.mxu0 0.0
        %1864 = vmatprep.subr.mxu0 0.0
        %1865 = vmatpush2.msra.mxu0 0.0
        %1866 = vmatprep.subr.mxu0 0.0
        %1867 = vmatpush2.msra.mxu0 0.0
        %1868 = vmatprep.subr.mxu0 0.0
        %1869 = vmatpush2.msra.mxu0 0.0
        %1870 = vmatprep.subr.mxu0 0.0
        %1871 = vmatpush2.msra.mxu0 0.0
        %1872 = vmatprep.subr.mxu0 0.0
        %1873 = vmatpush2.msra.mxu0 0.0
        %1874 = vmatprep.subr.mxu0 0.0
        %1875 = vmatpush2.msra.mxu0 0.0
        %1876 = vmatprep.subr.mxu0 0.0
        %1877 = vmatpush2.msra.mxu0 0.0
        %1878 = vmatprep.subr.mxu0 0.0
        %1879 = vmatpush2.msra.mxu0 0.0
        %1880 = vmatprep.subr.mxu0 0.0
        %1881 = vmatpush2.msra.mxu0 0.0
        %1882 = vmatprep.subr.mxu0 0.0
        %1883 = vmatpush2.msra.mxu0 0.0
        %1884 = vmatprep.subr.mxu0 0.0
        %1885 = vmatpush2.msra.mxu0 0.0
        %1886 = vmatprep.subr.mxu0 0.0
        %1887 = vmatpush2.msra.mxu0 0.0
        %1888 = vmatprep.mubr.f32.mxu0 0.0
        %1889 = vmatmul.mubr.f32.gmra.mxu0 %v1725
        %v1890 = vpop.f32.mrf.mxu0
        %v1891 = vadd.f32 %v1721, %v1890
        %v1892 = vpop.f32.mrf.mxu0
        %1893 = vmatprep.mubr.f32.mxu0 0.0
        %1894 = vmatmul.mubr.f32.gmra.mxu0 %v1728
        %v1895 = vpop.f32.mrf.mxu0
        %v1896 = vadd.f32 %v1721, %v1895
        %v1897 = vpop.f32.mrf.mxu0
        %1898 = vmatprep.mubr.f32.mxu0 0.0
        %1899 = vmatmul.mubr.f32.gmra.mxu0 %v1731
        %v1900 = vpop.f32.mrf.mxu0
        %v1901 = vadd.f32 %v1721, %v1900
        %v1902 = vpop.f32.mrf.mxu0
        %1903 = vmatprep.mubr.f32.mxu0 0.0
        %1904 = vmatmul.mubr.f32.gmra.mxu0 %v1734
        %v1905 = vpop.f32.mrf.mxu0
        %v1906 = vadd.f32 %v1721, %v1905
        %v1907 = vpop.f32.mrf.mxu0
        %1908 = vmatprep.mubr.f32.mxu0 0.0
        %1909 = vmatmul.mubr.f32.gmra.mxu0 %v1737
        %v1910 = vpop.f32.mrf.mxu0
        %v1911 = vadd.f32 %v1721, %v1910
        %v1912 = vpop.f32.mrf.mxu0
        %1913 = vmatprep.mubr.f32.mxu0 0.0
        %1914 = vmatmul.mubr.f32.gmra.mxu0 %v1740
        %v1915 = vpop.f32.mrf.mxu0
        %v1916 = vadd.f32 %v1721, %v1915
        %v1917 = vpop.f32.mrf.mxu0
        %1918 = vmatprep.mubr.f32.mxu0 0.0
        %1919 = vmatmul.mubr.f32.gmra.mxu0 %v1743
        %v1920 = vpop.f32.mrf.mxu0
        %v1921 = vadd.f32 %v1721, %v1920
        %v1922 = vpop.f32.mrf.mxu0
        %1923 = vmatprep.mubr.f32.mxu0 0.0
        %1924 = vmatmul.mubr.f32.gmra.mxu0 %v1746
        %v1925 = vpop.f32.mrf.mxu0
        %v1926 = vadd.f32 %v1721, %v1925
        %v1927 = vpop.f32.mrf.mxu0
        %1928 = vmatprep.mubr.f32.mxu0 0.0
        %1929 = vmatmul.mubr.f32.gmra.mxu0 %v1749
        %v1930 = vpop.f32.mrf.mxu0
        %v1931 = vadd.f32 %v1721, %v1930
        %v1932 = vpop.f32.mrf.mxu0
        %1933 = vmatprep.mubr.f32.mxu0 0.0
        %1934 = vmatmul.mubr.f32.gmra.mxu0 %v1752
        %v1935 = vpop.f32.mrf.mxu0
        %v1936 = vadd.f32 %v1721, %v1935
        %v1937 = vpop.f32.mrf.mxu0
        %1938 = vmatprep.mubr.f32.mxu0 0.0
        %1939 = vmatmul.mubr.f32.gmra.mxu0 %v1755
        %v1940 = vpop.f32.mrf.mxu0
        %v1941 = vadd.f32 %v1721, %v1940
        %v1942 = vpop.f32.mrf.mxu0
        %1943 = vmatprep.mubr.f32.mxu0 0.0
        %1944 = vmatmul.mubr.f32.gmra.mxu0 %v1758
        %v1945 = vpop.f32.mrf.mxu0
        %v1946 = vadd.f32 %v1721, %v1945
        %v1947 = vpop.f32.mrf.mxu0
        %1948 = vmatprep.mubr.f32.mxu0 0.0
        %1949 = vmatmul.mubr.f32.gmra.mxu0 %v1761
        %v1950 = vpop.f32.mrf.mxu0
        %v1951 = vadd.f32 %v1721, %v1950
        %v1952 = vpop.f32.mrf.mxu0
        %1953 = vmatprep.mubr.f32.mxu0 0.0
        %1954 = vmatmul.mubr.f32.gmra.mxu0 %v1764
        %v1955 = vpop.f32.mrf.mxu0
        %v1956 = vadd.f32 %v1721, %v1955
        %v1957 = vpop.f32.mrf.mxu0
        %1958 = vmatprep.mubr.f32.mxu0 0.0
        %1959 = vmatmul.mubr.f32.gmra.mxu0 %v1767
        %v1960 = vpop.f32.mrf.mxu0
        %v1961 = vadd.f32 %v1721, %v1960
        %v1962 = vpop.f32.mrf.mxu0
        %1963 = vmatprep.mubr.f32.mxu0 0.0
        %1964 = vmatmul.mubr.f32.gmra.mxu0 %v1770
        %v1965 = vpop.f32.mrf.mxu0
        %v1966 = vadd.f32 %v1721, %v1965
        %v1967 = vpop.f32.mrf.mxu0
        %1968 = vmatprep.mubr.f32.mxu0 0.0
        %1969 = vmatmul.mubr.f32.gmra.mxu0 %v1773
        %v1970 = vpop.f32.mrf.mxu0
        %v1971 = vadd.f32 %v1721, %v1970
        %v1972 = vpop.f32.mrf.mxu0
        %1973 = vmatprep.mubr.f32.mxu0 0.0
        %1974 = vmatmul.mubr.f32.gmra.mxu0 %v1776
        %v1975 = vpop.f32.mrf.mxu0
        %v1976 = vadd.f32 %v1721, %v1975
        %v1977 = vpop.f32.mrf.mxu0
        %1978 = vmatprep.mubr.f32.mxu0 0.0
        %1979 = vmatmul.mubr.f32.gmra.mxu0 %v1779
        %v1980 = vpop.f32.mrf.mxu0
        %v1981 = vadd.f32 %v1721, %v1980
        %v1982 = vpop.f32.mrf.mxu0
        %1983 = vmatprep.mubr.f32.mxu0 0.0
        %1984 = vmatmul.mubr.f32.gmra.mxu0 %v1782
        %v1985 = vpop.f32.mrf.mxu0
        %v1986 = vadd.f32 %v1721, %v1985
        %v1987 = vpop.f32.mrf.mxu0
        %1988 = vmatprep.mubr.f32.mxu0 0.0
        %1989 = vmatmul.mubr.f32.gmra.mxu0 %v1785
        %v1990 = vpop.f32.mrf.mxu0
        %v1991 = vadd.f32 %v1721, %v1990
        %v1992 = vpop.f32.mrf.mxu0
        %1993 = vmatprep.mubr.f32.mxu0 0.0
        %1994 = vmatmul.mubr.f32.gmra.mxu0 %v1788
        %v1995 = vpop.f32.mrf.mxu0
        %v1996 = vadd.f32 %v1721, %v1995
        %v1997 = vpop.f32.mrf.mxu0
        %1998 = vmatprep.mubr.f32.mxu0 0.0
        %1999 = vmatmul.mubr.f32.gmra.mxu0 %v1791
        %v2000 = vpop.f32.mrf.mxu0
        %v2001 = vadd.f32 %v1721, %v2000
        %v2002 = vpop.f32.mrf.mxu0
        %2003 = vmatprep.mubr.f32.mxu0 0.0
        %2004 = vmatmul.mubr.f32.gmra.mxu0 %v1794
        %v2005 = vpop.f32.mrf.mxu0
        %v2006 = vadd.f32 %v1721, %v2005
        %v2007 = vpop.f32.mrf.mxu0
        %2008 = vmatprep.mubr.f32.mxu0 0.0
        %2009 = vmatmul.mubr.f32.gmra.mxu0 %v1797
        %v2010 = vpop.f32.mrf.mxu0
        %v2011 = vadd.f32 %v1721, %v2010
        %v2012 = vpop.f32.mrf.mxu0
        %2013 = vmatprep.mubr.f32.mxu0 0.0
        %2014 = vmatmul.mubr.f32.gmra.mxu0 %v1800
        %v2015 = vpop.f32.mrf.mxu0
        %v2016 = vadd.f32 %v1721, %v2015
        %v2017 = vpop.f32.mrf.mxu0
        %2018 = vmatprep.mubr.f32.mxu0 0.0
        %2019 = vmatmul.mubr.f32.gmra.mxu0 %v1803
        %v2020 = vpop.f32.mrf.mxu0
        %v2021 = vadd.f32 %v1721, %v2020
        %v2022 = vpop.f32.mrf.mxu0
        %2023 = vmatprep.mubr.f32.mxu0 0.0
        %2024 = vmatmul.mubr.f32.gmra.mxu0 %v1806
        %v2025 = vpop.f32.mrf.mxu0
        %v2026 = vadd.f32 %v1721, %v2025
        %v2027 = vpop.f32.mrf.mxu0
        %2028 = vmatprep.mubr.f32.mxu0 0.0
        %2029 = vmatmul.mubr.f32.gmra.mxu0 %v1809
        %v2030 = vpop.f32.mrf.mxu0
        %v2031 = vadd.f32 %v1721, %v2030
        %v2032 = vpop.f32.mrf.mxu0
        %2033 = vmatprep.mubr.f32.mxu0 0.0
        %2034 = vmatmul.mubr.f32.gmra.mxu0 %v1812
        %v2035 = vpop.f32.mrf.mxu0
        %v2036 = vadd.f32 %v1721, %v2035
        %v2037 = vpop.f32.mrf.mxu0
        %2038 = vmatprep.mubr.f32.mxu0 0.0
        %2039 = vmatmul.mubr.f32.gmra.mxu0 %v1815
        %v2040 = vpop.f32.mrf.mxu0
        %v2041 = vadd.f32 %v1721, %v2040
        %v2042 = vpop.f32.mrf.mxu0
        %2043 = vmatprep.mubr.f32.mxu0 0.0
        %2044 = vmatmul.mubr.f32.gmra.mxu0 %v1818
        %v2045 = vpop.f32.mrf.mxu0
        %v2046 = vadd.f32 %v1721, %v2045
        %v2047 = vpop.f32.mrf.mxu0
        %2048 = vdwg.mxu0
        %v2049 = vsel %vm1552, %v1891, 0.0
        %v2050 = vsel %vm1552, %v1896, 0.0
        %v2051 = vadd.f32 %v2049, %v2050
        %v2052 = vsel %vm1552, %v1901, 0.0
        %v2053 = vadd.f32 %v2051, %v2052
        %v2054 = vsel %vm1552, %v1906, 0.0
        %v2055 = vadd.f32 %v2053, %v2054
        %v2056 = vsel %vm1552, %v1911, 0.0
        %v2057 = vadd.f32 %v2055, %v2056
        %v2058 = vsel %vm1552, %v1916, 0.0
        %v2059 = vadd.f32 %v2057, %v2058
        %v2060 = vsel %vm1552, %v1921, 0.0
        %v2061 = vadd.f32 %v2059, %v2060
        %v2062 = vsel %vm1552, %v1926, 0.0
        %v2063 = vadd.f32 %v2061, %v2062
        %v2064 = vsel %vm1552, %v1931, 0.0
        %v2065 = vadd.f32 %v2063, %v2064
        %v2066 = vsel %vm1552, %v1936, 0.0
        %v2067 = vadd.f32 %v2065, %v2066
        %v2068 = vsel %vm1552, %v1941, 0.0
        %v2069 = vadd.f32 %v2067, %v2068
        %v2070 = vsel %vm1552, %v1946, 0.0
        %v2071 = vadd.f32 %v2069, %v2070
        %v2072 = vsel %vm1552, %v1951, 0.0
        %v2073 = vadd.f32 %v2071, %v2072
        %v2074 = vsel %vm1552, %v1956, 0.0
        %v2075 = vadd.f32 %v2073, %v2074
        %v2076 = vsel %vm1552, %v1961, 0.0
        %v2077 = vadd.f32 %v2075, %v2076
        %v2078 = vsel %vm1552, %v1966, 0.0
        %v2079 = vadd.f32 %v2077, %v2078
        %v2080 = vsel %vm1552, %v1971, 0.0
        %v2081 = vadd.f32 %v2079, %v2080
        %v2082 = vsel %vm1552, %v1976, 0.0
        %v2083 = vadd.f32 %v2081, %v2082
        %v2084 = vsel %vm1552, %v1981, 0.0
        %v2085 = vadd.f32 %v2083, %v2084
        %v2086 = vsel %vm1552, %v1986, 0.0
        %v2087 = vadd.f32 %v2085, %v2086
        %v2088 = vsel %vm1552, %v1991, 0.0
        %v2089 = vadd.f32 %v2087, %v2088
        %v2090 = vsel %vm1552, %v1996, 0.0
        %v2091 = vadd.f32 %v2089, %v2090
        %v2092 = vsel %vm1552, %v2001, 0.0
        %v2093 = vadd.f32 %v2091, %v2092
        %v2094 = vsel %vm1552, %v2006, 0.0
        %v2095 = vadd.f32 %v2093, %v2094
        %v2096 = vsel %vm1552, %v2011, 0.0
        %v2097 = vadd.f32 %v2095, %v2096
        %v2098 = vsel %vm1552, %v2016, 0.0
        %v2099 = vadd.f32 %v2097, %v2098
        %v2100 = vsel %vm1552, %v2021, 0.0
        %v2101 = vadd.f32 %v2099, %v2100
        %v2102 = vsel %vm1552, %v2026, 0.0
        %v2103 = vadd.f32 %v2101, %v2102
        %v2104 = vsel %vm1552, %v2031, 0.0
        %v2105 = vadd.f32 %v2103, %v2104
        %v2106 = vsel %vm1552, %v2036, 0.0
        %v2107 = vadd.f32 %v2105, %v2106
        %v2108 = vsel %vm1552, %v2041, 0.0
        %v2109 = vadd.f32 %v2107, %v2108
        %v2110 = vsel %vm1552, %v2046, 0.0
        %v2111 = vadd.f32 %v2109, %v2110
        %v2112 = vrot.slane %v2111, 4
        %v2113 = vadd.f32 %v2111, %v2112
        %v2114 = vrot.slane %v2113, 2
        %v2115 = vadd.f32 %v2113, %v2114
        %v2116 = vrot.slane %v2115, 1
        %v2117 = vadd.f32 %v2115, %v2116
        %v2118 = vrcp.pop 256.0
        %v2119 = vmul.f32 %v2117, %v2118
        %v2121 = vsel %vm1552, %v2119, 0
        %2123 = vmatprep.subr.mxu0 0.0
        %2124 = vmatpush1.msra.mxu0 0.0
        %2125 = vmatprep.subr.mxu0 0.0
        %2126 = vmatpush1.msra.mxu0 0.0
        %2127 = vmatprep.subr.mxu0 0.0
        %2128 = vmatpush1.msra.mxu0 0.0
        %2129 = vmatprep.subr.mxu0 0.0
        %2130 = vmatpush1.msra.mxu0 0.0
        %2131 = vmatprep.subr.mxu0 0.0
        %2132 = vmatpush1.msra.mxu0 0.0
        %2133 = vmatprep.subr.mxu0 0.0
        %2134 = vmatpush1.msra.mxu0 0.0
        %2135 = vmatprep.subr.mxu0 0.0
        %2136 = vmatpush1.msra.mxu0 0.0
        %2137 = vmatprep.subr.mxu0 0.0
        %2138 = vmatpush1.msra.mxu0 0.0
        %2139 = vmatprep.subr.mxu0 0.0
        %2140 = vmatpush1.msra.mxu0 0.0
        %2141 = vmatprep.subr.mxu0 0.0
        %2142 = vmatpush1.msra.mxu0 0.0
        %2143 = vmatprep.subr.mxu0 0.0
        %2144 = vmatpush1.msra.mxu0 0.0
        %2145 = vmatprep.subr.mxu0 0.0
        %2146 = vmatpush1.msra.mxu0 0.0
        %2147 = vmatprep.subr.mxu0 0.0
        %2148 = vmatpush1.msra.mxu0 0.0
        %2149 = vmatprep.subr.mxu0 0.0
        %2150 = vmatpush1.msra.mxu0 0.0
        %2151 = vmatprep.subr.mxu0 0.0
        %2152 = vmatpush1.msra.mxu0 %v446
        %2153 = vmatprep.subr.mxu0 0.0
        %2154 = vmatpush1.msra.mxu0 %v445
        %2155 = vmatprep.subr.mxu0 0.0
        %2156 = vmatpush2.msra.mxu0 0.0
        %2157 = vmatprep.subr.mxu0 0.0
        %2158 = vmatpush2.msra.mxu0 0.0
        %2159 = vmatprep.subr.mxu0 0.0
        %2160 = vmatpush2.msra.mxu0 0.0
        %2161 = vmatprep.subr.mxu0 0.0
        %2162 = vmatpush2.msra.mxu0 0.0
        %2163 = vmatprep.subr.mxu0 0.0
        %2164 = vmatpush2.msra.mxu0 0.0
        %2165 = vmatprep.subr.mxu0 0.0
        %2166 = vmatpush2.msra.mxu0 0.0
        %2167 = vmatprep.subr.mxu0 0.0
        %2168 = vmatpush2.msra.mxu0 0.0
        %2169 = vmatprep.subr.mxu0 0.0
        %2170 = vmatpush2.msra.mxu0 0.0
        %2171 = vmatprep.subr.mxu0 0.0
        %2172 = vmatpush2.msra.mxu0 0.0
        %2173 = vmatprep.subr.mxu0 0.0
        %2174 = vmatpush2.msra.mxu0 0.0
        %2175 = vmatprep.subr.mxu0 0.0
        %2176 = vmatpush2.msra.mxu0 0.0
        %2177 = vmatprep.subr.mxu0 0.0
        %2178 = vmatpush2.msra.mxu0 0.0
        %2179 = vmatprep.subr.mxu0 0.0
        %2180 = vmatpush2.msra.mxu0 0.0
        %2181 = vmatprep.subr.mxu0 0.0
        %2182 = vmatpush2.msra.mxu0 0.0
        %2183 = vmatprep.subr.mxu0 0.0
        %2184 = vmatpush2.msra.mxu0 0.0
        %2185 = vmatprep.subr.mxu0 0.0
        %2186 = vmatpush2.msra.mxu0 0.0
        %2187 = vmatprep.mubr.f32.mxu0 0.0
        %2188 = vmatmul.mubr.f32.gmra.mxu0 %v2121
        %v2189 = vpop.f32.mrf.mxu0
        %v2190 = vadd.f32 0.0, %v2189
        %v2191 = vpop.f32.mrf.mxu0
        %2192 = vdwg.mxu0
        %v2193 = vlaneseq
        %v2194 = vshrl.u32 %v2193, 7
        %v2195 = vsub.s32 0, %v2194
        %v2196 = vrot.slane %v2190, %v2195
        %v2197 = vsub.f32 %v1891, %v2196
        %v2198 = vsub.f32 %v1896, %v2196
        %v2199 = vsub.f32 %v1901, %v2196
        %v2200 = vsub.f32 %v1906, %v2196
        %v2201 = vsub.f32 %v1911, %v2196
        %v2202 = vsub.f32 %v1916, %v2196
        %v2203 = vsub.f32 %v1921, %v2196
        %v2204 = vsub.f32 %v1926, %v2196
        %v2205 = vsub.f32 %v1931, %v2196
        %v2206 = vsub.f32 %v1936, %v2196
        %v2207 = vsub.f32 %v1941, %v2196
        %v2208 = vsub.f32 %v1946, %v2196
        %v2209 = vsub.f32 %v1951, %v2196
        %v2210 = vsub.f32 %v1956, %v2196
        %v2211 = vsub.f32 %v1961, %v2196
        %v2212 = vsub.f32 %v1966, %v2196
        %v2213 = vsub.f32 %v1971, %v2196
        %v2214 = vsub.f32 %v1976, %v2196
        %v2215 = vsub.f32 %v1981, %v2196
        %v2216 = vsub.f32 %v1986, %v2196
        %v2217 = vsub.f32 %v1991, %v2196
        %v2218 = vsub.f32 %v1996, %v2196
        %v2219 = vsub.f32 %v2001, %v2196
        %v2220 = vsub.f32 %v2006, %v2196
        %v2221 = vsub.f32 %v2011, %v2196
        %v2222 = vsub.f32 %v2016, %v2196
        %v2223 = vsub.f32 %v2021, %v2196
        %v2224 = vsub.f32 %v2026, %v2196
        %v2225 = vsub.f32 %v2031, %v2196
        %v2226 = vsub.f32 %v2036, %v2196
        %v2227 = vsub.f32 %v2041, %v2196
        %v2228 = vsub.f32 %v2046, %v2196
        %v2229 = vmul.f32 %v2197, %v2197
        %v2230 = vmul.f32 %v2198, %v2198
        %v2231 = vmul.f32 %v2199, %v2199
        %v2232 = vmul.f32 %v2200, %v2200
        %v2233 = vmul.f32 %v2201, %v2201
        %v2234 = vmul.f32 %v2202, %v2202
        %v2235 = vmul.f32 %v2203, %v2203
        %v2236 = vmul.f32 %v2204, %v2204
        %v2237 = vmul.f32 %v2205, %v2205
        %v2238 = vmul.f32 %v2206, %v2206
        %v2239 = vmul.f32 %v2207, %v2207
        %v2240 = vmul.f32 %v2208, %v2208
        %v2241 = vmul.f32 %v2209, %v2209
        %v2242 = vmul.f32 %v2210, %v2210
        %v2243 = vmul.f32 %v2211, %v2211
        %v2244 = vmul.f32 %v2212, %v2212
        %v2245 = vmul.f32 %v2213, %v2213
        %v2246 = vmul.f32 %v2214, %v2214
        %v2247 = vmul.f32 %v2215, %v2215
        %v2248 = vmul.f32 %v2216, %v2216
        %v2249 = vmul.f32 %v2217, %v2217
        %v2250 = vmul.f32 %v2218, %v2218
        %v2251 = vmul.f32 %v2219, %v2219
        %v2252 = vmul.f32 %v2220, %v2220
        %v2253 = vmul.f32 %v2221, %v2221
        %v2254 = vmul.f32 %v2222, %v2222
        %v2255 = vmul.f32 %v2223, %v2223
        %v2256 = vmul.f32 %v2224, %v2224
        %v2257 = vmul.f32 %v2225, %v2225
        %v2258 = vmul.f32 %v2226, %v2226
        %v2259 = vmul.f32 %v2227, %v2227
        %v2260 = vmul.f32 %v2228, %v2228
        %v2261 = vsel %vm1552, %v2229, 0.0
        %v2262 = vsel %vm1552, %v2230, 0.0
        %v2263 = vadd.f32 %v2261, %v2262
        %v2264 = vsel %vm1552, %v2231, 0.0
        %v2265 = vadd.f32 %v2263, %v2264
        %v2266 = vsel %vm1552, %v2232, 0.0
        %v2267 = vadd.f32 %v2265, %v2266
        %v2268 = vsel %vm1552, %v2233, 0.0
        %v2269 = vadd.f32 %v2267, %v2268
        %v2270 = vsel %vm1552, %v2234, 0.0
        %v2271 = vadd.f32 %v2269, %v2270
        %v2272 = vsel %vm1552, %v2235, 0.0
        %v2273 = vadd.f32 %v2271, %v2272
        %v2274 = vsel %vm1552, %v2236, 0.0
        %v2275 = vadd.f32 %v2273, %v2274
        %v2276 = vsel %vm1552, %v2237, 0.0
        %v2277 = vadd.f32 %v2275, %v2276
        %v2278 = vsel %vm1552, %v2238, 0.0
        %v2279 = vadd.f32 %v2277, %v2278
        %v2280 = vsel %vm1552, %v2239, 0.0
        %v2281 = vadd.f32 %v2279, %v2280
        %v2282 = vsel %vm1552, %v2240, 0.0
        %v2283 = vadd.f32 %v2281, %v2282
        %v2284 = vsel %vm1552, %v2241, 0.0
        %v2285 = vadd.f32 %v2283, %v2284
        %v2286 = vsel %vm1552, %v2242, 0.0
        %v2287 = vadd.f32 %v2285, %v2286
        %v2288 = vsel %vm1552, %v2243, 0.0
        %v2289 = vadd.f32 %v2287, %v2288
        %v2290 = vsel %vm1552, %v2244, 0.0
        %v2291 = vadd.f32 %v2289, %v2290
        %v2292 = vsel %vm1552, %v2245, 0.0
        %v2293 = vadd.f32 %v2291, %v2292
        %v2294 = vsel %vm1552, %v2246, 0.0
        %v2295 = vadd.f32 %v2293, %v2294
        %v2296 = vsel %vm1552, %v2247, 0.0
        %v2297 = vadd.f32 %v2295, %v2296
        %v2298 = vsel %vm1552, %v2248, 0.0
        %v2299 = vadd.f32 %v2297, %v2298
        %v2300 = vsel %vm1552, %v2249, 0.0
        %v2301 = vadd.f32 %v2299, %v2300
        %v2302 = vsel %vm1552, %v2250, 0.0
        %v2303 = vadd.f32 %v2301, %v2302
        %v2304 = vsel %vm1552, %v2251, 0.0
        %v2305 = vadd.f32 %v2303, %v2304
        %v2306 = vsel %vm1552, %v2252, 0.0
        %v2307 = vadd.f32 %v2305, %v2306
        %v2308 = vsel %vm1552, %v2253, 0.0
        %v2309 = vadd.f32 %v2307, %v2308
        %v2310 = vsel %vm1552, %v2254, 0.0
        %v2311 = vadd.f32 %v2309, %v2310
        %v2312 = vsel %vm1552, %v2255, 0.0
        %v2313 = vadd.f32 %v2311, %v2312
        %v2314 = vsel %vm1552, %v2256, 0.0
        %v2315 = vadd.f32 %v2313, %v2314
        %v2316 = vsel %vm1552, %v2257, 0.0
        %v2317 = vadd.f32 %v2315, %v2316
        %v2318 = vsel %vm1552, %v2258, 0.0
        %v2319 = vadd.f32 %v2317, %v2318
        %v2320 = vsel %vm1552, %v2259, 0.0
        %v2321 = vadd.f32 %v2319, %v2320
        %v2322 = vsel %vm1552, %v2260, 0.0
        %v2323 = vadd.f32 %v2321, %v2322
        %v2324 = vrot.slane %v2323, 4
        %v2325 = vadd.f32 %v2323, %v2324
        %v2326 = vrot.slane %v2325, 2
        %v2327 = vadd.f32 %v2325, %v2326
        %v2328 = vrot.slane %v2327, 1
        %v2329 = vadd.f32 %v2327, %v2328
        %v2330 = vmul.f32 %v2329, %v2118
        %v2332 = vsel %vm1552, %v2330, 0
        %2334 = vmatprep.subr.mxu0 0.0
        %2335 = vmatpush1.msra.mxu0 0.0
        %2336 = vmatprep.subr.mxu0 0.0
        %2337 = vmatpush1.msra.mxu0 0.0
        %2338 = vmatprep.subr.mxu0 0.0
        %2339 = vmatpush1.msra.mxu0 0.0
        %2340 = vmatprep.subr.mxu0 0.0
        %2341 = vmatpush1.msra.mxu0 0.0
        %2342 = vmatprep.subr.mxu0 0.0
        %2343 = vmatpush1.msra.mxu0 0.0
        %2344 = vmatprep.subr.mxu0 0.0
        %2345 = vmatpush1.msra.mxu0 0.0
        %2346 = vmatprep.subr.mxu0 0.0
        %2347 = vmatpush1.msra.mxu0 0.0
        %2348 = vmatprep.subr.mxu0 0.0
        %2349 = vmatpush1.msra.mxu0 0.0
        %2350 = vmatprep.subr.mxu0 0.0
        %2351 = vmatpush1.msra.mxu0 0.0
        %2352 = vmatprep.subr.mxu0 0.0
        %2353 = vmatpush1.msra.mxu0 0.0
        %2354 = vmatprep.subr.mxu0 0.0
        %2355 = vmatpush1.msra.mxu0 0.0
        %2356 = vmatprep.subr.mxu0 0.0
        %2357 = vmatpush1.msra.mxu0 0.0
        %2358 = vmatprep.subr.mxu0 0.0
        %2359 = vmatpush1.msra.mxu0 0.0
        %2360 = vmatprep.subr.mxu0 0.0
        %2361 = vmatpush1.msra.mxu0 0.0
        %2362 = vmatprep.subr.mxu0 0.0
        %2363 = vmatpush1.msra.mxu0 %v446
        %2364 = vmatprep.subr.mxu0 0.0
        %2365 = vmatpush1.msra.mxu0 %v445
        %2366 = vmatprep.subr.mxu0 0.0
        %2367 = vmatpush2.msra.mxu0 0.0
        %2368 = vmatprep.subr.mxu0 0.0
        %2369 = vmatpush2.msra.mxu0 0.0
        %2370 = vmatprep.subr.mxu0 0.0
        %2371 = vmatpush2.msra.mxu0 0.0
        %2372 = vmatprep.subr.mxu0 0.0
        %2373 = vmatpush2.msra.mxu0 0.0
        %2374 = vmatprep.subr.mxu0 0.0
        %2375 = vmatpush2.msra.mxu0 0.0
        %2376 = vmatprep.subr.mxu0 0.0
        %2377 = vmatpush2.msra.mxu0 0.0
        %2378 = vmatprep.subr.mxu0 0.0
        %2379 = vmatpush2.msra.mxu0 0.0
        %2380 = vmatprep.subr.mxu0 0.0
        %2381 = vmatpush2.msra.mxu0 0.0
        %2382 = vmatprep.subr.mxu0 0.0
        %2383 = vmatpush2.msra.mxu0 0.0
        %2384 = vmatprep.subr.mxu0 0.0
        %2385 = vmatpush2.msra.mxu0 0.0
        %2386 = vmatprep.subr.mxu0 0.0
        %2387 = vmatpush2.msra.mxu0 0.0
        %2388 = vmatprep.subr.mxu0 0.0
        %2389 = vmatpush2.msra.mxu0 0.0
        %2390 = vmatprep.subr.mxu0 0.0
        %2391 = vmatpush2.msra.mxu0 0.0
        %2392 = vmatprep.subr.mxu0 0.0
        %2393 = vmatpush2.msra.mxu0 0.0
        %2394 = vmatprep.subr.mxu0 0.0
        %2395 = vmatpush2.msra.mxu0 0.0
        %2396 = vmatprep.subr.mxu0 0.0
        %2397 = vmatpush2.msra.mxu0 0.0
        %2398 = vmatprep.mubr.f32.mxu0 0.0
        %2399 = vmatmul.mubr.f32.gmra.mxu0 %v2332
        %v2400 = vpop.f32.mrf.mxu0
        %v2401 = vadd.f32 1e-05, %v2400
        %v2402 = vpop.f32.mrf.mxu0
        %2403 = vdwg.mxu0
        %v2404 = vrsqrt.pop %v2401
        %v2405 = vmul.f32 %v2404, %v447
        %v2406 = vlaneseq
        %v2407 = vshrl.u32 %v2406, 7
        %v2408 = vsub.s32 0, %v2407
        %v2409 = vrot.slane %v2405, %v2408
        %v2410 = vmul.f32 %v2197, %v2409
        %v2411 = vmul.f32 %v2198, %v2409
        %v2412 = vmul.f32 %v2199, %v2409
        %v2413 = vmul.f32 %v2200, %v2409
        %v2414 = vmul.f32 %v2201, %v2409
        %v2415 = vmul.f32 %v2202, %v2409
        %v2416 = vmul.f32 %v2203, %v2409
        %v2417 = vmul.f32 %v2204, %v2409
        %v2418 = vmul.f32 %v2205, %v2409
        %v2419 = vmul.f32 %v2206, %v2409
        %v2420 = vmul.f32 %v2207, %v2409
        %v2421 = vmul.f32 %v2208, %v2409
        %v2422 = vmul.f32 %v2209, %v2409
        %v2423 = vmul.f32 %v2210, %v2409
        %v2424 = vmul.f32 %v2211, %v2409
        %v2425 = vmul.f32 %v2212, %v2409
        %v2426 = vmul.f32 %v2213, %v2409
        %v2427 = vmul.f32 %v2214, %v2409
        %v2428 = vmul.f32 %v2215, %v2409
        %v2429 = vmul.f32 %v2216, %v2409
        %v2430 = vmul.f32 %v2217, %v2409
        %v2431 = vmul.f32 %v2218, %v2409
        %v2432 = vmul.f32 %v2219, %v2409
        %v2433 = vmul.f32 %v2220, %v2409
        %v2434 = vmul.f32 %v2221, %v2409
        %v2435 = vmul.f32 %v2222, %v2409
        %v2436 = vmul.f32 %v2223, %v2409
        %v2437 = vmul.f32 %v2224, %v2409
        %v2438 = vmul.f32 %v2225, %v2409
        %v2439 = vmul.f32 %v2226, %v2409
        %v2440 = vmul.f32 %v2227, %v2409
        %v2441 = vmul.f32 %v2228, %v2409
        %v2443 = vlaneseq
        %v2444 = vshrl.u32 %v2443, 7
        %v2445 = vsub.s32 0, %v2444
        %v2446 = vrot.slane %v448, %v2445
        %v2448 = vadd.f32 %v2410, %v2446
        %v2449 = vadd.f32 %v2411, %v2446
        %v2450 = vadd.f32 %v2412, %v2446
        %v2451 = vadd.f32 %v2413, %v2446
        %v2452 = vadd.f32 %v2414, %v2446
        %v2453 = vadd.f32 %v2415, %v2446
        %v2454 = vadd.f32 %v2416, %v2446
        %v2455 = vadd.f32 %v2417, %v2446
        %v2456 = vadd.f32 %v2418, %v2446
        %v2457 = vadd.f32 %v2419, %v2446
        %v2458 = vadd.f32 %v2420, %v2446
        %v2459 = vadd.f32 %v2421, %v2446
        %v2460 = vadd.f32 %v2422, %v2446
        %v2461 = vadd.f32 %v2423, %v2446
        %v2462 = vadd.f32 %v2424, %v2446
        %v2463 = vadd.f32 %v2425, %v2446
        %v2464 = vadd.f32 %v2426, %v2446
        %v2465 = vadd.f32 %v2427, %v2446
        %v2466 = vadd.f32 %v2428, %v2446
        %v2467 = vadd.f32 %v2429, %v2446
        %v2468 = vadd.f32 %v2430, %v2446
        %v2469 = vadd.f32 %v2431, %v2446
        %v2470 = vadd.f32 %v2432, %v2446
        %v2471 = vadd.f32 %v2433, %v2446
        %v2472 = vadd.f32 %v2434, %v2446
        %v2473 = vadd.f32 %v2435, %v2446
        %v2474 = vadd.f32 %v2436, %v2446
        %v2475 = vadd.f32 %v2437, %v2446
        %v2476 = vadd.f32 %v2438, %v2446
        %v2477 = vadd.f32 %v2439, %v2446
        %v2478 = vadd.f32 %v2440, %v2446
        %v2479 = vadd.f32 %v2441, %v2446
        %v2480 = vmax.f32 %v2448, 0.0
        %v2481 = vmax.f32 %v2449, 0.0
        %v2482 = vmax.f32 %v2450, 0.0
        %v2483 = vmax.f32 %v2451, 0.0
        %v2484 = vmax.f32 %v2452, 0.0
        %v2485 = vmax.f32 %v2453, 0.0
        %v2486 = vmax.f32 %v2454, 0.0
        %v2487 = vmax.f32 %v2455, 0.0
        %v2488 = vmax.f32 %v2456, 0.0
        %v2489 = vmax.f32 %v2457, 0.0
        %v2490 = vmax.f32 %v2458, 0.0
        %v2491 = vmax.f32 %v2459, 0.0
        %v2492 = vmax.f32 %v2460, 0.0
        %v2493 = vmax.f32 %v2461, 0.0
        %v2494 = vmax.f32 %v2462, 0.0
        %v2495 = vmax.f32 %v2463, 0.0
        %v2496 = vmax.f32 %v2464, 0.0
        %v2497 = vmax.f32 %v2465, 0.0
        %v2498 = vmax.f32 %v2466, 0.0
        %v2499 = vmax.f32 %v2467, 0.0
        %v2500 = vmax.f32 %v2468, 0.0
        %v2501 = vmax.f32 %v2469, 0.0
        %v2502 = vmax.f32 %v2470, 0.0
        %v2503 = vmax.f32 %v2471, 0.0
        %v2504 = vmax.f32 %v2472, 0.0
        %v2505 = vmax.f32 %v2473, 0.0
        %v2506 = vmax.f32 %v2474, 0.0
        %v2507 = vmax.f32 %v2475, 0.0
        %v2508 = vmax.f32 %v2476, 0.0
        %v2509 = vmax.f32 %v2477, 0.0
        %v2510 = vmax.f32 %v2478, 0.0
        %v2511 = vmax.f32 %v2479, 0.0
        %2512 = vst.msk [vmem:[#allocation2] sm:$0xff] %vm1552, 0.0
        %2513 = vst.msk [vmem:[#allocation2 + $0x8] sm:$0xff] %vm1552, 0.0
        %vm2514 = vcmask 123904
        %2515 = vst.msk [vmem:[#allocation2 + $0x10] sm:$0x3] %vm2514, 0.0
        %2516 = vst.msk [vmem:[#allocation2 + $0x18] sm:$0xff] %vm1552, 0.0
        %2517 = vst.msk [vmem:[#allocation2 + $0x20] sm:$0xff] %vm1552, 0.0
        %2518 = vst.msk [vmem:[#allocation2 + $0x28] sm:$0x3] %vm2514, 0.0
        %2519 = vst.msk [vmem:[#allocation2 + $0x30] sm:$0xff] %vm1552, 0.0
        %2520 = vst.msk [vmem:[#allocation2 + $0x38] sm:$0xff] %vm1552, 0.0
        %2521 = vst.msk [vmem:[#allocation2 + $0x40] sm:$0x3] %vm2514, 0.0
        %2522 = vst.msk [vmem:[#allocation2 + $0x48] sm:$0xff] %vm1552, 0.0
        %2523 = vst.msk [vmem:[#allocation2 + $0x50] sm:$0xff] %vm1552, 0.0
        %2524 = vst.msk [vmem:[#allocation2 + $0x58] sm:$0x3] %vm2514, 0.0
        %2525 = vst.msk [vmem:[#allocation2 + $0x60] sm:$0xff] %vm1552, 0.0
        %2526 = vst.msk [vmem:[#allocation2 + $0x68] sm:$0xff] %vm1552, 0.0
        %2527 = vst.msk [vmem:[#allocation2 + $0x70] sm:$0x3] %vm2514, 0.0
        %2528 = vst.msk [vmem:[#allocation2 + $0x78] sm:$0xff] %vm1552, 0.0
        %2529 = vst.msk [vmem:[#allocation2 + $0x80] sm:$0xff] %vm1552, 0.0
        %2530 = vst.msk [vmem:[#allocation2 + $0x88] sm:$0x3] %vm2514, 0.0
        %2531 = vst.msk [vmem:[#allocation2 + $0x90] sm:$0xff] %vm1552, 0.0
        %2532 = vst.msk [vmem:[#allocation2 + $0x98] sm:$0xff] %vm1552, 0.0
        %2533 = vst.msk [vmem:[#allocation2 + $0xa0] sm:$0x3] %vm2514, 0.0
        %2534 = vst.msk [vmem:[#allocation2 + $0xa8] sm:$0xff] %vm1552, 0.0
        %2535 = vst.msk [vmem:[#allocation2 + $0xb0] sm:$0xff] %vm1552, 0.0
        %2536 = vst.msk [vmem:[#allocation2 + $0xb8] sm:$0x3] %vm2514, 0.0
        %2537 = vst.msk [vmem:[#allocation2 + $0xc0] sm:$0xff] %vm1552, 0.0
        %2538 = vst.msk [vmem:[#allocation2 + $0xc8] sm:$0xff] %vm1552, 0.0
        %2539 = vst.msk [vmem:[#allocation2 + $0xd0] sm:$0x3] %vm2514, 0.0
        %2540 = vst.msk [vmem:[#allocation2 + $0xd8] sm:$0xff] %vm1552, 0.0
        %2541 = vst.msk [vmem:[#allocation2 + $0xe0] sm:$0xff] %vm1552, 0.0
        %2542 = vst.msk [vmem:[#allocation2 + $0xe8] sm:$0x3] %vm2514, 0.0
        %2543 = vst.msk [vmem:[#allocation2 + $0xf0] sm:$0xff] %vm1552, 0.0
        %2544 = vst.msk [vmem:[#allocation2 + $0xf8] sm:$0xff] %vm1552, 0.0
        %2545 = vst.msk [vmem:[#allocation2 + $0x100] sm:$0x3] %vm2514, 0.0
        %2546 = vst.msk [vmem:[#allocation2 + $0x108] sm:$0xff] %vm1552, 0.0
        %2547 = vst.msk [vmem:[#allocation2 + $0x110] sm:$0xff] %vm1552, 0.0
        %2548 = vst.msk [vmem:[#allocation2 + $0x118] sm:$0x3] %vm2514, 0.0
        %2549 = vst.msk [vmem:[#allocation2 + $0x120] sm:$0xff] %vm1552, 0.0
        %2550 = vst.msk [vmem:[#allocation2 + $0x128] sm:$0xff] %vm1552, 0.0
        %2551 = vst.msk [vmem:[#allocation2 + $0x130] sm:$0x3] %vm2514, 0.0
        %2552 = vst.msk [vmem:[#allocation2 + $0x138] sm:$0xff] %vm1552, 0.0
        %2553 = vst.msk [vmem:[#allocation2 + $0x140] sm:$0xff] %vm1552, 0.0
        %2554 = vst.msk [vmem:[#allocation2 + $0x148] sm:$0x3] %vm2514, 0.0
        %2555 = vst.msk [vmem:[#allocation2 + $0x150] sm:$0xff] %vm1552, 0.0
        %2556 = vst.msk [vmem:[#allocation2 + $0x158] sm:$0xff] %vm1552, 0.0
        %2557 = vst.msk [vmem:[#allocation2 + $0x160] sm:$0x3] %vm2514, 0.0
        %2558 = vst.msk [vmem:[#allocation2 + $0x168] sm:$0xff] %vm1552, 0.0
        %2559 = vst.msk [vmem:[#allocation2 + $0x170] sm:$0xff] %vm1552, 0.0
        %2560 = vst.msk [vmem:[#allocation2 + $0x178] sm:$0x3] %vm2514, 0.0
        %2561 = vst.msk [vmem:[#allocation2 + $0x180] sm:$0xff] %vm1552, 0.0
        %2562 = vst.msk [vmem:[#allocation2 + $0x188] sm:$0xff] %vm1552, 0.0
        %2563 = vst.msk [vmem:[#allocation2 + $0x190] sm:$0x3] %vm2514, 0.0
        %2564 = vst.msk [vmem:[#allocation2 + $0x198] sm:$0xff] %vm1552, 0.0
        %2565 = vst.msk [vmem:[#allocation2 + $0x1a0] sm:$0xff] %vm1552, 0.0
        %2566 = vst.msk [vmem:[#allocation2 + $0x1a8] sm:$0x3] %vm2514, 0.0
        %s2567 = scalar_lea.vmem [#allocation2], 24
        %2568 = vst.msk [vmem:[%s2567 + $0x1] sm:$0xff] %vm1552, %v2480
        %2569 = vst.msk [vmem:[%s2567 + $0x9] sm:$0xff] %vm1552, %v2481
        %2570 = vst.msk [vmem:[%s2567 + $0x19] sm:$0xff] %vm1552, %v2482
        %2571 = vst.msk [vmem:[%s2567 + $0x21] sm:$0xff] %vm1552, %v2483
        %2572 = vst.msk [vmem:[%s2567 + $0x31] sm:$0xff] %vm1552, %v2484
        %2573 = vst.msk [vmem:[%s2567 + $0x39] sm:$0xff] %vm1552, %v2485
        %2574 = vst.msk [vmem:[%s2567 + $0x49] sm:$0xff] %vm1552, %v2486
        %2575 = vst.msk [vmem:[%s2567 + $0x51] sm:$0xff] %vm1552, %v2487
        %2576 = vst.msk [vmem:[%s2567 + $0x61] sm:$0xff] %vm1552, %v2488
        %2577 = vst.msk [vmem:[%s2567 + $0x69] sm:$0xff] %vm1552, %v2489
        %2578 = vst.msk [vmem:[%s2567 + $0x79] sm:$0xff] %vm1552, %v2490
        %2579 = vst.msk [vmem:[%s2567 + $0x81] sm:$0xff] %vm1552, %v2491
        %2580 = vst.msk [vmem:[%s2567 + $0x91] sm:$0xff] %vm1552, %v2492
        %2581 = vst.msk [vmem:[%s2567 + $0x99] sm:$0xff] %vm1552, %v2493
        %2582 = vst.msk [vmem:[%s2567 + $0xa9] sm:$0xff] %vm1552, %v2494
        %2583 = vst.msk [vmem:[%s2567 + $0xb1] sm:$0xff] %vm1552, %v2495
        %2584 = vst.msk [vmem:[%s2567 + $0xc1] sm:$0xff] %vm1552, %v2496
        %2585 = vst.msk [vmem:[%s2567 + $0xc9] sm:$0xff] %vm1552, %v2497
        %2586 = vst.msk [vmem:[%s2567 + $0xd9] sm:$0xff] %vm1552, %v2498
        %2587 = vst.msk [vmem:[%s2567 + $0xe1] sm:$0xff] %vm1552, %v2499
        %2588 = vst.msk [vmem:[%s2567 + $0xf1] sm:$0xff] %vm1552, %v2500
        %2589 = vst.msk [vmem:[%s2567 + $0xf9] sm:$0xff] %vm1552, %v2501
        %2590 = vst.msk [vmem:[%s2567 + $0x109] sm:$0xff] %vm1552, %v2502
        %2591 = vst.msk [vmem:[%s2567 + $0x111] sm:$0xff] %vm1552, %v2503
        %2592 = vst.msk [vmem:[%s2567 + $0x121] sm:$0xff] %vm1552, %v2504
        %2593 = vst.msk [vmem:[%s2567 + $0x129] sm:$0xff] %vm1552, %v2505
        %2594 = vst.msk [vmem:[%s2567 + $0x139] sm:$0xff] %vm1552, %v2506
        %2595 = vst.msk [vmem:[%s2567 + $0x141] sm:$0xff] %vm1552, %v2507
        %2596 = vst.msk [vmem:[%s2567 + $0x151] sm:$0xff] %vm1552, %v2508
        %2597 = vst.msk [vmem:[%s2567 + $0x159] sm:$0xff] %vm1552, %v2509
        %2598 = vst.msk [vmem:[%s2567 + $0x169] sm:$0xff] %vm1552, %v2510
        %2599 = vst.msk [vmem:[%s2567 + $0x171] sm:$0xff] %vm1552, %v2511
        %v2600 = vld [vmem:[#allocation2] sm:$0xff]
        %v2601 = vld [vmem:[#allocation2 + $0x8] sm:$0xff]
        %v2602 = vld [vmem:[#allocation2 + $0x10] sm:$0x3]
        %v2603 = vld [vmem:[#allocation2 + $0x18] sm:$0xff]
        %v2604 = vld [vmem:[#allocation2 + $0x20] sm:$0xff]
        %v2605 = vld [vmem:[#allocation2 + $0x28] sm:$0x3]
        %v2606 = vld [vmem:[#allocation2 + $0x30] sm:$0xff]
        %v2607 = vld [vmem:[#allocation2 + $0x38] sm:$0xff]
        %v2608 = vld [vmem:[#allocation2 + $0x40] sm:$0x3]
        %v2609 = vld [vmem:[#allocation2 + $0x48] sm:$0xff]
        %v2610 = vld [vmem:[#allocation2 + $0x50] sm:$0xff]
        %v2611 = vld [vmem:[#allocation2 + $0x58] sm:$0x3]
        %v2612 = vld [vmem:[#allocation2 + $0x60] sm:$0xff]
        %v2613 = vld [vmem:[#allocation2 + $0x68] sm:$0xff]
        %v2614 = vld [vmem:[#allocation2 + $0x70] sm:$0x3]
        %v2615 = vld [vmem:[#allocation2 + $0x78] sm:$0xff]
        %v2616 = vld [vmem:[#allocation2 + $0x80] sm:$0xff]
        %v2617 = vld [vmem:[#allocation2 + $0x88] sm:$0x3]
        %v2618 = vld [vmem:[#allocation2 + $0x90] sm:$0xff]
        %v2619 = vld [vmem:[#allocation2 + $0x98] sm:$0xff]
        %v2620 = vld [vmem:[#allocation2 + $0xa0] sm:$0x3]
        %v2621 = vld [vmem:[#allocation2 + $0xa8] sm:$0xff]
        %v2622 = vld [vmem:[#allocation2 + $0xb0] sm:$0xff]
        %v2623 = vld [vmem:[#allocation2 + $0xb8] sm:$0x3]
        %v2624 = vld [vmem:[#allocation2 + $0xc0] sm:$0xff]
        %v2625 = vld [vmem:[#allocation2 + $0xc8] sm:$0xff]
        %v2626 = vld [vmem:[#allocation2 + $0xd0] sm:$0x3]
        %v2627 = vld [vmem:[#allocation2 + $0xd8] sm:$0xff]
        %v2628 = vld [vmem:[#allocation2 + $0xe0] sm:$0xff]
        %v2629 = vld [vmem:[#allocation2 + $0xe8] sm:$0x3]
        %v2630 = vld [vmem:[#allocation2 + $0xf0] sm:$0xff]
        %v2631 = vld [vmem:[#allocation2 + $0xf8] sm:$0xff]
        %v2632 = vld [vmem:[#allocation2 + $0x100] sm:$0x3]
        %v2633 = vld [vmem:[#allocation2 + $0x108] sm:$0xff]
        %v2634 = vld [vmem:[#allocation2 + $0x110] sm:$0xff]
        %v2635 = vld [vmem:[#allocation2 + $0x118] sm:$0x3]
        %v2636 = vld [vmem:[#allocation2 + $0x120] sm:$0xff]
        %v2637 = vld [vmem:[#allocation2 + $0x128] sm:$0xff]
        %v2638 = vld [vmem:[#allocation2 + $0x130] sm:$0x3]
        %v2639 = vld [vmem:[#allocation2 + $0x138] sm:$0xff]
        %v2640 = vld [vmem:[#allocation2 + $0x140] sm:$0xff]
        %v2641 = vld [vmem:[#allocation2 + $0x148] sm:$0x3]
        %v2642 = vld [vmem:[#allocation2 + $0x150] sm:$0xff]
        %v2643 = vld [vmem:[#allocation2 + $0x158] sm:$0xff]
        %v2644 = vld [vmem:[#allocation2 + $0x160] sm:$0x3]
        %v2645 = vld [vmem:[#allocation2 + $0x168] sm:$0xff]
        %v2646 = vld [vmem:[#allocation2 + $0x170] sm:$0xff]
        %v2647 = vld [vmem:[#allocation2 + $0x178] sm:$0x3]
        %v2648 = vld [vmem:[#allocation2 + $0x180] sm:$0xff]
        %v2649 = vld [vmem:[#allocation2 + $0x188] sm:$0xff]
        %v2650 = vld [vmem:[#allocation2 + $0x190] sm:$0x3]
        %v2651 = vld [vmem:[#allocation2 + $0x198] sm:$0xff]
        %v2652 = vld [vmem:[#allocation2 + $0x1a0] sm:$0xff]
        %v2653 = vld [vmem:[#allocation2 + $0x1a8] sm:$0x3]
        %v2654 = vld [vmem:[%s6] sm:$0xff]
        %v2655 = vld [vmem:[%s6 + $0x8] sm:$0xff]
        %v2656 = vld [vmem:[%s6 + $0x10] sm:$0xff]
        %v2657 = vld [vmem:[%s6 + $0x18] sm:$0xff]
        %v2658 = vld [vmem:[%s6 + $0x20] sm:$0xff]
        %v2659 = vld [vmem:[%s6 + $0x28] sm:$0xff]
        %v2660 = vld [vmem:[%s6 + $0x30] sm:$0xff]
        %v2661 = vld [vmem:[%s6 + $0x38] sm:$0xff]
        %v2662 = vld [vmem:[%s6 + $0x40] sm:$0xff]
        %v2663 = vld [vmem:[%s6 + $0x48] sm:$0xff]
        %v2664 = vld [vmem:[%s6 + $0x50] sm:$0xff]
        %v2665 = vld [vmem:[%s6 + $0x58] sm:$0xff]
        %v2666 = vld [vmem:[%s6 + $0x60] sm:$0xff]
        %v2667 = vld [vmem:[%s6 + $0x68] sm:$0xff]
        %v2668 = vld [vmem:[%s6 + $0x70] sm:$0xff]
        %v2669 = vld [vmem:[%s6 + $0x78] sm:$0xff]
        %v2670 = vld [vmem:[%s6 + $0x80] sm:$0xff]
        %v2671 = vld [vmem:[%s6 + $0x88] sm:$0xff]
        %v2672 = vld [vmem:[%s7] sm:$0x1]
        %v2673 = vld [vmem:[%s8] sm:$0xff]
        %v2674 = vld [vmem:[%s8 + $0x8] sm:$0xff]
        %v2675 = vld [vmem:[%s9] sm:$0x1]
        %v2676 = vld [vmem:[%s10] sm:$0x1]
        %v2725 = vrot.slane %v2600, 1
        %v2726 = vrot.slane %v2601, 1
        %v2727 = vsel %vm497, %v2725, %v2726
        %v2728 = vrot.slane %v2602, 1
        %v2729 = vsel %vm497, %v2726, %v2728
        %v2730 = vrot.slane %v2603, 1
        %v2731 = vrot.slane %v2604, 1
        %v2732 = vsel %vm497, %v2730, %v2731
        %v2733 = vrot.slane %v2605, 1
        %v2734 = vsel %vm497, %v2731, %v2733
        %v2735 = vrot.slane %v2606, 1
        %v2736 = vrot.slane %v2607, 1
        %v2737 = vsel %vm497, %v2735, %v2736
        %v2738 = vrot.slane %v2608, 1
        %v2739 = vsel %vm497, %v2736, %v2738
        %v2740 = vrot.slane %v2609, 1
        %v2741 = vrot.slane %v2610, 1
        %v2742 = vsel %vm497, %v2740, %v2741
        %v2743 = vrot.slane %v2611, 1
        %v2744 = vsel %vm497, %v2741, %v2743
        %v2745 = vrot.slane %v2612, 1
        %v2746 = vrot.slane %v2613, 1
        %v2747 = vsel %vm497, %v2745, %v2746
        %v2748 = vrot.slane %v2614, 1
        %v2749 = vsel %vm497, %v2746, %v2748
        %v2750 = vrot.slane %v2615, 1
        %v2751 = vrot.slane %v2616, 1
        %v2752 = vsel %vm497, %v2750, %v2751
        %v2753 = vrot.slane %v2617, 1
        %v2754 = vsel %vm497, %v2751, %v2753
        %v2755 = vrot.slane %v2618, 1
        %v2756 = vrot.slane %v2619, 1
        %v2757 = vsel %vm497, %v2755, %v2756
        %v2758 = vrot.slane %v2620, 1
        %v2759 = vsel %vm497, %v2756, %v2758
        %v2760 = vrot.slane %v2621, 1
        %v2761 = vrot.slane %v2622, 1
        %v2762 = vsel %vm497, %v2760, %v2761
        %v2763 = vrot.slane %v2623, 1
        %v2764 = vsel %vm497, %v2761, %v2763
        %v2765 = vrot.slane %v2624, 1
        %v2766 = vrot.slane %v2625, 1
        %v2767 = vsel %vm497, %v2765, %v2766
        %v2768 = vrot.slane %v2626, 1
        %v2769 = vsel %vm497, %v2766, %v2768
        %v2770 = vrot.slane %v2627, 1
        %v2771 = vrot.slane %v2628, 1
        %v2772 = vsel %vm497, %v2770, %v2771
        %v2773 = vrot.slane %v2629, 1
        %v2774 = vsel %vm497, %v2771, %v2773
        %v2775 = vrot.slane %v2630, 1
        %v2776 = vrot.slane %v2631, 1
        %v2777 = vsel %vm497, %v2775, %v2776
        %v2778 = vrot.slane %v2632, 1
        %v2779 = vsel %vm497, %v2776, %v2778
        %v2780 = vrot.slane %v2633, 1
        %v2781 = vrot.slane %v2634, 1
        %v2782 = vsel %vm497, %v2780, %v2781
        %v2783 = vrot.slane %v2635, 1
        %v2784 = vsel %vm497, %v2781, %v2783
        %v2785 = vrot.slane %v2636, 1
        %v2786 = vrot.slane %v2637, 1
        %v2787 = vsel %vm497, %v2785, %v2786
        %v2788 = vrot.slane %v2638, 1
        %v2789 = vsel %vm497, %v2786, %v2788
        %v2790 = vrot.slane %v2639, 1
        %v2791 = vrot.slane %v2640, 1
        %v2792 = vsel %vm497, %v2790, %v2791
        %v2793 = vrot.slane %v2641, 1
        %v2794 = vsel %vm497, %v2791, %v2793
        %v2795 = vrot.slane %v2642, 1
        %v2796 = vrot.slane %v2643, 1
        %v2797 = vsel %vm497, %v2795, %v2796
        %v2798 = vrot.slane %v2644, 1
        %v2799 = vsel %vm497, %v2796, %v2798
        %v2800 = vrot.slane %v2645, 1
        %v2801 = vrot.slane %v2646, 1
        %v2802 = vsel %vm497, %v2800, %v2801
        %v2803 = vrot.slane %v2647, 1
        %v2804 = vsel %vm497, %v2801, %v2803
        %v2805 = vrot.slane %v2600, 2
        %v2806 = vrot.slane %v2601, 2
        %v2807 = vsel %vm578, %v2805, %v2806
        %v2808 = vrot.slane %v2602, 2
        %v2809 = vsel %vm578, %v2806, %v2808
        %v2810 = vrot.slane %v2603, 2
        %v2811 = vrot.slane %v2604, 2
        %v2812 = vsel %vm578, %v2810, %v2811
        %v2813 = vrot.slane %v2605, 2
        %v2814 = vsel %vm578, %v2811, %v2813
        %v2815 = vrot.slane %v2606, 2
        %v2816 = vrot.slane %v2607, 2
        %v2817 = vsel %vm578, %v2815, %v2816
        %v2818 = vrot.slane %v2608, 2
        %v2819 = vsel %vm578, %v2816, %v2818
        %v2820 = vrot.slane %v2609, 2
        %v2821 = vrot.slane %v2610, 2
        %v2822 = vsel %vm578, %v2820, %v2821
        %v2823 = vrot.slane %v2611, 2
        %v2824 = vsel %vm578, %v2821, %v2823
        %v2825 = vrot.slane %v2612, 2
        %v2826 = vrot.slane %v2613, 2
        %v2827 = vsel %vm578, %v2825, %v2826
        %v2828 = vrot.slane %v2614, 2
        %v2829 = vsel %vm578, %v2826, %v2828
        %v2830 = vrot.slane %v2615, 2
        %v2831 = vrot.slane %v2616, 2
        %v2832 = vsel %vm578, %v2830, %v2831
        %v2833 = vrot.slane %v2617, 2
        %v2834 = vsel %vm578, %v2831, %v2833
        %v2835 = vrot.slane %v2618, 2
        %v2836 = vrot.slane %v2619, 2
        %v2837 = vsel %vm578, %v2835, %v2836
        %v2838 = vrot.slane %v2620, 2
        %v2839 = vsel %vm578, %v2836, %v2838
        %v2840 = vrot.slane %v2621, 2
        %v2841 = vrot.slane %v2622, 2
        %v2842 = vsel %vm578, %v2840, %v2841
        %v2843 = vrot.slane %v2623, 2
        %v2844 = vsel %vm578, %v2841, %v2843
        %v2845 = vrot.slane %v2624, 2
        %v2846 = vrot.slane %v2625, 2
        %v2847 = vsel %vm578, %v2845, %v2846
        %v2848 = vrot.slane %v2626, 2
        %v2849 = vsel %vm578, %v2846, %v2848
        %v2850 = vrot.slane %v2627, 2
        %v2851 = vrot.slane %v2628, 2
        %v2852 = vsel %vm578, %v2850, %v2851
        %v2853 = vrot.slane %v2629, 2
        %v2854 = vsel %vm578, %v2851, %v2853
        %v2855 = vrot.slane %v2630, 2
        %v2856 = vrot.slane %v2631, 2
        %v2857 = vsel %vm578, %v2855, %v2856
        %v2858 = vrot.slane %v2632, 2
        %v2859 = vsel %vm578, %v2856, %v2858
        %v2860 = vrot.slane %v2633, 2
        %v2861 = vrot.slane %v2634, 2
        %v2862 = vsel %vm578, %v2860, %v2861
        %v2863 = vrot.slane %v2635, 2
        %v2864 = vsel %vm578, %v2861, %v2863
        %v2865 = vrot.slane %v2636, 2
        %v2866 = vrot.slane %v2637, 2
        %v2867 = vsel %vm578, %v2865, %v2866
        %v2868 = vrot.slane %v2638, 2
        %v2869 = vsel %vm578, %v2866, %v2868
        %v2870 = vrot.slane %v2639, 2
        %v2871 = vrot.slane %v2640, 2
        %v2872 = vsel %vm578, %v2870, %v2871
        %v2873 = vrot.slane %v2641, 2
        %v2874 = vsel %vm578, %v2871, %v2873
        %v2875 = vrot.slane %v2642, 2
        %v2876 = vrot.slane %v2643, 2
        %v2877 = vsel %vm578, %v2875, %v2876
        %v2878 = vrot.slane %v2644, 2
        %v2879 = vsel %vm578, %v2876, %v2878
        %v2880 = vrot.slane %v2645, 2
        %v2881 = vrot.slane %v2646, 2
        %v2882 = vsel %vm578, %v2880, %v2881
        %v2883 = vrot.slane %v2647, 2
        %v2884 = vsel %vm578, %v2881, %v2883
        %v2888 = vrot.slane %v2648, 1
        %v2889 = vrot.slane %v2649, 1
        %v2890 = vsel %vm497, %v2888, %v2889
        %v2891 = vrot.slane %v2650, 1
        %v2892 = vsel %vm497, %v2889, %v2891
        %v2893 = vrot.slane %v2648, 2
        %v2894 = vrot.slane %v2649, 2
        %v2895 = vsel %vm578, %v2893, %v2894
        %v2896 = vrot.slane %v2650, 2
        %v2897 = vsel %vm578, %v2894, %v2896
        %v2901 = vrot.slane %v2651, 1
        %v2902 = vrot.slane %v2652, 1
        %v2903 = vsel %vm497, %v2901, %v2902
        %v2904 = vrot.slane %v2653, 1
        %v2905 = vsel %vm497, %v2902, %v2904
        %v2906 = vrot.slane %v2651, 2
        %v2907 = vrot.slane %v2652, 2
        %v2908 = vsel %vm578, %v2906, %v2907
        %v2909 = vrot.slane %v2653, 2
        %v2910 = vsel %vm578, %v2907, %v2909
        %2911 = vrot.lane.b32.xlu0 %v2727, 16
        %v2912 = vpop.permute.xlu0 %2911
        %2913 = vrot.lane.b32.xlu0 %v2729, 16
        %v2914 = vpop.permute.xlu0 %2913
        %2915 = vrot.lane.b32.xlu0 %v2732, 16
        %v2916 = vpop.permute.xlu0 %2915
        %2917 = vrot.lane.b32.xlu0 %v2734, 16
        %v2918 = vpop.permute.xlu0 %2917
        %2919 = vrot.lane.b32.xlu0 %v2737, 16
        %v2920 = vpop.permute.xlu0 %2919
        %2921 = vrot.lane.b32.xlu0 %v2739, 16
        %v2922 = vpop.permute.xlu0 %2921
        %2923 = vrot.lane.b32.xlu0 %v2742, 16
        %v2924 = vpop.permute.xlu0 %2923
        %2925 = vrot.lane.b32.xlu0 %v2744, 16
        %v2926 = vpop.permute.xlu0 %2925
        %2927 = vrot.lane.b32.xlu0 %v2747, 16
        %v2928 = vpop.permute.xlu0 %2927
        %2929 = vrot.lane.b32.xlu0 %v2749, 16
        %v2930 = vpop.permute.xlu0 %2929
        %2931 = vrot.lane.b32.xlu0 %v2752, 16
        %v2932 = vpop.permute.xlu0 %2931
        %2933 = vrot.lane.b32.xlu0 %v2754, 16
        %v2934 = vpop.permute.xlu0 %2933
        %2935 = vrot.lane.b32.xlu0 %v2757, 16
        %v2936 = vpop.permute.xlu0 %2935
        %2937 = vrot.lane.b32.xlu0 %v2759, 16
        %v2938 = vpop.permute.xlu0 %2937
        %2939 = vrot.lane.b32.xlu0 %v2762, 16
        %v2940 = vpop.permute.xlu0 %2939
        %2941 = vrot.lane.b32.xlu0 %v2764, 16
        %v2942 = vpop.permute.xlu0 %2941
        %2943 = vrot.lane.b32.xlu0 %v2767, 16
        %v2944 = vpop.permute.xlu0 %2943
        %2945 = vrot.lane.b32.xlu0 %v2769, 16
        %v2946 = vpop.permute.xlu0 %2945
        %2947 = vrot.lane.b32.xlu0 %v2772, 16
        %v2948 = vpop.permute.xlu0 %2947
        %2949 = vrot.lane.b32.xlu0 %v2774, 16
        %v2950 = vpop.permute.xlu0 %2949
        %2951 = vrot.lane.b32.xlu0 %v2777, 16
        %v2952 = vpop.permute.xlu0 %2951
        %2953 = vrot.lane.b32.xlu0 %v2779, 16
        %v2954 = vpop.permute.xlu0 %2953
        %2955 = vrot.lane.b32.xlu0 %v2782, 16
        %v2956 = vpop.permute.xlu0 %2955
        %2957 = vrot.lane.b32.xlu0 %v2784, 16
        %v2958 = vpop.permute.xlu0 %2957
        %2959 = vrot.lane.b32.xlu0 %v2787, 16
        %v2960 = vpop.permute.xlu0 %2959
        %2961 = vrot.lane.b32.xlu0 %v2789, 16
        %v2962 = vpop.permute.xlu0 %2961
        %2963 = vrot.lane.b32.xlu0 %v2792, 16
        %v2964 = vpop.permute.xlu0 %2963
        %2965 = vrot.lane.b32.xlu0 %v2794, 16
        %v2966 = vpop.permute.xlu0 %2965
        %2967 = vrot.lane.b32.xlu0 %v2797, 16
        %v2968 = vpop.permute.xlu0 %2967
        %2969 = vrot.lane.b32.xlu0 %v2799, 16
        %v2970 = vpop.permute.xlu0 %2969
        %2971 = vrot.lane.b32.xlu0 %v2802, 16
        %v2972 = vpop.permute.xlu0 %2971
        %2973 = vrot.lane.b32.xlu0 %v2804, 16
        %v2974 = vpop.permute.xlu0 %2973
        %3007 = vrot.lane.b32.xlu0 %v2807, 32
        %v3008 = vpop.permute.xlu0 %3007
        %3009 = vrot.lane.b32.xlu0 %v2809, 32
        %v3010 = vpop.permute.xlu0 %3009
        %3011 = vrot.lane.b32.xlu0 %v2812, 32
        %v3012 = vpop.permute.xlu0 %3011
        %3013 = vrot.lane.b32.xlu0 %v2814, 32
        %v3014 = vpop.permute.xlu0 %3013
        %3015 = vrot.lane.b32.xlu0 %v2817, 32
        %v3016 = vpop.permute.xlu0 %3015
        %3017 = vrot.lane.b32.xlu0 %v2819, 32
        %v3018 = vpop.permute.xlu0 %3017
        %3019 = vrot.lane.b32.xlu0 %v2822, 32
        %v3020 = vpop.permute.xlu0 %3019
        %3021 = vrot.lane.b32.xlu0 %v2824, 32
        %v3022 = vpop.permute.xlu0 %3021
        %3023 = vrot.lane.b32.xlu0 %v2827, 32
        %v3024 = vpop.permute.xlu0 %3023
        %3025 = vrot.lane.b32.xlu0 %v2829, 32
        %v3026 = vpop.permute.xlu0 %3025
        %3027 = vrot.lane.b32.xlu0 %v2832, 32
        %v3028 = vpop.permute.xlu0 %3027
        %3029 = vrot.lane.b32.xlu0 %v2834, 32
        %v3030 = vpop.permute.xlu0 %3029
        %3031 = vrot.lane.b32.xlu0 %v2837, 32
        %v3032 = vpop.permute.xlu0 %3031
        %3033 = vrot.lane.b32.xlu0 %v2839, 32
        %v3034 = vpop.permute.xlu0 %3033
        %3035 = vrot.lane.b32.xlu0 %v2842, 32
        %v3036 = vpop.permute.xlu0 %3035
        %3037 = vrot.lane.b32.xlu0 %v2844, 32
        %v3038 = vpop.permute.xlu0 %3037
        %3039 = vrot.lane.b32.xlu0 %v2847, 32
        %v3040 = vpop.permute.xlu0 %3039
        %3041 = vrot.lane.b32.xlu0 %v2849, 32
        %v3042 = vpop.permute.xlu0 %3041
        %3043 = vrot.lane.b32.xlu0 %v2852, 32
        %v3044 = vpop.permute.xlu0 %3043
        %3045 = vrot.lane.b32.xlu0 %v2854, 32
        %v3046 = vpop.permute.xlu0 %3045
        %3047 = vrot.lane.b32.xlu0 %v2857, 32
        %v3048 = vpop.permute.xlu0 %3047
        %3049 = vrot.lane.b32.xlu0 %v2859, 32
        %v3050 = vpop.permute.xlu0 %3049
        %3051 = vrot.lane.b32.xlu0 %v2862, 32
        %v3052 = vpop.permute.xlu0 %3051
        %3053 = vrot.lane.b32.xlu0 %v2864, 32
        %v3054 = vpop.permute.xlu0 %3053
        %3055 = vrot.lane.b32.xlu0 %v2867, 32
        %v3056 = vpop.permute.xlu0 %3055
        %3057 = vrot.lane.b32.xlu0 %v2869, 32
        %v3058 = vpop.permute.xlu0 %3057
        %3059 = vrot.lane.b32.xlu0 %v2872, 32
        %v3060 = vpop.permute.xlu0 %3059
        %3061 = vrot.lane.b32.xlu0 %v2874, 32
        %v3062 = vpop.permute.xlu0 %3061
        %3063 = vrot.lane.b32.xlu0 %v2877, 32
        %v3064 = vpop.permute.xlu0 %3063
        %3065 = vrot.lane.b32.xlu0 %v2879, 32
        %v3066 = vpop.permute.xlu0 %3065
        %3067 = vrot.lane.b32.xlu0 %v2882, 32
        %v3068 = vpop.permute.xlu0 %3067
        %3069 = vrot.lane.b32.xlu0 %v2884, 32
        %v3070 = vpop.permute.xlu0 %3069
        %3103 = vrot.lane.b32.xlu0 %v2603, 48
        %v3104 = vpop.permute.xlu0 %3103
        %3105 = vrot.lane.b32.xlu0 %v2604, 48
        %v3106 = vpop.permute.xlu0 %3105
        %3107 = vrot.lane.b32.xlu0 %v2606, 48
        %v3108 = vpop.permute.xlu0 %3107
        %3109 = vrot.lane.b32.xlu0 %v2607, 48
        %v3110 = vpop.permute.xlu0 %3109
        %3111 = vrot.lane.b32.xlu0 %v2609, 48
        %v3112 = vpop.permute.xlu0 %3111
        %3113 = vrot.lane.b32.xlu0 %v2610, 48
        %v3114 = vpop.permute.xlu0 %3113
        %3115 = vrot.lane.b32.xlu0 %v2612, 48
        %v3116 = vpop.permute.xlu0 %3115
        %3117 = vrot.lane.b32.xlu0 %v2613, 48
        %v3118 = vpop.permute.xlu0 %3117
        %3119 = vrot.lane.b32.xlu0 %v2615, 48
        %v3120 = vpop.permute.xlu0 %3119
        %3121 = vrot.lane.b32.xlu0 %v2616, 48
        %v3122 = vpop.permute.xlu0 %3121
        %3123 = vrot.lane.b32.xlu0 %v2618, 48
        %v3124 = vpop.permute.xlu0 %3123
        %3125 = vrot.lane.b32.xlu0 %v2619, 48
        %v3126 = vpop.permute.xlu0 %3125
        %3127 = vrot.lane.b32.xlu0 %v2621, 48
        %v3128 = vpop.permute.xlu0 %3127
        %3129 = vrot.lane.b32.xlu0 %v2622, 48
        %v3130 = vpop.permute.xlu0 %3129
        %3131 = vrot.lane.b32.xlu0 %v2624, 48
        %v3132 = vpop.permute.xlu0 %3131
        %3133 = vrot.lane.b32.xlu0 %v2625, 48
        %v3134 = vpop.permute.xlu0 %3133
        %3135 = vrot.lane.b32.xlu0 %v2627, 48
        %v3136 = vpop.permute.xlu0 %3135
        %3137 = vrot.lane.b32.xlu0 %v2628, 48
        %v3138 = vpop.permute.xlu0 %3137
        %3139 = vrot.lane.b32.xlu0 %v2630, 48
        %v3140 = vpop.permute.xlu0 %3139
        %3141 = vrot.lane.b32.xlu0 %v2631, 48
        %v3142 = vpop.permute.xlu0 %3141
        %3143 = vrot.lane.b32.xlu0 %v2633, 48
        %v3144 = vpop.permute.xlu0 %3143
        %3145 = vrot.lane.b32.xlu0 %v2634, 48
        %v3146 = vpop.permute.xlu0 %3145
        %3147 = vrot.lane.b32.xlu0 %v2636, 48
        %v3148 = vpop.permute.xlu0 %3147
        %3149 = vrot.lane.b32.xlu0 %v2637, 48
        %v3150 = vpop.permute.xlu0 %3149
        %3151 = vrot.lane.b32.xlu0 %v2639, 48
        %v3152 = vpop.permute.xlu0 %3151
        %3153 = vrot.lane.b32.xlu0 %v2640, 48
        %v3154 = vpop.permute.xlu0 %3153
        %3155 = vrot.lane.b32.xlu0 %v2642, 48
        %v3156 = vpop.permute.xlu0 %3155
        %3157 = vrot.lane.b32.xlu0 %v2643, 48
        %v3158 = vpop.permute.xlu0 %3157
        %3159 = vrot.lane.b32.xlu0 %v2645, 48
        %v3160 = vpop.permute.xlu0 %3159
        %3161 = vrot.lane.b32.xlu0 %v2646, 48
        %v3162 = vpop.permute.xlu0 %3161
        %3163 = vrot.lane.b32.xlu0 %v2648, 48
        %v3164 = vpop.permute.xlu0 %3163
        %3165 = vrot.lane.b32.xlu0 %v2649, 48
        %v3166 = vpop.permute.xlu0 %3165
        %3199 = vrot.lane.b32.xlu0 %v2732, 64
        %v3200 = vpop.permute.xlu0 %3199
        %3201 = vrot.lane.b32.xlu0 %v2734, 64
        %v3202 = vpop.permute.xlu0 %3201
        %3203 = vrot.lane.b32.xlu0 %v2737, 64
        %v3204 = vpop.permute.xlu0 %3203
        %3205 = vrot.lane.b32.xlu0 %v2739, 64
        %v3206 = vpop.permute.xlu0 %3205
        %3207 = vrot.lane.b32.xlu0 %v2742, 64
        %v3208 = vpop.permute.xlu0 %3207
        %3209 = vrot.lane.b32.xlu0 %v2744, 64
        %v3210 = vpop.permute.xlu0 %3209
        %3211 = vrot.lane.b32.xlu0 %v2747, 64
        %v3212 = vpop.permute.xlu0 %3211
        %3213 = vrot.lane.b32.xlu0 %v2749, 64
        %v3214 = vpop.permute.xlu0 %3213
        %3215 = vrot.lane.b32.xlu0 %v2752, 64
        %v3216 = vpop.permute.xlu0 %3215
        %3217 = vrot.lane.b32.xlu0 %v2754, 64
        %v3218 = vpop.permute.xlu0 %3217
        %3219 = vrot.lane.b32.xlu0 %v2757, 64
        %v3220 = vpop.permute.xlu0 %3219
        %3221 = vrot.lane.b32.xlu0 %v2759, 64
        %v3222 = vpop.permute.xlu0 %3221
        %3223 = vrot.lane.b32.xlu0 %v2762, 64
        %v3224 = vpop.permute.xlu0 %3223
        %3225 = vrot.lane.b32.xlu0 %v2764, 64
        %v3226 = vpop.permute.xlu0 %3225
        %3227 = vrot.lane.b32.xlu0 %v2767, 64
        %v3228 = vpop.permute.xlu0 %3227
        %3229 = vrot.lane.b32.xlu0 %v2769, 64
        %v3230 = vpop.permute.xlu0 %3229
        %3231 = vrot.lane.b32.xlu0 %v2772, 64
        %v3232 = vpop.permute.xlu0 %3231
        %3233 = vrot.lane.b32.xlu0 %v2774, 64
        %v3234 = vpop.permute.xlu0 %3233
        %3235 = vrot.lane.b32.xlu0 %v2777, 64
        %v3236 = vpop.permute.xlu0 %3235
        %3237 = vrot.lane.b32.xlu0 %v2779, 64
        %v3238 = vpop.permute.xlu0 %3237
        %3239 = vrot.lane.b32.xlu0 %v2782, 64
        %v3240 = vpop.permute.xlu0 %3239
        %3241 = vrot.lane.b32.xlu0 %v2784, 64
        %v3242 = vpop.permute.xlu0 %3241
        %3243 = vrot.lane.b32.xlu0 %v2787, 64
        %v3244 = vpop.permute.xlu0 %3243
        %3245 = vrot.lane.b32.xlu0 %v2789, 64
        %v3246 = vpop.permute.xlu0 %3245
        %3247 = vrot.lane.b32.xlu0 %v2792, 64
        %v3248 = vpop.permute.xlu0 %3247
        %3249 = vrot.lane.b32.xlu0 %v2794, 64
        %v3250 = vpop.permute.xlu0 %3249
        %3251 = vrot.lane.b32.xlu0 %v2797, 64
        %v3252 = vpop.permute.xlu0 %3251
        %3253 = vrot.lane.b32.xlu0 %v2799, 64
        %v3254 = vpop.permute.xlu0 %3253
        %3255 = vrot.lane.b32.xlu0 %v2802, 64
        %v3256 = vpop.permute.xlu0 %3255
        %3257 = vrot.lane.b32.xlu0 %v2804, 64
        %v3258 = vpop.permute.xlu0 %3257
        %3259 = vrot.lane.b32.xlu0 %v2890, 64
        %v3260 = vpop.permute.xlu0 %3259
        %3261 = vrot.lane.b32.xlu0 %v2892, 64
        %v3262 = vpop.permute.xlu0 %3261
        %3295 = vrot.lane.b32.xlu0 %v2812, 80
        %v3296 = vpop.permute.xlu0 %3295
        %3297 = vrot.lane.b32.xlu0 %v2814, 80
        %v3298 = vpop.permute.xlu0 %3297
        %3299 = vrot.lane.b32.xlu0 %v2817, 80
        %v3300 = vpop.permute.xlu0 %3299
        %3301 = vrot.lane.b32.xlu0 %v2819, 80
        %v3302 = vpop.permute.xlu0 %3301
        %3303 = vrot.lane.b32.xlu0 %v2822, 80
        %v3304 = vpop.permute.xlu0 %3303
        %3305 = vrot.lane.b32.xlu0 %v2824, 80
        %v3306 = vpop.permute.xlu0 %3305
        %3307 = vrot.lane.b32.xlu0 %v2827, 80
        %v3308 = vpop.permute.xlu0 %3307
        %3309 = vrot.lane.b32.xlu0 %v2829, 80
        %v3310 = vpop.permute.xlu0 %3309
        %3311 = vrot.lane.b32.xlu0 %v2832, 80
        %v3312 = vpop.permute.xlu0 %3311
        %3313 = vrot.lane.b32.xlu0 %v2834, 80
        %v3314 = vpop.permute.xlu0 %3313
        %3315 = vrot.lane.b32.xlu0 %v2837, 80
        %v3316 = vpop.permute.xlu0 %3315
        %3317 = vrot.lane.b32.xlu0 %v2839, 80
        %v3318 = vpop.permute.xlu0 %3317
        %3319 = vrot.lane.b32.xlu0 %v2842, 80
        %v3320 = vpop.permute.xlu0 %3319
        %3321 = vrot.lane.b32.xlu0 %v2844, 80
        %v3322 = vpop.permute.xlu0 %3321
        %3323 = vrot.lane.b32.xlu0 %v2847, 80
        %v3324 = vpop.permute.xlu0 %3323
        %3325 = vrot.lane.b32.xlu0 %v2849, 80
        %v3326 = vpop.permute.xlu0 %3325
        %3327 = vrot.lane.b32.xlu0 %v2852, 80
        %v3328 = vpop.permute.xlu0 %3327
        %3329 = vrot.lane.b32.xlu0 %v2854, 80
        %v3330 = vpop.permute.xlu0 %3329
        %3331 = vrot.lane.b32.xlu0 %v2857, 80
        %v3332 = vpop.permute.xlu0 %3331
        %3333 = vrot.lane.b32.xlu0 %v2859, 80
        %v3334 = vpop.permute.xlu0 %3333
        %3335 = vrot.lane.b32.xlu0 %v2862, 80
        %v3336 = vpop.permute.xlu0 %3335
        %3337 = vrot.lane.b32.xlu0 %v2864, 80
        %v3338 = vpop.permute.xlu0 %3337
        %3339 = vrot.lane.b32.xlu0 %v2867, 80
        %v3340 = vpop.permute.xlu0 %3339
        %3341 = vrot.lane.b32.xlu0 %v2869, 80
        %v3342 = vpop.permute.xlu0 %3341
        %3343 = vrot.lane.b32.xlu0 %v2872, 80
        %v3344 = vpop.permute.xlu0 %3343
        %3345 = vrot.lane.b32.xlu0 %v2874, 80
        %v3346 = vpop.permute.xlu0 %3345
        %3347 = vrot.lane.b32.xlu0 %v2877, 80
        %v3348 = vpop.permute.xlu0 %3347
        %3349 = vrot.lane.b32.xlu0 %v2879, 80
        %v3350 = vpop.permute.xlu0 %3349
        %3351 = vrot.lane.b32.xlu0 %v2882, 80
        %v3352 = vpop.permute.xlu0 %3351
        %3353 = vrot.lane.b32.xlu0 %v2884, 80
        %v3354 = vpop.permute.xlu0 %3353
        %3355 = vrot.lane.b32.xlu0 %v2895, 80
        %v3356 = vpop.permute.xlu0 %3355
        %3357 = vrot.lane.b32.xlu0 %v2897, 80
        %v3358 = vpop.permute.xlu0 %3357
        %3391 = vrot.lane.b32.xlu0 %v2606, 96
        %v3392 = vpop.permute.xlu0 %3391
        %3393 = vrot.lane.b32.xlu0 %v2607, 96
        %v3394 = vpop.permute.xlu0 %3393
        %3395 = vrot.lane.b32.xlu0 %v2609, 96
        %v3396 = vpop.permute.xlu0 %3395
        %3397 = vrot.lane.b32.xlu0 %v2610, 96
        %v3398 = vpop.permute.xlu0 %3397
        %3399 = vrot.lane.b32.xlu0 %v2612, 96
        %v3400 = vpop.permute.xlu0 %3399
        %3401 = vrot.lane.b32.xlu0 %v2613, 96
        %v3402 = vpop.permute.xlu0 %3401
        %3403 = vrot.lane.b32.xlu0 %v2615, 96
        %v3404 = vpop.permute.xlu0 %3403
        %3405 = vrot.lane.b32.xlu0 %v2616, 96
        %v3406 = vpop.permute.xlu0 %3405
        %3407 = vrot.lane.b32.xlu0 %v2618, 96
        %v3408 = vpop.permute.xlu0 %3407
        %3409 = vrot.lane.b32.xlu0 %v2619, 96
        %v3410 = vpop.permute.xlu0 %3409
        %3411 = vrot.lane.b32.xlu0 %v2621, 96
        %v3412 = vpop.permute.xlu0 %3411
        %3413 = vrot.lane.b32.xlu0 %v2622, 96
        %v3414 = vpop.permute.xlu0 %3413
        %3415 = vrot.lane.b32.xlu0 %v2624, 96
        %v3416 = vpop.permute.xlu0 %3415
        %3417 = vrot.lane.b32.xlu0 %v2625, 96
        %v3418 = vpop.permute.xlu0 %3417
        %3419 = vrot.lane.b32.xlu0 %v2627, 96
        %v3420 = vpop.permute.xlu0 %3419
        %3421 = vrot.lane.b32.xlu0 %v2628, 96
        %v3422 = vpop.permute.xlu0 %3421
        %3423 = vrot.lane.b32.xlu0 %v2630, 96
        %v3424 = vpop.permute.xlu0 %3423
        %3425 = vrot.lane.b32.xlu0 %v2631, 96
        %v3426 = vpop.permute.xlu0 %3425
        %3427 = vrot.lane.b32.xlu0 %v2633, 96
        %v3428 = vpop.permute.xlu0 %3427
        %3429 = vrot.lane.b32.xlu0 %v2634, 96
        %v3430 = vpop.permute.xlu0 %3429
        %3431 = vrot.lane.b32.xlu0 %v2636, 96
        %v3432 = vpop.permute.xlu0 %3431
        %3433 = vrot.lane.b32.xlu0 %v2637, 96
        %v3434 = vpop.permute.xlu0 %3433
        %3435 = vrot.lane.b32.xlu0 %v2639, 96
        %v3436 = vpop.permute.xlu0 %3435
        %3437 = vrot.lane.b32.xlu0 %v2640, 96
        %v3438 = vpop.permute.xlu0 %3437
        %3439 = vrot.lane.b32.xlu0 %v2642, 96
        %v3440 = vpop.permute.xlu0 %3439
        %3441 = vrot.lane.b32.xlu0 %v2643, 96
        %v3442 = vpop.permute.xlu0 %3441
        %3443 = vrot.lane.b32.xlu0 %v2645, 96
        %v3444 = vpop.permute.xlu0 %3443
        %3445 = vrot.lane.b32.xlu0 %v2646, 96
        %v3446 = vpop.permute.xlu0 %3445
        %3447 = vrot.lane.b32.xlu0 %v2648, 96
        %v3448 = vpop.permute.xlu0 %3447
        %3449 = vrot.lane.b32.xlu0 %v2649, 96
        %v3450 = vpop.permute.xlu0 %3449
        %3451 = vrot.lane.b32.xlu0 %v2651, 96
        %v3452 = vpop.permute.xlu0 %3451
        %3453 = vrot.lane.b32.xlu0 %v2652, 96
        %v3454 = vpop.permute.xlu0 %3453
        %3487 = vrot.lane.b32.xlu0 %v2737, 112
        %v3488 = vpop.permute.xlu0 %3487
        %3489 = vrot.lane.b32.xlu0 %v2739, 112
        %v3490 = vpop.permute.xlu0 %3489
        %3491 = vrot.lane.b32.xlu0 %v2742, 112
        %v3492 = vpop.permute.xlu0 %3491
        %3493 = vrot.lane.b32.xlu0 %v2744, 112
        %v3494 = vpop.permute.xlu0 %3493
        %3495 = vrot.lane.b32.xlu0 %v2747, 112
        %v3496 = vpop.permute.xlu0 %3495
        %3497 = vrot.lane.b32.xlu0 %v2749, 112
        %v3498 = vpop.permute.xlu0 %3497
        %3499 = vrot.lane.b32.xlu0 %v2752, 112
        %v3500 = vpop.permute.xlu0 %3499
        %3501 = vrot.lane.b32.xlu0 %v2754, 112
        %v3502 = vpop.permute.xlu0 %3501
        %3503 = vrot.lane.b32.xlu0 %v2757, 112
        %v3504 = vpop.permute.xlu0 %3503
        %3505 = vrot.lane.b32.xlu0 %v2759, 112
        %v3506 = vpop.permute.xlu0 %3505
        %3507 = vrot.lane.b32.xlu0 %v2762, 112
        %v3508 = vpop.permute.xlu0 %3507
        %3509 = vrot.lane.b32.xlu0 %v2764, 112
        %v3510 = vpop.permute.xlu0 %3509
        %3511 = vrot.lane.b32.xlu0 %v2767, 112
        %v3512 = vpop.permute.xlu0 %3511
        %3513 = vrot.lane.b32.xlu0 %v2769, 112
        %v3514 = vpop.permute.xlu0 %3513
        %3515 = vrot.lane.b32.xlu0 %v2772, 112
        %v3516 = vpop.permute.xlu0 %3515
        %3517 = vrot.lane.b32.xlu0 %v2774, 112
        %v3518 = vpop.permute.xlu0 %3517
        %3519 = vrot.lane.b32.xlu0 %v2777, 112
        %v3520 = vpop.permute.xlu0 %3519
        %3521 = vrot.lane.b32.xlu0 %v2779, 112
        %v3522 = vpop.permute.xlu0 %3521
        %3523 = vrot.lane.b32.xlu0 %v2782, 112
        %v3524 = vpop.permute.xlu0 %3523
        %3525 = vrot.lane.b32.xlu0 %v2784, 112
        %v3526 = vpop.permute.xlu0 %3525
        %3527 = vrot.lane.b32.xlu0 %v2787, 112
        %v3528 = vpop.permute.xlu0 %3527
        %3529 = vrot.lane.b32.xlu0 %v2789, 112
        %v3530 = vpop.permute.xlu0 %3529
        %3531 = vrot.lane.b32.xlu0 %v2792, 112
        %v3532 = vpop.permute.xlu0 %3531
        %3533 = vrot.lane.b32.xlu0 %v2794, 112
        %v3534 = vpop.permute.xlu0 %3533
        %3535 = vrot.lane.b32.xlu0 %v2797, 112
        %v3536 = vpop.permute.xlu0 %3535
        %3537 = vrot.lane.b32.xlu0 %v2799, 112
        %v3538 = vpop.permute.xlu0 %3537
        %3539 = vrot.lane.b32.xlu0 %v2802, 112
        %v3540 = vpop.permute.xlu0 %3539
        %3541 = vrot.lane.b32.xlu0 %v2804, 112
        %v3542 = vpop.permute.xlu0 %3541
        %3543 = vrot.lane.b32.xlu0 %v2890, 112
        %v3544 = vpop.permute.xlu0 %3543
        %3545 = vrot.lane.b32.xlu0 %v2892, 112
        %v3546 = vpop.permute.xlu0 %3545
        %3547 = vrot.lane.b32.xlu0 %v2903, 112
        %v3548 = vpop.permute.xlu0 %3547
        %3549 = vrot.lane.b32.xlu0 %v2905, 112
        %v3550 = vpop.permute.xlu0 %3549
        %v3583 = vsel %vm1552, %v2600, %v2912
        %v3584 = vsel %vm1552, %v2601, %v2914
        %v3585 = vsel %vm1552, %v2603, %v2916
        %v3586 = vsel %vm1552, %v2604, %v2918
        %v3587 = vsel %vm1552, %v2606, %v2920
        %v3588 = vsel %vm1552, %v2607, %v2922
        %v3589 = vsel %vm1552, %v2609, %v2924
        %v3590 = vsel %vm1552, %v2610, %v2926
        %v3591 = vsel %vm1552, %v2612, %v2928
        %v3592 = vsel %vm1552, %v2613, %v2930
        %v3593 = vsel %vm1552, %v2615, %v2932
        %v3594 = vsel %vm1552, %v2616, %v2934
        %v3595 = vsel %vm1552, %v2618, %v2936
        %v3596 = vsel %vm1552, %v2619, %v2938
        %v3597 = vsel %vm1552, %v2621, %v2940
        %v3598 = vsel %vm1552, %v2622, %v2942
        %v3599 = vsel %vm1552, %v2624, %v2944
        %v3600 = vsel %vm1552, %v2625, %v2946
        %v3601 = vsel %vm1552, %v2627, %v2948
        %v3602 = vsel %vm1552, %v2628, %v2950
        %v3603 = vsel %vm1552, %v2630, %v2952
        %v3604 = vsel %vm1552, %v2631, %v2954
        %v3605 = vsel %vm1552, %v2633, %v2956
        %v3606 = vsel %vm1552, %v2634, %v2958
        %v3607 = vsel %vm1552, %v2636, %v2960
        %v3608 = vsel %vm1552, %v2637, %v2962
        %v3609 = vsel %vm1552, %v2639, %v2964
        %v3610 = vsel %vm1552, %v2640, %v2966
        %v3611 = vsel %vm1552, %v2642, %v2968
        %v3612 = vsel %vm1552, %v2643, %v2970
        %v3613 = vsel %vm1552, %v2645, %v2972
        %v3614 = vsel %vm1552, %v2646, %v2974
        %v3615 = vsel %vm1684, %v3583, %v3008
        %v3616 = vsel %vm1684, %v3584, %v3010
        %v3617 = vsel %vm1684, %v3585, %v3012
        %v3618 = vsel %vm1684, %v3586, %v3014
        %v3619 = vsel %vm1684, %v3587, %v3016
        %v3620 = vsel %vm1684, %v3588, %v3018
        %v3621 = vsel %vm1684, %v3589, %v3020
        %v3622 = vsel %vm1684, %v3590, %v3022
        %v3623 = vsel %vm1684, %v3591, %v3024
        %v3624 = vsel %vm1684, %v3592, %v3026
        %v3625 = vsel %vm1684, %v3593, %v3028
        %v3626 = vsel %vm1684, %v3594, %v3030
        %v3627 = vsel %vm1684, %v3595, %v3032
        %v3628 = vsel %vm1684, %v3596, %v3034
        %v3629 = vsel %vm1684, %v3597, %v3036
        %v3630 = vsel %vm1684, %v3598, %v3038
        %v3631 = vsel %vm1684, %v3599, %v3040
        %v3632 = vsel %vm1684, %v3600, %v3042
        %v3633 = vsel %vm1684, %v3601, %v3044
        %v3634 = vsel %vm1684, %v3602, %v3046
        %v3635 = vsel %vm1684, %v3603, %v3048
        %v3636 = vsel %vm1684, %v3604, %v3050
        %v3637 = vsel %vm1684, %v3605, %v3052
        %v3638 = vsel %vm1684, %v3606, %v3054
        %v3639 = vsel %vm1684, %v3607, %v3056
        %v3640 = vsel %vm1684, %v3608, %v3058
        %v3641 = vsel %vm1684, %v3609, %v3060
        %v3642 = vsel %vm1684, %v3610, %v3062
        %v3643 = vsel %vm1684, %v3611, %v3064
        %v3644 = vsel %vm1684, %v3612, %v3066
        %v3645 = vsel %vm1684, %v3613, %v3068
        %v3646 = vsel %vm1684, %v3614, %v3070
        %vm3647 = vcmask 392192
        %v3648 = vsel %vm3647, %v3615, %v3104
        %v3649 = vsel %vm3647, %v3616, %v3106
        %v3650 = vsel %vm3647, %v3617, %v3108
        %v3651 = vsel %vm3647, %v3618, %v3110
        %v3652 = vsel %vm3647, %v3619, %v3112
        %v3653 = vsel %vm3647, %v3620, %v3114
        %v3654 = vsel %vm3647, %v3621, %v3116
        %v3655 = vsel %vm3647, %v3622, %v3118
        %v3656 = vsel %vm3647, %v3623, %v3120
        %v3657 = vsel %vm3647, %v3624, %v3122
        %v3658 = vsel %vm3647, %v3625, %v3124
        %v3659 = vsel %vm3647, %v3626, %v3126
        %v3660 = vsel %vm3647, %v3627, %v3128
        %v3661 = vsel %vm3647, %v3628, %v3130
        %v3662 = vsel %vm3647, %v3629, %v3132
        %v3663 = vsel %vm3647, %v3630, %v3134
        %v3664 = vsel %vm3647, %v3631, %v3136
        %v3665 = vsel %vm3647, %v3632, %v3138
        %v3666 = vsel %vm3647, %v3633, %v3140
        %v3667 = vsel %vm3647, %v3634, %v3142
        %v3668 = vsel %vm3647, %v3635, %v3144
        %v3669 = vsel %vm3647, %v3636, %v3146
        %v3670 = vsel %vm3647, %v3637, %v3148
        %v3671 = vsel %vm3647, %v3638, %v3150
        %v3672 = vsel %vm3647, %v3639, %v3152
        %v3673 = vsel %vm3647, %v3640, %v3154
        %v3674 = vsel %vm3647, %v3641, %v3156
        %v3675 = vsel %vm3647, %v3642, %v3158
        %v3676 = vsel %vm3647, %v3643, %v3160
        %v3677 = vsel %vm3647, %v3644, %v3162
        %v3678 = vsel %vm3647, %v3645, %v3164
        %v3679 = vsel %vm3647, %v3646, %v3166
        %vm3680 = vcmask 523264
        %v3681 = vsel %vm3680, %v3648, %v3200
        %v3682 = vsel %vm3680, %v3649, %v3202
        %v3683 = vsel %vm3680, %v3650, %v3204
        %v3684 = vsel %vm3680, %v3651, %v3206
        %v3685 = vsel %vm3680, %v3652, %v3208
        %v3686 = vsel %vm3680, %v3653, %v3210
        %v3687 = vsel %vm3680, %v3654, %v3212
        %v3688 = vsel %vm3680, %v3655, %v3214
        %v3689 = vsel %vm3680, %v3656, %v3216
        %v3690 = vsel %vm3680, %v3657, %v3218
        %v3691 = vsel %vm3680, %v3658, %v3220
        %v3692 = vsel %vm3680, %v3659, %v3222
        %v3693 = vsel %vm3680, %v3660, %v3224
        %v3694 = vsel %vm3680, %v3661, %v3226
        %v3695 = vsel %vm3680, %v3662, %v3228
        %v3696 = vsel %vm3680, %v3663, %v3230
        %v3697 = vsel %vm3680, %v3664, %v3232
        %v3698 = vsel %vm3680, %v3665, %v3234
        %v3699 = vsel %vm3680, %v3666, %v3236
        %v3700 = vsel %vm3680, %v3667, %v3238
        %v3701 = vsel %vm3680, %v3668, %v3240
        %v3702 = vsel %vm3680, %v3669, %v3242
        %v3703 = vsel %vm3680, %v3670, %v3244
        %v3704 = vsel %vm3680, %v3671, %v3246
        %v3705 = vsel %vm3680, %v3672, %v3248
        %v3706 = vsel %vm3680, %v3673, %v3250
        %v3707 = vsel %vm3680, %v3674, %v3252
        %v3708 = vsel %vm3680, %v3675, %v3254
        %v3709 = vsel %vm3680, %v3676, %v3256
        %v3710 = vsel %vm3680, %v3677, %v3258
        %v3711 = vsel %vm3680, %v3678, %v3260
        %v3712 = vsel %vm3680, %v3679, %v3262
        %vm3713 = vcmask 654336
        %v3714 = vsel %vm3713, %v3681, %v3296
        %v3715 = vsel %vm3713, %v3682, %v3298
        %v3716 = vsel %vm3713, %v3683, %v3300
        %v3717 = vsel %vm3713, %v3684, %v3302
        %v3718 = vsel %vm3713, %v3685, %v3304
        %v3719 = vsel %vm3713, %v3686, %v3306
        %v3720 = vsel %vm3713, %v3687, %v3308
        %v3721 = vsel %vm3713, %v3688, %v3310
        %v3722 = vsel %vm3713, %v3689, %v3312
        %v3723 = vsel %vm3713, %v3690, %v3314
        %v3724 = vsel %vm3713, %v3691, %v3316
        %v3725 = vsel %vm3713, %v3692, %v3318
        %v3726 = vsel %vm3713, %v3693, %v3320
        %v3727 = vsel %vm3713, %v3694, %v3322
        %v3728 = vsel %vm3713, %v3695, %v3324
        %v3729 = vsel %vm3713, %v3696, %v3326
        %v3730 = vsel %vm3713, %v3697, %v3328
        %v3731 = vsel %vm3713, %v3698, %v3330
        %v3732 = vsel %vm3713, %v3699, %v3332
        %v3733 = vsel %vm3713, %v3700, %v3334
        %v3734 = vsel %vm3713, %v3701, %v3336
        %v3735 = vsel %vm3713, %v3702, %v3338
        %v3736 = vsel %vm3713, %v3703, %v3340
        %v3737 = vsel %vm3713, %v3704, %v3342
        %v3738 = vsel %vm3713, %v3705, %v3344
        %v3739 = vsel %vm3713, %v3706, %v3346
        %v3740 = vsel %vm3713, %v3707, %v3348
        %v3741 = vsel %vm3713, %v3708, %v3350
        %v3742 = vsel %vm3713, %v3709, %v3352
        %v3743 = vsel %vm3713, %v3710, %v3354
        %v3744 = vsel %vm3713, %v3711, %v3356
        %v3745 = vsel %vm3713, %v3712, %v3358
        %vm3746 = vcmask 785408
        %v3747 = vsel %vm3746, %v3714, %v3392
        %v3748 = vsel %vm3746, %v3715, %v3394
        %v3749 = vsel %vm3746, %v3716, %v3396
        %v3750 = vsel %vm3746, %v3717, %v3398
        %v3751 = vsel %vm3746, %v3718, %v3400
        %v3752 = vsel %vm3746, %v3719, %v3402
        %v3753 = vsel %vm3746, %v3720, %v3404
        %v3754 = vsel %vm3746, %v3721, %v3406
        %v3755 = vsel %vm3746, %v3722, %v3408
        %v3756 = vsel %vm3746, %v3723, %v3410
        %v3757 = vsel %vm3746, %v3724, %v3412
        %v3758 = vsel %vm3746, %v3725, %v3414
        %v3759 = vsel %vm3746, %v3726, %v3416
        %v3760 = vsel %vm3746, %v3727, %v3418
        %v3761 = vsel %vm3746, %v3728, %v3420
        %v3762 = vsel %vm3746, %v3729, %v3422
        %v3763 = vsel %vm3746, %v3730, %v3424
        %v3764 = vsel %vm3746, %v3731, %v3426
        %v3765 = vsel %vm3746, %v3732, %v3428
        %v3766 = vsel %vm3746, %v3733, %v3430
        %v3767 = vsel %vm3746, %v3734, %v3432
        %v3768 = vsel %vm3746, %v3735, %v3434
        %v3769 = vsel %vm3746, %v3736, %v3436
        %v3770 = vsel %vm3746, %v3737, %v3438
        %v3771 = vsel %vm3746, %v3738, %v3440
        %v3772 = vsel %vm3746, %v3739, %v3442
        %v3773 = vsel %vm3746, %v3740, %v3444
        %v3774 = vsel %vm3746, %v3741, %v3446
        %v3775 = vsel %vm3746, %v3742, %v3448
        %v3776 = vsel %vm3746, %v3743, %v3450
        %v3777 = vsel %vm3746, %v3744, %v3452
        %v3778 = vsel %vm3746, %v3745, %v3454
        %vm3779 = vcmask 916480
        %v3780 = vsel %vm3779, %v3747, %v3488
        %v3781 = vsel %vm3779, %v3748, %v3490
        %v3782 = vsel %vm3779, %v3749, %v3492
        %v3783 = vsel %vm3779, %v3750, %v3494
        %v3784 = vsel %vm3779, %v3751, %v3496
        %v3785 = vsel %vm3779, %v3752, %v3498
        %v3786 = vsel %vm3779, %v3753, %v3500
        %v3787 = vsel %vm3779, %v3754, %v3502
        %v3788 = vsel %vm3779, %v3755, %v3504
        %v3789 = vsel %vm3779, %v3756, %v3506
        %v3790 = vsel %vm3779, %v3757, %v3508
        %v3791 = vsel %vm3779, %v3758, %v3510
        %v3792 = vsel %vm3779, %v3759, %v3512
        %v3793 = vsel %vm3779, %v3760, %v3514
        %v3794 = vsel %vm3779, %v3761, %v3516
        %v3795 = vsel %vm3779, %v3762, %v3518
        %v3796 = vsel %vm3779, %v3763, %v3520
        %v3797 = vsel %vm3779, %v3764, %v3522
        %v3798 = vsel %vm3779, %v3765, %v3524
        %v3799 = vsel %vm3779, %v3766, %v3526
        %v3800 = vsel %vm3779, %v3767, %v3528
        %v3801 = vsel %vm3779, %v3768, %v3530
        %v3802 = vsel %vm3779, %v3769, %v3532
        %v3803 = vsel %vm3779, %v3770, %v3534
        %v3804 = vsel %vm3779, %v3771, %v3536
        %v3805 = vsel %vm3779, %v3772, %v3538
        %v3806 = vsel %vm3779, %v3773, %v3540
        %v3807 = vsel %vm3779, %v3774, %v3542
        %v3808 = vsel %vm3779, %v3775, %v3544
        %v3809 = vsel %vm3779, %v3776, %v3546
        %v3810 = vsel %vm3779, %v3777, %v3548
        %v3811 = vsel %vm3779, %v3778, %v3550
        %v3813 = vlaneseq
        %v3814 = vshrl.u32 %v3813, 7
        %v3815 = vsub.s32 0, %v3814
        %v3816 = vrot.slane %v2672, %v3815
        %v3818 = vsel %vm1552, %v2817, 0
        %v3820 = vsel %vm1552, %v2819, 0
        %v3822 = vsel %vm1552, %v2822, 0
        %v3824 = vsel %vm1552, %v2824, 0
        %v3826 = vsel %vm1552, %v2827, 0
        %v3828 = vsel %vm1552, %v2829, 0
        %v3830 = vsel %vm1552, %v2832, 0
        %v3832 = vsel %vm1552, %v2834, 0
        %v3834 = vsel %vm1552, %v2837, 0
        %v3836 = vsel %vm1552, %v2839, 0
        %v3838 = vsel %vm1552, %v2842, 0
        %v3840 = vsel %vm1552, %v2844, 0
        %v3842 = vsel %vm1552, %v2847, 0
        %v3844 = vsel %vm1552, %v2849, 0
        %v3846 = vsel %vm1552, %v2852, 0
        %v3848 = vsel %vm1552, %v2854, 0
        %v3850 = vsel %vm1552, %v2857, 0
        %v3852 = vsel %vm1552, %v2859, 0
        %v3854 = vsel %vm1552, %v2862, 0
        %v3856 = vsel %vm1552, %v2864, 0
        %v3858 = vsel %vm1552, %v2867, 0
        %v3860 = vsel %vm1552, %v2869, 0
        %v3862 = vsel %vm1552, %v2872, 0
        %v3864 = vsel %vm1552, %v2874, 0
        %v3866 = vsel %vm1552, %v2877, 0
        %v3868 = vsel %vm1552, %v2879, 0
        %v3870 = vsel %vm1552, %v2882, 0
        %v3872 = vsel %vm1552, %v2884, 0
        %v3874 = vsel %vm1552, %v2895, 0
        %v3876 = vsel %vm1552, %v2897, 0
        %v3878 = vsel %vm1552, %v2908, 0
        %v3880 = vsel %vm1552, %v2910, 0
        %3882 = vmatprep.subr.mxu0 0.0
        %3883 = vmatpush1.msra.mxu0 %v2669
        %3884 = vmatprep.subr.mxu0 0.0
        %3885 = vmatpush1.msra.mxu0 %v2668
        %3886 = vmatprep.subr.mxu0 0.0
        %3887 = vmatpush1.msra.mxu0 %v2667
        %3888 = vmatprep.subr.mxu0 0.0
        %3889 = vmatpush1.msra.mxu0 %v2666
        %3890 = vmatprep.subr.mxu0 0.0
        %3891 = vmatpush1.msra.mxu0 %v2665
        %3892 = vmatprep.subr.mxu0 0.0
        %3893 = vmatpush1.msra.mxu0 %v2664
        %3894 = vmatprep.subr.mxu0 0.0
        %3895 = vmatpush1.msra.mxu0 %v2663
        %3896 = vmatprep.subr.mxu0 0.0
        %3897 = vmatpush1.msra.mxu0 %v2662
        %3898 = vmatprep.subr.mxu0 0.0
        %3899 = vmatpush1.msra.mxu0 %v2661
        %3900 = vmatprep.subr.mxu0 0.0
        %3901 = vmatpush1.msra.mxu0 %v2660
        %3902 = vmatprep.subr.mxu0 0.0
        %3903 = vmatpush1.msra.mxu0 %v2659
        %3904 = vmatprep.subr.mxu0 0.0
        %3905 = vmatpush1.msra.mxu0 %v2658
        %3906 = vmatprep.subr.mxu0 0.0
        %3907 = vmatpush1.msra.mxu0 %v2657
        %3908 = vmatprep.subr.mxu0 0.0
        %3909 = vmatpush1.msra.mxu0 %v2656
        %3910 = vmatprep.subr.mxu0 0.0
        %3911 = vmatpush1.msra.mxu0 %v2655
        %3912 = vmatprep.subr.mxu0 0.0
        %3913 = vmatpush1.msra.mxu0 %v2654
        %3914 = vmatprep.subr.mxu0 0.0
        %3915 = vmatpush2.msra.mxu0 0.0
        %3916 = vmatprep.subr.mxu0 0.0
        %3917 = vmatpush2.msra.mxu0 0.0
        %3918 = vmatprep.subr.mxu0 0.0
        %3919 = vmatpush2.msra.mxu0 0.0
        %3920 = vmatprep.subr.mxu0 0.0
        %3921 = vmatpush2.msra.mxu0 0.0
        %3922 = vmatprep.subr.mxu0 0.0
        %3923 = vmatpush2.msra.mxu0 0.0
        %3924 = vmatprep.subr.mxu0 0.0
        %3925 = vmatpush2.msra.mxu0 0.0
        %3926 = vmatprep.subr.mxu0 0.0
        %3927 = vmatpush2.msra.mxu0 0.0
        %3928 = vmatprep.subr.mxu0 0.0
        %3929 = vmatpush2.msra.mxu0 0.0
        %3930 = vmatprep.subr.mxu0 0.0
        %3931 = vmatpush2.msra.mxu0 0.0
        %3932 = vmatprep.subr.mxu0 0.0
        %3933 = vmatpush2.msra.mxu0 0.0
        %3934 = vmatprep.subr.mxu0 0.0
        %3935 = vmatpush2.msra.mxu0 0.0
        %3936 = vmatprep.subr.mxu0 0.0
        %3937 = vmatpush2.msra.mxu0 0.0
        %3938 = vmatprep.subr.mxu0 0.0
        %3939 = vmatpush2.msra.mxu0 0.0
        %3940 = vmatprep.subr.mxu0 0.0
        %3941 = vmatpush2.msra.mxu0 0.0
        %3942 = vmatprep.subr.mxu0 0.0
        %3943 = vmatpush2.msra.mxu0 %v2671
        %3944 = vmatprep.subr.mxu0 0.0
        %3945 = vmatpush2.msra.mxu0 %v2670
        %3946 = vmatprep.mubr.f32.mxu0 %v3818
        %3947 = vmatmul.mubr.f32.gmra.mxu0 %v3780
        %v3948 = vpop.f32.mrf.mxu0
        %v3949 = vadd.f32 %v3816, %v3948
        %v3950 = vpop.f32.mrf.mxu0
        %3951 = vmatprep.mubr.f32.mxu0 %v3820
        %3952 = vmatmul.mubr.f32.gmra.mxu0 %v3781
        %v3953 = vpop.f32.mrf.mxu0
        %v3954 = vadd.f32 %v3816, %v3953
        %v3955 = vpop.f32.mrf.mxu0
        %3956 = vmatprep.mubr.f32.mxu0 %v3822
        %3957 = vmatmul.mubr.f32.gmra.mxu0 %v3782
        %v3958 = vpop.f32.mrf.mxu0
        %v3959 = vadd.f32 %v3816, %v3958
        %v3960 = vpop.f32.mrf.mxu0
        %3961 = vmatprep.mubr.f32.mxu0 %v3824
        %3962 = vmatmul.mubr.f32.gmra.mxu0 %v3783
        %v3963 = vpop.f32.mrf.mxu0
        %v3964 = vadd.f32 %v3816, %v3963
        %v3965 = vpop.f32.mrf.mxu0
        %3966 = vmatprep.mubr.f32.mxu0 %v3826
        %3967 = vmatmul.mubr.f32.gmra.mxu0 %v3784
        %v3968 = vpop.f32.mrf.mxu0
        %v3969 = vadd.f32 %v3816, %v3968
        %v3970 = vpop.f32.mrf.mxu0
        %3971 = vmatprep.mubr.f32.mxu0 %v3828
        %3972 = vmatmul.mubr.f32.gmra.mxu0 %v3785
        %v3973 = vpop.f32.mrf.mxu0
        %v3974 = vadd.f32 %v3816, %v3973
        %v3975 = vpop.f32.mrf.mxu0
        %3976 = vmatprep.mubr.f32.mxu0 %v3830
        %3977 = vmatmul.mubr.f32.gmra.mxu0 %v3786
        %v3978 = vpop.f32.mrf.mxu0
        %v3979 = vadd.f32 %v3816, %v3978
        %v3980 = vpop.f32.mrf.mxu0
        %3981 = vmatprep.mubr.f32.mxu0 %v3832
        %3982 = vmatmul.mubr.f32.gmra.mxu0 %v3787
        %v3983 = vpop.f32.mrf.mxu0
        %v3984 = vadd.f32 %v3816, %v3983
        %v3985 = vpop.f32.mrf.mxu0
        %3986 = vmatprep.mubr.f32.mxu0 %v3834
        %3987 = vmatmul.mubr.f32.gmra.mxu0 %v3788
        %v3988 = vpop.f32.mrf.mxu0
        %v3989 = vadd.f32 %v3816, %v3988
        %v3990 = vpop.f32.mrf.mxu0
        %3991 = vmatprep.mubr.f32.mxu0 %v3836
        %3992 = vmatmul.mubr.f32.gmra.mxu0 %v3789
        %v3993 = vpop.f32.mrf.mxu0
        %v3994 = vadd.f32 %v3816, %v3993
        %v3995 = vpop.f32.mrf.mxu0
        %3996 = vmatprep.mubr.f32.mxu0 %v3838
        %3997 = vmatmul.mubr.f32.gmra.mxu0 %v3790
        %v3998 = vpop.f32.mrf.mxu0
        %v3999 = vadd.f32 %v3816, %v3998
        %v4000 = vpop.f32.mrf.mxu0
        %4001 = vmatprep.mubr.f32.mxu0 %v3840
        %4002 = vmatmul.mubr.f32.gmra.mxu0 %v3791
        %v4003 = vpop.f32.mrf.mxu0
        %v4004 = vadd.f32 %v3816, %v4003
        %v4005 = vpop.f32.mrf.mxu0
        %4006 = vmatprep.mubr.f32.mxu0 %v3842
        %4007 = vmatmul.mubr.f32.gmra.mxu0 %v3792
        %v4008 = vpop.f32.mrf.mxu0
        %v4009 = vadd.f32 %v3816, %v4008
        %v4010 = vpop.f32.mrf.mxu0
        %4011 = vmatprep.mubr.f32.mxu0 %v3844
        %4012 = vmatmul.mubr.f32.gmra.mxu0 %v3793
        %v4013 = vpop.f32.mrf.mxu0
        %v4014 = vadd.f32 %v3816, %v4013
        %v4015 = vpop.f32.mrf.mxu0
        %4016 = vmatprep.mubr.f32.mxu0 %v3846
        %4017 = vmatmul.mubr.f32.gmra.mxu0 %v3794
        %v4018 = vpop.f32.mrf.mxu0
        %v4019 = vadd.f32 %v3816, %v4018
        %v4020 = vpop.f32.mrf.mxu0
        %4021 = vmatprep.mubr.f32.mxu0 %v3848
        %4022 = vmatmul.mubr.f32.gmra.mxu0 %v3795
        %v4023 = vpop.f32.mrf.mxu0
        %v4024 = vadd.f32 %v3816, %v4023
        %v4025 = vpop.f32.mrf.mxu0
        %4026 = vmatprep.mubr.f32.mxu0 %v3850
        %4027 = vmatmul.mubr.f32.gmra.mxu0 %v3796
        %v4028 = vpop.f32.mrf.mxu0
        %v4029 = vadd.f32 %v3816, %v4028
        %v4030 = vpop.f32.mrf.mxu0
        %4031 = vmatprep.mubr.f32.mxu0 %v3852
        %4032 = vmatmul.mubr.f32.gmra.mxu0 %v3797
        %v4033 = vpop.f32.mrf.mxu0
        %v4034 = vadd.f32 %v3816, %v4033
        %v4035 = vpop.f32.mrf.mxu0
        %4036 = vmatprep.mubr.f32.mxu0 %v3854
        %4037 = vmatmul.mubr.f32.gmra.mxu0 %v3798
        %v4038 = vpop.f32.mrf.mxu0
        %v4039 = vadd.f32 %v3816, %v4038
        %v4040 = vpop.f32.mrf.mxu0
        %4041 = vmatprep.mubr.f32.mxu0 %v3856
        %4042 = vmatmul.mubr.f32.gmra.mxu0 %v3799
        %v4043 = vpop.f32.mrf.mxu0
        %v4044 = vadd.f32 %v3816, %v4043
        %v4045 = vpop.f32.mrf.mxu0
        %4046 = vmatprep.mubr.f32.mxu0 %v3858
        %4047 = vmatmul.mubr.f32.gmra.mxu0 %v3800
        %v4048 = vpop.f32.mrf.mxu0
        %v4049 = vadd.f32 %v3816, %v4048
        %v4050 = vpop.f32.mrf.mxu0
        %4051 = vmatprep.mubr.f32.mxu0 %v3860
        %4052 = vmatmul.mubr.f32.gmra.mxu0 %v3801
        %v4053 = vpop.f32.mrf.mxu0
        %v4054 = vadd.f32 %v3816, %v4053
        %v4055 = vpop.f32.mrf.mxu0
        %4056 = vmatprep.mubr.f32.mxu0 %v3862
        %4057 = vmatmul.mubr.f32.gmra.mxu0 %v3802
        %v4058 = vpop.f32.mrf.mxu0
        %v4059 = vadd.f32 %v3816, %v4058
        %v4060 = vpop.f32.mrf.mxu0
        %4061 = vmatprep.mubr.f32.mxu0 %v3864
        %4062 = vmatmul.mubr.f32.gmra.mxu0 %v3803
        %v4063 = vpop.f32.mrf.mxu0
        %v4064 = vadd.f32 %v3816, %v4063
        %v4065 = vpop.f32.mrf.mxu0
        %4066 = vmatprep.mubr.f32.mxu0 %v3866
        %4067 = vmatmul.mubr.f32.gmra.mxu0 %v3804
        %v4068 = vpop.f32.mrf.mxu0
        %v4069 = vadd.f32 %v3816, %v4068
        %v4070 = vpop.f32.mrf.mxu0
        %4071 = vmatprep.mubr.f32.mxu0 %v3868
        %4072 = vmatmul.mubr.f32.gmra.mxu0 %v3805
        %v4073 = vpop.f32.mrf.mxu0
        %v4074 = vadd.f32 %v3816, %v4073
        %v4075 = vpop.f32.mrf.mxu0
        %4076 = vmatprep.mubr.f32.mxu0 %v3870
        %4077 = vmatmul.mubr.f32.gmra.mxu0 %v3806
        %v4078 = vpop.f32.mrf.mxu0
        %v4079 = vadd.f32 %v3816, %v4078
        %v4080 = vpop.f32.mrf.mxu0
        %4081 = vmatprep.mubr.f32.mxu0 %v3872
        %4082 = vmatmul.mubr.f32.gmra.mxu0 %v3807
        %v4083 = vpop.f32.mrf.mxu0
        %v4084 = vadd.f32 %v3816, %v4083
        %v4085 = vpop.f32.mrf.mxu0
        %4086 = vmatprep.mubr.f32.mxu0 %v3874
        %4087 = vmatmul.mubr.f32.gmra.mxu0 %v3808
        %v4088 = vpop.f32.mrf.mxu0
        %v4089 = vadd.f32 %v3816, %v4088
        %v4090 = vpop.f32.mrf.mxu0
        %4091 = vmatprep.mubr.f32.mxu0 %v3876
        %4092 = vmatmul.mubr.f32.gmra.mxu0 %v3809
        %v4093 = vpop.f32.mrf.mxu0
        %v4094 = vadd.f32 %v3816, %v4093
        %v4095 = vpop.f32.mrf.mxu0
        %4096 = vmatprep.mubr.f32.mxu0 %v3878
        %4097 = vmatmul.mubr.f32.gmra.mxu0 %v3810
        %v4098 = vpop.f32.mrf.mxu0
        %v4099 = vadd.f32 %v3816, %v4098
        %v4100 = vpop.f32.mrf.mxu0
        %4101 = vmatprep.mubr.f32.mxu0 %v3880
        %4102 = vmatmul.mubr.f32.gmra.mxu0 %v3811
        %v4103 = vpop.f32.mrf.mxu0
        %v4104 = vadd.f32 %v3816, %v4103
        %v4105 = vpop.f32.mrf.mxu0
        %4106 = vdwg.mxu0
        %v4107 = vsel %vm1552, %v3949, 0.0
        %v4108 = vsel %vm1552, %v3954, 0.0
        %v4109 = vadd.f32 %v4107, %v4108
        %v4110 = vsel %vm1552, %v3959, 0.0
        %v4111 = vadd.f32 %v4109, %v4110
        %v4112 = vsel %vm1552, %v3964, 0.0
        %v4113 = vadd.f32 %v4111, %v4112
        %v4114 = vsel %vm1552, %v3969, 0.0
        %v4115 = vadd.f32 %v4113, %v4114
        %v4116 = vsel %vm1552, %v3974, 0.0
        %v4117 = vadd.f32 %v4115, %v4116
        %v4118 = vsel %vm1552, %v3979, 0.0
        %v4119 = vadd.f32 %v4117, %v4118
        %v4120 = vsel %vm1552, %v3984, 0.0
        %v4121 = vadd.f32 %v4119, %v4120
        %v4122 = vsel %vm1552, %v3989, 0.0
        %v4123 = vadd.f32 %v4121, %v4122
        %v4124 = vsel %vm1552, %v3994, 0.0
        %v4125 = vadd.f32 %v4123, %v4124
        %v4126 = vsel %vm1552, %v3999, 0.0
        %v4127 = vadd.f32 %v4125, %v4126
        %v4128 = vsel %vm1552, %v4004, 0.0
        %v4129 = vadd.f32 %v4127, %v4128
        %v4130 = vsel %vm1552, %v4009, 0.0
        %v4131 = vadd.f32 %v4129, %v4130
        %v4132 = vsel %vm1552, %v4014, 0.0
        %v4133 = vadd.f32 %v4131, %v4132
        %v4134 = vsel %vm1552, %v4019, 0.0
        %v4135 = vadd.f32 %v4133, %v4134
        %v4136 = vsel %vm1552, %v4024, 0.0
        %v4137 = vadd.f32 %v4135, %v4136
        %v4138 = vsel %vm1552, %v4029, 0.0
        %v4139 = vadd.f32 %v4137, %v4138
        %v4140 = vsel %vm1552, %v4034, 0.0
        %v4141 = vadd.f32 %v4139, %v4140
        %v4142 = vsel %vm1552, %v4039, 0.0
        %v4143 = vadd.f32 %v4141, %v4142
        %v4144 = vsel %vm1552, %v4044, 0.0
        %v4145 = vadd.f32 %v4143, %v4144
        %v4146 = vsel %vm1552, %v4049, 0.0
        %v4147 = vadd.f32 %v4145, %v4146
        %v4148 = vsel %vm1552, %v4054, 0.0
        %v4149 = vadd.f32 %v4147, %v4148
        %v4150 = vsel %vm1552, %v4059, 0.0
        %v4151 = vadd.f32 %v4149, %v4150
        %v4152 = vsel %vm1552, %v4064, 0.0
        %v4153 = vadd.f32 %v4151, %v4152
        %v4154 = vsel %vm1552, %v4069, 0.0
        %v4155 = vadd.f32 %v4153, %v4154
        %v4156 = vsel %vm1552, %v4074, 0.0
        %v4157 = vadd.f32 %v4155, %v4156
        %v4158 = vsel %vm1552, %v4079, 0.0
        %v4159 = vadd.f32 %v4157, %v4158
        %v4160 = vsel %vm1552, %v4084, 0.0
        %v4161 = vadd.f32 %v4159, %v4160
        %v4162 = vsel %vm1552, %v4089, 0.0
        %v4163 = vadd.f32 %v4161, %v4162
        %v4164 = vsel %vm1552, %v4094, 0.0
        %v4165 = vadd.f32 %v4163, %v4164
        %v4166 = vsel %vm1552, %v4099, 0.0
        %v4167 = vadd.f32 %v4165, %v4166
        %v4168 = vsel %vm1552, %v4104, 0.0
        %v4169 = vadd.f32 %v4167, %v4168
        %v4170 = vrot.slane %v4169, 4
        %v4171 = vadd.f32 %v4169, %v4170
        %v4172 = vrot.slane %v4171, 2
        %v4173 = vadd.f32 %v4171, %v4172
        %v4174 = vrot.slane %v4173, 1
        %v4175 = vadd.f32 %v4173, %v4174
        %v4176 = vmul.f32 %v4175, %v2118
        %v4178 = vsel %vm1552, %v4176, 0
        %4180 = vmatprep.subr.mxu0 0.0
        %4181 = vmatpush1.msra.mxu0 0.0
        %4182 = vmatprep.subr.mxu0 0.0
        %4183 = vmatpush1.msra.mxu0 0.0
        %4184 = vmatprep.subr.mxu0 0.0
        %4185 = vmatpush1.msra.mxu0 0.0
        %4186 = vmatprep.subr.mxu0 0.0
        %4187 = vmatpush1.msra.mxu0 0.0
        %4188 = vmatprep.subr.mxu0 0.0
        %4189 = vmatpush1.msra.mxu0 0.0
        %4190 = vmatprep.subr.mxu0 0.0
        %4191 = vmatpush1.msra.mxu0 0.0
        %4192 = vmatprep.subr.mxu0 0.0
        %4193 = vmatpush1.msra.mxu0 0.0
        %4194 = vmatprep.subr.mxu0 0.0
        %4195 = vmatpush1.msra.mxu0 0.0
        %4196 = vmatprep.subr.mxu0 0.0
        %4197 = vmatpush1.msra.mxu0 0.0
        %4198 = vmatprep.subr.mxu0 0.0
        %4199 = vmatpush1.msra.mxu0 0.0
        %4200 = vmatprep.subr.mxu0 0.0
        %4201 = vmatpush1.msra.mxu0 0.0
        %4202 = vmatprep.subr.mxu0 0.0
        %4203 = vmatpush1.msra.mxu0 0.0
        %4204 = vmatprep.subr.mxu0 0.0
        %4205 = vmatpush1.msra.mxu0 0.0
        %4206 = vmatprep.subr.mxu0 0.0
        %4207 = vmatpush1.msra.mxu0 0.0
        %4208 = vmatprep.subr.mxu0 0.0
        %4209 = vmatpush1.msra.mxu0 %v2674
        %4210 = vmatprep.subr.mxu0 0.0
        %4211 = vmatpush1.msra.mxu0 %v2673
        %4212 = vmatprep.subr.mxu0 0.0
        %4213 = vmatpush2.msra.mxu0 0.0
        %4214 = vmatprep.subr.mxu0 0.0
        %4215 = vmatpush2.msra.mxu0 0.0
        %4216 = vmatprep.subr.mxu0 0.0
        %4217 = vmatpush2.msra.mxu0 0.0
        %4218 = vmatprep.subr.mxu0 0.0
        %4219 = vmatpush2.msra.mxu0 0.0
        %4220 = vmatprep.subr.mxu0 0.0
        %4221 = vmatpush2.msra.mxu0 0.0
        %4222 = vmatprep.subr.mxu0 0.0
        %4223 = vmatpush2.msra.mxu0 0.0
        %4224 = vmatprep.subr.mxu0 0.0
        %4225 = vmatpush2.msra.mxu0 0.0
        %4226 = vmatprep.subr.mxu0 0.0
        %4227 = vmatpush2.msra.mxu0 0.0
        %4228 = vmatprep.subr.mxu0 0.0
        %4229 = vmatpush2.msra.mxu0 0.0
        %4230 = vmatprep.subr.mxu0 0.0
        %4231 = vmatpush2.msra.mxu0 0.0
        %4232 = vmatprep.subr.mxu0 0.0
        %4233 = vmatpush2.msra.mxu0 0.0
        %4234 = vmatprep.subr.mxu0 0.0
        %4235 = vmatpush2.msra.mxu0 0.0
        %4236 = vmatprep.subr.mxu0 0.0
        %4237 = vmatpush2.msra.mxu0 0.0
        %4238 = vmatprep.subr.mxu0 0.0
        %4239 = vmatpush2.msra.mxu0 0.0
        %4240 = vmatprep.subr.mxu0 0.0
        %4241 = vmatpush2.msra.mxu0 0.0
        %4242 = vmatprep.subr.mxu0 0.0
        %4243 = vmatpush2.msra.mxu0 0.0
        %4244 = vmatprep.mubr.f32.mxu0 0.0
        %4245 = vmatmul.mubr.f32.gmra.mxu0 %v4178
        %v4246 = vpop.f32.mrf.mxu0
        %v4247 = vadd.f32 0.0, %v4246
        %v4248 = vpop.f32.mrf.mxu0
        %4249 = vdwg.mxu0
        %v4250 = vlaneseq
        %v4251 = vshrl.u32 %v4250, 7
        %v4252 = vsub.s32 0, %v4251
        %v4253 = vrot.slane %v4247, %v4252
        %v4254 = vsub.f32 %v3949, %v4253
        %v4255 = vsub.f32 %v3954, %v4253
        %v4256 = vsub.f32 %v3959, %v4253
        %v4257 = vsub.f32 %v3964, %v4253
        %v4258 = vsub.f32 %v3969, %v4253
        %v4259 = vsub.f32 %v3974, %v4253
        %v4260 = vsub.f32 %v3979, %v4253
        %v4261 = vsub.f32 %v3984, %v4253
        %v4262 = vsub.f32 %v3989, %v4253
        %v4263 = vsub.f32 %v3994, %v4253
        %v4264 = vsub.f32 %v3999, %v4253
        %v4265 = vsub.f32 %v4004, %v4253
        %v4266 = vsub.f32 %v4009, %v4253
        %v4267 = vsub.f32 %v4014, %v4253
        %v4268 = vsub.f32 %v4019, %v4253
        %v4269 = vsub.f32 %v4024, %v4253
        %v4270 = vsub.f32 %v4029, %v4253
        %v4271 = vsub.f32 %v4034, %v4253
        %v4272 = vsub.f32 %v4039, %v4253
        %v4273 = vsub.f32 %v4044, %v4253
        %v4274 = vsub.f32 %v4049, %v4253
        %v4275 = vsub.f32 %v4054, %v4253
        %v4276 = vsub.f32 %v4059, %v4253
        %v4277 = vsub.f32 %v4064, %v4253
        %v4278 = vsub.f32 %v4069, %v4253
        %v4279 = vsub.f32 %v4074, %v4253
        %v4280 = vsub.f32 %v4079, %v4253
        %v4281 = vsub.f32 %v4084, %v4253
        %v4282 = vsub.f32 %v4089, %v4253
        %v4283 = vsub.f32 %v4094, %v4253
        %v4284 = vsub.f32 %v4099, %v4253
        %v4285 = vsub.f32 %v4104, %v4253
        %v4286 = vmul.f32 %v4254, %v4254
        %v4287 = vmul.f32 %v4255, %v4255
        %v4288 = vmul.f32 %v4256, %v4256
        %v4289 = vmul.f32 %v4257, %v4257
        %v4290 = vmul.f32 %v4258, %v4258
        %v4291 = vmul.f32 %v4259, %v4259
        %v4292 = vmul.f32 %v4260, %v4260
        %v4293 = vmul.f32 %v4261, %v4261
        %v4294 = vmul.f32 %v4262, %v4262
        %v4295 = vmul.f32 %v4263, %v4263
        %v4296 = vmul.f32 %v4264, %v4264
        %v4297 = vmul.f32 %v4265, %v4265
        %v4298 = vmul.f32 %v4266, %v4266
        %v4299 = vmul.f32 %v4267, %v4267
        %v4300 = vmul.f32 %v4268, %v4268
        %v4301 = vmul.f32 %v4269, %v4269
        %v4302 = vmul.f32 %v4270, %v4270
        %v4303 = vmul.f32 %v4271, %v4271
        %v4304 = vmul.f32 %v4272, %v4272
        %v4305 = vmul.f32 %v4273, %v4273
        %v4306 = vmul.f32 %v4274, %v4274
        %v4307 = vmul.f32 %v4275, %v4275
        %v4308 = vmul.f32 %v4276, %v4276
        %v4309 = vmul.f32 %v4277, %v4277
        %v4310 = vmul.f32 %v4278, %v4278
        %v4311 = vmul.f32 %v4279, %v4279
        %v4312 = vmul.f32 %v4280, %v4280
        %v4313 = vmul.f32 %v4281, %v4281
        %v4314 = vmul.f32 %v4282, %v4282
        %v4315 = vmul.f32 %v4283, %v4283
        %v4316 = vmul.f32 %v4284, %v4284
        %v4317 = vmul.f32 %v4285, %v4285
        %v4318 = vsel %vm1552, %v4286, 0.0
        %v4319 = vsel %vm1552, %v4287, 0.0
        %v4320 = vadd.f32 %v4318, %v4319
        %v4321 = vsel %vm1552, %v4288, 0.0
        %v4322 = vadd.f32 %v4320, %v4321
        %v4323 = vsel %vm1552, %v4289, 0.0
        %v4324 = vadd.f32 %v4322, %v4323
        %v4325 = vsel %vm1552, %v4290, 0.0
        %v4326 = vadd.f32 %v4324, %v4325
        %v4327 = vsel %vm1552, %v4291, 0.0
        %v4328 = vadd.f32 %v4326, %v4327
        %v4329 = vsel %vm1552, %v4292, 0.0
        %v4330 = vadd.f32 %v4328, %v4329
        %v4331 = vsel %vm1552, %v4293, 0.0
        %v4332 = vadd.f32 %v4330, %v4331
        %v4333 = vsel %vm1552, %v4294, 0.0
        %v4334 = vadd.f32 %v4332, %v4333
        %v4335 = vsel %vm1552, %v4295, 0.0
        %v4336 = vadd.f32 %v4334, %v4335
        %v4337 = vsel %vm1552, %v4296, 0.0
        %v4338 = vadd.f32 %v4336, %v4337
        %v4339 = vsel %vm1552, %v4297, 0.0
        %v4340 = vadd.f32 %v4338, %v4339
        %v4341 = vsel %vm1552, %v4298, 0.0
        %v4342 = vadd.f32 %v4340, %v4341
        %v4343 = vsel %vm1552, %v4299, 0.0
        %v4344 = vadd.f32 %v4342, %v4343
        %v4345 = vsel %vm1552, %v4300, 0.0
        %v4346 = vadd.f32 %v4344, %v4345
        %v4347 = vsel %vm1552, %v4301, 0.0
        %v4348 = vadd.f32 %v4346, %v4347
        %v4349 = vsel %vm1552, %v4302, 0.0
        %v4350 = vadd.f32 %v4348, %v4349
        %v4351 = vsel %vm1552, %v4303, 0.0
        %v4352 = vadd.f32 %v4350, %v4351
        %v4353 = vsel %vm1552, %v4304, 0.0
        %v4354 = vadd.f32 %v4352, %v4353
        %v4355 = vsel %vm1552, %v4305, 0.0
        %v4356 = vadd.f32 %v4354, %v4355
        %v4357 = vsel %vm1552, %v4306, 0.0
        %v4358 = vadd.f32 %v4356, %v4357
        %v4359 = vsel %vm1552, %v4307, 0.0
        %v4360 = vadd.f32 %v4358, %v4359
        %v4361 = vsel %vm1552, %v4308, 0.0
        %v4362 = vadd.f32 %v4360, %v4361
        %v4363 = vsel %vm1552, %v4309, 0.0
        %v4364 = vadd.f32 %v4362, %v4363
        %v4365 = vsel %vm1552, %v4310, 0.0
        %v4366 = vadd.f32 %v4364, %v4365
        %v4367 = vsel %vm1552, %v4311, 0.0
        %v4368 = vadd.f32 %v4366, %v4367
        %v4369 = vsel %vm1552, %v4312, 0.0
        %v4370 = vadd.f32 %v4368, %v4369
        %v4371 = vsel %vm1552, %v4313, 0.0
        %v4372 = vadd.f32 %v4370, %v4371
        %v4373 = vsel %vm1552, %v4314, 0.0
        %v4374 = vadd.f32 %v4372, %v4373
        %v4375 = vsel %vm1552, %v4315, 0.0
        %v4376 = vadd.f32 %v4374, %v4375
        %v4377 = vsel %vm1552, %v4316, 0.0
        %v4378 = vadd.f32 %v4376, %v4377
        %v4379 = vsel %vm1552, %v4317, 0.0
        %v4380 = vadd.f32 %v4378, %v4379
        %v4381 = vrot.slane %v4380, 4
        %v4382 = vadd.f32 %v4380, %v4381
        %v4383 = vrot.slane %v4382, 2
        %v4384 = vadd.f32 %v4382, %v4383
        %v4385 = vrot.slane %v4384, 1
        %v4386 = vadd.f32 %v4384, %v4385
        %v4387 = vmul.f32 %v4386, %v2118
        %v4389 = vsel %vm1552, %v4387, 0
        %4391 = vmatprep.subr.mxu0 0.0
        %4392 = vmatpush1.msra.mxu0 0.0
        %4393 = vmatprep.subr.mxu0 0.0
        %4394 = vmatpush1.msra.mxu0 0.0
        %4395 = vmatprep.subr.mxu0 0.0
        %4396 = vmatpush1.msra.mxu0 0.0
        %4397 = vmatprep.subr.mxu0 0.0
        %4398 = vmatpush1.msra.mxu0 0.0
        %4399 = vmatprep.subr.mxu0 0.0
        %4400 = vmatpush1.msra.mxu0 0.0
        %4401 = vmatprep.subr.mxu0 0.0
        %4402 = vmatpush1.msra.mxu0 0.0
        %4403 = vmatprep.subr.mxu0 0.0
        %4404 = vmatpush1.msra.mxu0 0.0
        %4405 = vmatprep.subr.mxu0 0.0
        %4406 = vmatpush1.msra.mxu0 0.0
        %4407 = vmatprep.subr.mxu0 0.0
        %4408 = vmatpush1.msra.mxu0 0.0
        %4409 = vmatprep.subr.mxu0 0.0
        %4410 = vmatpush1.msra.mxu0 0.0
        %4411 = vmatprep.subr.mxu0 0.0
        %4412 = vmatpush1.msra.mxu0 0.0
        %4413 = vmatprep.subr.mxu0 0.0
        %4414 = vmatpush1.msra.mxu0 0.0
        %4415 = vmatprep.subr.mxu0 0.0
        %4416 = vmatpush1.msra.mxu0 0.0
        %4417 = vmatprep.subr.mxu0 0.0
        %4418 = vmatpush1.msra.mxu0 0.0
        %4419 = vmatprep.subr.mxu0 0.0
        %4420 = vmatpush1.msra.mxu0 %v2674
        %4421 = vmatprep.subr.mxu0 0.0
        %4422 = vmatpush1.msra.mxu0 %v2673
        %4423 = vmatprep.subr.mxu0 0.0
        %4424 = vmatpush2.msra.mxu0 0.0
        %4425 = vmatprep.subr.mxu0 0.0
        %4426 = vmatpush2.msra.mxu0 0.0
        %4427 = vmatprep.subr.mxu0 0.0
        %4428 = vmatpush2.msra.mxu0 0.0
        %4429 = vmatprep.subr.mxu0 0.0
        %4430 = vmatpush2.msra.mxu0 0.0
        %4431 = vmatprep.subr.mxu0 0.0
        %4432 = vmatpush2.msra.mxu0 0.0
        %4433 = vmatprep.subr.mxu0 0.0
        %4434 = vmatpush2.msra.mxu0 0.0
        %4435 = vmatprep.subr.mxu0 0.0
        %4436 = vmatpush2.msra.mxu0 0.0
        %4437 = vmatprep.subr.mxu0 0.0
        %4438 = vmatpush2.msra.mxu0 0.0
        %4439 = vmatprep.subr.mxu0 0.0
        %4440 = vmatpush2.msra.mxu0 0.0
        %4441 = vmatprep.subr.mxu0 0.0
        %4442 = vmatpush2.msra.mxu0 0.0
        %4443 = vmatprep.subr.mxu0 0.0
        %4444 = vmatpush2.msra.mxu0 0.0
        %4445 = vmatprep.subr.mxu0 0.0
        %4446 = vmatpush2.msra.mxu0 0.0
        %4447 = vmatprep.subr.mxu0 0.0
        %4448 = vmatpush2.msra.mxu0 0.0
        %4449 = vmatprep.subr.mxu0 0.0
        %4450 = vmatpush2.msra.mxu0 0.0
        %4451 = vmatprep.subr.mxu0 0.0
        %4452 = vmatpush2.msra.mxu0 0.0
        %4453 = vmatprep.subr.mxu0 0.0
        %4454 = vmatpush2.msra.mxu0 0.0
        %4455 = vmatprep.mubr.f32.mxu0 0.0
        %4456 = vmatmul.mubr.f32.gmra.mxu0 %v4389
        %v4457 = vpop.f32.mrf.mxu0
        %v4458 = vadd.f32 1e-05, %v4457
        %v4459 = vpop.f32.mrf.mxu0
        %4460 = vdwg.mxu0
        %v4461 = vrsqrt.pop %v4458
        %v4462 = vmul.f32 %v4461, %v2675
        %v4463 = vlaneseq
        %v4464 = vshrl.u32 %v4463, 7
        %v4465 = vsub.s32 0, %v4464
        %v4466 = vrot.slane %v4462, %v4465
        %v4467 = vmul.f32 %v4254, %v4466
        %v4468 = vmul.f32 %v4255, %v4466
        %v4469 = vmul.f32 %v4256, %v4466
        %v4470 = vmul.f32 %v4257, %v4466
        %v4471 = vmul.f32 %v4258, %v4466
        %v4472 = vmul.f32 %v4259, %v4466
        %v4473 = vmul.f32 %v4260, %v4466
        %v4474 = vmul.f32 %v4261, %v4466
        %v4475 = vmul.f32 %v4262, %v4466
        %v4476 = vmul.f32 %v4263, %v4466
        %v4477 = vmul.f32 %v4264, %v4466
        %v4478 = vmul.f32 %v4265, %v4466
        %v4479 = vmul.f32 %v4266, %v4466
        %v4480 = vmul.f32 %v4267, %v4466
        %v4481 = vmul.f32 %v4268, %v4466
        %v4482 = vmul.f32 %v4269, %v4466
        %v4483 = vmul.f32 %v4270, %v4466
        %v4484 = vmul.f32 %v4271, %v4466
        %v4485 = vmul.f32 %v4272, %v4466
        %v4486 = vmul.f32 %v4273, %v4466
        %v4487 = vmul.f32 %v4274, %v4466
        %v4488 = vmul.f32 %v4275, %v4466
        %v4489 = vmul.f32 %v4276, %v4466
        %v4490 = vmul.f32 %v4277, %v4466
        %v4491 = vmul.f32 %v4278, %v4466
        %v4492 = vmul.f32 %v4279, %v4466
        %v4493 = vmul.f32 %v4280, %v4466
        %v4494 = vmul.f32 %v4281, %v4466
        %v4495 = vmul.f32 %v4282, %v4466
        %v4496 = vmul.f32 %v4283, %v4466
        %v4497 = vmul.f32 %v4284, %v4466
        %v4498 = vmul.f32 %v4285, %v4466
        %v4500 = vlaneseq
        %v4501 = vshrl.u32 %v4500, 7
        %v4502 = vsub.s32 0, %v4501
        %v4503 = vrot.slane %v2676, %v4502
        %v4505 = vadd.f32 %v4467, %v4503
        %v4506 = vadd.f32 %v4468, %v4503
        %v4507 = vadd.f32 %v4469, %v4503
        %v4508 = vadd.f32 %v4470, %v4503
        %v4509 = vadd.f32 %v4471, %v4503
        %v4510 = vadd.f32 %v4472, %v4503
        %v4511 = vadd.f32 %v4473, %v4503
        %v4512 = vadd.f32 %v4474, %v4503
        %v4513 = vadd.f32 %v4475, %v4503
        %v4514 = vadd.f32 %v4476, %v4503
        %v4515 = vadd.f32 %v4477, %v4503
        %v4516 = vadd.f32 %v4478, %v4503
        %v4517 = vadd.f32 %v4479, %v4503
        %v4518 = vadd.f32 %v4480, %v4503
        %v4519 = vadd.f32 %v4481, %v4503
        %v4520 = vadd.f32 %v4482, %v4503
        %v4521 = vadd.f32 %v4483, %v4503
        %v4522 = vadd.f32 %v4484, %v4503
        %v4523 = vadd.f32 %v4485, %v4503
        %v4524 = vadd.f32 %v4486, %v4503
        %v4525 = vadd.f32 %v4487, %v4503
        %v4526 = vadd.f32 %v4488, %v4503
        %v4527 = vadd.f32 %v4489, %v4503
        %v4528 = vadd.f32 %v4490, %v4503
        %v4529 = vadd.f32 %v4491, %v4503
        %v4530 = vadd.f32 %v4492, %v4503
        %v4531 = vadd.f32 %v4493, %v4503
        %v4532 = vadd.f32 %v4494, %v4503
        %v4533 = vadd.f32 %v4495, %v4503
        %v4534 = vadd.f32 %v4496, %v4503
        %v4535 = vadd.f32 %v4497, %v4503
        %v4536 = vadd.f32 %v4498, %v4503
        %v4537 = vmax.f32 %v4505, 0.0
        %v4538 = vmax.f32 %v4506, 0.0
        %v4539 = vmax.f32 %v4507, 0.0
        %v4540 = vmax.f32 %v4508, 0.0
        %v4541 = vmax.f32 %v4509, 0.0
        %v4542 = vmax.f32 %v4510, 0.0
        %v4543 = vmax.f32 %v4511, 0.0
        %v4544 = vmax.f32 %v4512, 0.0
        %v4545 = vmax.f32 %v4513, 0.0
        %v4546 = vmax.f32 %v4514, 0.0
        %v4547 = vmax.f32 %v4515, 0.0
        %v4548 = vmax.f32 %v4516, 0.0
        %v4549 = vmax.f32 %v4517, 0.0
        %v4550 = vmax.f32 %v4518, 0.0
        %v4551 = vmax.f32 %v4519, 0.0
        %v4552 = vmax.f32 %v4520, 0.0
        %v4553 = vmax.f32 %v4521, 0.0
        %v4554 = vmax.f32 %v4522, 0.0
        %v4555 = vmax.f32 %v4523, 0.0
        %v4556 = vmax.f32 %v4524, 0.0
        %v4557 = vmax.f32 %v4525, 0.0
        %v4558 = vmax.f32 %v4526, 0.0
        %v4559 = vmax.f32 %v4527, 0.0
        %v4560 = vmax.f32 %v4528, 0.0
        %v4561 = vmax.f32 %v4529, 0.0
        %v4562 = vmax.f32 %v4530, 0.0
        %v4563 = vmax.f32 %v4531, 0.0
        %v4564 = vmax.f32 %v4532, 0.0
        %v4565 = vmax.f32 %v4533, 0.0
        %v4566 = vmax.f32 %v4534, 0.0
        %v4567 = vmax.f32 %v4535, 0.0
        %v4568 = vmax.f32 %v4536, 0.0
        %4569 = vst.msk [vmem:[%s379] sm:$0xff] %vm1552, %v4537
        %4570 = vst.msk [vmem:[%s379 + $0x8] sm:$0xff] %vm1552, %v4538
        %4571 = vst.msk [vmem:[%s379 + $0x10] sm:$0xff] %vm1552, %v4539
        %4572 = vst.msk [vmem:[%s379 + $0x18] sm:$0xff] %vm1552, %v4540
        %4573 = vst.msk [vmem:[%s379 + $0x20] sm:$0xff] %vm1552, %v4541
        %4574 = vst.msk [vmem:[%s379 + $0x28] sm:$0xff] %vm1552, %v4542
        %4575 = vst.msk [vmem:[%s379 + $0x30] sm:$0xff] %vm1552, %v4543
        %4576 = vst.msk [vmem:[%s379 + $0x38] sm:$0xff] %vm1552, %v4544
        %4577 = vst.msk [vmem:[%s379 + $0x40] sm:$0xff] %vm1552, %v4545
        %4578 = vst.msk [vmem:[%s379 + $0x48] sm:$0xff] %vm1552, %v4546
        %4579 = vst.msk [vmem:[%s379 + $0x50] sm:$0xff] %vm1552, %v4547
        %4580 = vst.msk [vmem:[%s379 + $0x58] sm:$0xff] %vm1552, %v4548
        %4581 = vst.msk [vmem:[%s379 + $0x60] sm:$0xff] %vm1552, %v4549
        %4582 = vst.msk [vmem:[%s379 + $0x68] sm:$0xff] %vm1552, %v4550
        %4583 = vst.msk [vmem:[%s379 + $0x70] sm:$0xff] %vm1552, %v4551
        %4584 = vst.msk [vmem:[%s379 + $0x78] sm:$0xff] %vm1552, %v4552
        %4585 = vst.msk [vmem:[%s379 + $0x80] sm:$0xff] %vm1552, %v4553
        %4586 = vst.msk [vmem:[%s379 + $0x88] sm:$0xff] %vm1552, %v4554
        %4587 = vst.msk [vmem:[%s379 + $0x90] sm:$0xff] %vm1552, %v4555
        %4588 = vst.msk [vmem:[%s379 + $0x98] sm:$0xff] %vm1552, %v4556
        %4589 = vst.msk [vmem:[%s379 + $0xa0] sm:$0xff] %vm1552, %v4557
        %4590 = vst.msk [vmem:[%s379 + $0xa8] sm:$0xff] %vm1552, %v4558
        %4591 = vst.msk [vmem:[%s379 + $0xb0] sm:$0xff] %vm1552, %v4559
        %4592 = vst.msk [vmem:[%s379 + $0xb8] sm:$0xff] %vm1552, %v4560
        %4593 = vst.msk [vmem:[%s379 + $0xc0] sm:$0xff] %vm1552, %v4561
        %4594 = vst.msk [vmem:[%s379 + $0xc8] sm:$0xff] %vm1552, %v4562
        %4595 = vst.msk [vmem:[%s379 + $0xd0] sm:$0xff] %vm1552, %v4563
        %4596 = vst.msk [vmem:[%s379 + $0xd8] sm:$0xff] %vm1552, %v4564
        %4597 = vst.msk [vmem:[%s379 + $0xe0] sm:$0xff] %vm1552, %v4565
        %4598 = vst.msk [vmem:[%s379 + $0xe8] sm:$0xff] %vm1552, %v4566
        %4599 = vst.msk [vmem:[%s379 + $0xf0] sm:$0xff] %vm1552, %v4567
        %4600 = vst.msk [vmem:[%s379 + $0xf8] sm:$0xff] %vm1552, %v4568
        %s4601 = sand.u32 %s269, 1
        %s4602 = scalar_lea.sflag [#allocation4], %s4601
        %s4603 = sand.u32 %s269, 1
        %s4604 = smul.addr %s4603, 256
        %s4605 = scalar_lea.vmem [#allocation3], %s4604
        // Predicated region
        $region65: #{tpu_custom_call.1} parent=63 // pred_check
          %p4606 = pneg %p279
        $region66: #{tpu_custom_call.1} parent=63 // pred_check_branch
          %4608 = sbr.rel (%p4606) target = $region68
        $region67: #{tpu_custom_call.1} parent=63 // pred_region
          %s4610 = ssub.s32 4096, 4096
          %4611 = vsyncadd %s4602, %s4610
          %s4612 = smul.addr %s25, 32
          %s4613 = smul.addr %s4612, 128
          %s4614 = scalar_lea.hbm %s11, %s4613
          %s4615 = sshll.u32 %s4605, 4
          %s4616 = int_to_ptr.vmem [resolvable:$true] %s4615
          %4621 = dma.vmem_to_hbm [thread:$0]  %s4616, 4096, %s4614, %s4602, 128, 128, 8
        $region68: #{tpu_custom_call.1} parent=63 // pred_fallthru
          _
      $region64: #{tpu_custom_call.1} parent=5 // pred_fallthru
        _
      %p4622 = scmp.le.s32.totalorder 2, %s20
      // Predicated region
      $region69: #{tpu_custom_call.1} parent=5 // pred_check
        %p4623 = pneg %p4622
      $region70: #{tpu_custom_call.1} parent=5 // pred_check_branch
        %4625 = sbr.rel (%p4623) target = $region72
      $region71: #{tpu_custom_call.1} parent=5 // pred_region
        %s4626 = ssub.s32 %s20, 2
        // Predicated region
        $region73: #{tpu_custom_call.1} parent=71 // pred_check
          %p4627 = pneg %p285
        $region74: #{tpu_custom_call.1} parent=71 // pred_check_branch
          %4629 = sbr.rel (%p4627) target = $region76
        $region75: #{tpu_custom_call.1} parent=71 // pred_region
          %s4630 = sand.u32 %s270, 1
          %s4631 = scalar_lea.sflag [#allocation4], %s4630
          %s4632 = sand.u32 %s270, 1
          %s4633 = smul.addr %s4632, 256
          %s4634 = scalar_lea.vmem [#allocation3], %s4633
          %4635 = dma.done %s4631, 4096
        $region76: #{tpu_custom_call.1} parent=71 // pred_fallthru
          _
      $region72: #{tpu_custom_call.1} parent=5 // pred_fallthru
        _
    $region6: #{tpu_custom_call.1} parent=1 // loop_footer
      %s24 = sadd.s32 1, %s20
    $region7: #{tpu_custom_call.1} parent=1 // loop_footer_branch
      %19 = sbr.rel target = $region3
    $region8: #{tpu_custom_call.1} parent=1 // loop_exit
      _
    %4636 = vsyncpa [#allocation4], 1
    %s4637 = scalar_lea.sflag [#allocation4], 1
    %4638 = vsyncpa %s4637, 1

</llo_original>
